<compile_context>
chip_gen: v6e
topology: v6e:2x2x1
jax: 0.10.0
libtpu: 0.0.40
codegen_flags: <defaults>
</compile_context>

<pallas_src>
import functools

import jax
import jax.numpy as jnp
from jax.experimental import pallas as pl
from jax.experimental.pallas import tpu as pltpu


def _round_up(x, m):
    return ((x + m - 1) // m) * m


def _conv_relu_kernel(x_ref, w_ref, b_ref, o_ref, *, tr, kh, kw, wo, cin):
    # x_ref: (1, Hp_tot, Wp_tot, Cin)  bf16 padded image (whole image in VMEM)
    # w_ref: (KH, KW, Cin, TN)         bf16 weight tile
    # b_ref: (1, TN)                   f32 bias tile
    # o_ref: (1, TR, Wo_pad, TN)       output tile (lane dense: TN % 128 == 0)
    r = pl.program_id(1)
    row0 = r * tr                       # first output row of this tile
    tn = o_ref.shape[-1]

    acc = jnp.zeros((tr * wo, tn), jnp.float32)
    # Per-tap matmuls, K = Cin, accumulated in f32.  Tap windows are gathered
    # straight out of the VMEM-resident padded image (no im2col in HBM).
    for di in range(kh):
        for dj in range(kw):
            xs = x_ref[0, pl.ds(row0 + di, tr), pl.ds(dj, wo), :]   # (TR, Wo, Cin)
            xs = xs.reshape(tr * wo, cin)                           # view (Wo % 8 == 0)
            acc = acc + jnp.dot(xs, w_ref[di, dj],
                                preferred_element_type=jnp.float32)

    acc = acc + b_ref[...]                                          # f32 bias
    out = jnp.maximum(acc, 0.0).reshape(tr, wo, tn)
    o_ref[0] = out.astype(o_ref.dtype)


@functools.partial(jax.jit, static_argnames=("padding",))
def conv_block_forward(x_nchw, weight_oihw, bias, *, padding):
    """ConvBlock forward: Conv2d(stride=1, padding=padding) + ReLU.

    x_nchw:       (N, C_in, H, W)       -- PyTorch NCHW convention
    weight_oihw:  (C_out, C_in, KH, KW) -- PyTorch Conv2d weight layout
    bias:         (C_out,)
    returns:      (N, C_out, H_out, W_out) in NCHW
    """
    n, c_in, h, w = x_nchw.shape
    c_out, _, kh, kw = weight_oihw.shape
    hp = h + 2 * padding
    wp = w + 2 * padding
    h_out = hp - kh + 1
    w_out = wp - kw + 1

    # ---- static tiling decisions ------------------------------------------
    c_out_pad = _round_up(c_out, 128)            # lane-dense output minor dim
    tn = c_out_pad if c_out_pad <= 512 else 256  # Cout grid tiling for big layers
    n_co = c_out_pad // tn

    w_out_pad = _round_up(w_out, 8)              # keeps the in-kernel collapse a view
    wp_tot = w_out_pad + kw - 1
    out_item = jnp.dtype(x_nchw.dtype).itemsize

    # Row tile: target ~1024 GEMM rows / grid step, shrink to a v7x-safe
    # VMEM budget (double buffers counted).
    tr = max(1, min(h_out, -(-1024 // w_out_pad)))

    def _vmem_bytes(tr_):
        h_out_pad_ = _round_up(h_out, tr_)
        x_b = 2 * (h_out_pad_ + kh - 1) * wp_tot * c_in * 2    # image slab, bf16, x2 bufs
        w_b = 2 * kh * kw * c_in * tn * 2                      # weight tile, bf16, x2 bufs
        o_b = 2 * tr_ * w_out_pad * tn * out_item              # output tile, x2 bufs
        acc_b = tr_ * w_out_pad * tn * 4                       # f32 accumulator
        return x_b + w_b + o_b + acc_b

    while tr > 1 and _vmem_bytes(tr) > 40 * 1024 * 1024:
        tr -= 1
    h_out_pad = _round_up(h_out, tr)
    n_r = h_out_pad // tr
    hp_tot = h_out_pad + kh - 1

    # ---- glue (plain JAX): layout + zero pad + bf16 cast; NO im2col --------
    x_nhwc = jnp.transpose(x_nchw, (0, 2, 3, 1))                           # NHWC
    x_pad = jnp.pad(
        x_nhwc,
        ((0, 0),
         (padding, padding + (hp_tot - hp)),
         (padding, padding + (wp_tot - wp)),
         (0, 0)),
    ).astype(jnp.bfloat16)

    w_hwio = jnp.transpose(weight_oihw, (2, 3, 1, 0))                      # (KH,KW,Cin,Cout)
    w_hwio = jnp.pad(w_hwio, ((0, 0), (0, 0), (0, 0), (0, c_out_pad - c_out)))
    w_hwio = w_hwio.astype(jnp.bfloat16)
    b_slab = jnp.pad(bias, (0, c_out_pad - c_out)).astype(jnp.float32)
    b_slab = b_slab.reshape(1, c_out_pad)

    kernel = functools.partial(
        _conv_relu_kernel, tr=tr, kh=kh, kw=kw, wo=w_out_pad, cin=c_in)

    flops = 2 * n * h_out_pad * w_out_pad * kh * kw * c_in * c_out_pad
    bytes_accessed = (x_pad.size * 2 + w_hwio.size * 2 + b_slab.size * 4
                      + n * h_out_pad * w_out_pad * c_out_pad * out_item)

    out_slab = pl.pallas_call(
        kernel,
        out_shape=jax.ShapeDtypeStruct(
            (n, h_out_pad, w_out_pad, c_out_pad), x_nchw.dtype),
        grid_spec=pltpu.PrefetchScalarGridSpec(
            num_scalar_prefetch=0,
            grid=(n, n_r, n_co),
            in_specs=[
                # Whole padded image; block index constant over (r, co) so it
                # is DMA'd once per image.
                pl.BlockSpec((1, hp_tot, wp_tot, c_in),
                             lambda b, r, co: (b, 0, 0, 0)),
                pl.BlockSpec((kh, kw, c_in, tn),
                             lambda b, r, co: (0, 0, 0, co)),
                pl.BlockSpec((1, tn), lambda b, r, co: (0, co)),
            ],
            out_specs=pl.BlockSpec((1, tr, w_out_pad, tn),
                                   lambda b, r, co: (b, r, 0, co)),
        ),
        compiler_params=pltpu.CompilerParams(
            dimension_semantics=("parallel", "parallel", "parallel"),
            vmem_limit_bytes=48 * 1024 * 1024),
        cost_estimate=pl.CostEstimate(
            flops=flops, transcendentals=0, bytes_accessed=bytes_accessed),
    )(x_pad, w_hwio, b_slab)

    # Drop row/width/channel padding, back to NCHW (module contract).
    out = out_slab[:, :h_out, :w_out, :c_out]
    return jnp.transpose(out, (0, 3, 1, 2))


def init_conv_params(key, c_in, c_out, kernel_size):
    """Deterministic init mimicking PyTorch Conv2d default (uniform +/- 1/sqrt(fan_in))."""
    k_w, k_b = jax.random.split(key)
    fan_in = c_in * kernel_size * kernel_size
    bound = 1.0 / jnp.sqrt(jnp.float32(fan_in))
    weight = jax.random.uniform(
        k_w, (c_out, c_in, kernel_size, kernel_size),
        minval=-bound, maxval=bound, dtype=jnp.float32)
    bias = jax.random.uniform(
        k_b, (c_out,), minval=-bound, maxval=bound, dtype=jnp.float32)
    return weight, bias


if __name__ == "__main__":
    key = jax.random.PRNGKey(0)
    k_x, k_p = jax.random.split(key)

    # Small shapes consistent with the module.
    N, C_IN, H, W = 2, 4, 16, 16
    C_OUT, KSIZE, PAD = 8, 3, 1

    x = jax.random.normal(k_x, (N, C_IN, H, W), dtype=jnp.float32)
    weight, bias = init_conv_params(k_p, C_IN, C_OUT, KSIZE)

    out = conv_block_forward(x, weight, bias, padding=PAD)
    out = jax.block_until_ready(out)

    # Reference check against XLA's f32 conv (NCHW/OIHW) + ReLU.
    # Tolerance accounts for bf16 MXU inputs (accumulation is f32).
    ref = jax.lax.conv_general_dilated(
        x, weight, window_strides=(1, 1),
        padding=((PAD, PAD), (PAD, PAD)),
        dimension_numbers=("NCHW", "OIHW", "NCHW"))
    ref = jnp.maximum(ref + bias[None, :, None, None], 0.0)

    assert out.shape == ref.shape, (out.shape, ref.shape)
    assert jnp.allclose(out, ref, atol=5e-2, rtol=5e-2), "mismatch vs reference conv"

    print("KERNEL_OK")
</pallas_src>

<mosaic_0001>
module attributes {stable_mosaic.version = 11 : i64} {
  func.func @_conv_relu_kernel(%arg0: i32, %arg1: i32, %arg2: i32, %arg3: memref<1x18x18x4xbf16, #tpu.memory_space<vmem>>, %arg4: memref<3x3x4x128xbf16, #tpu.memory_space<vmem>>, %arg5: memref<1x128xf32, #tpu.memory_space<vmem>>, %arg6: memref<1x16x16x128xf32, #tpu.memory_space<vmem>>) attributes {dimension_semantics = [#tpu.dimension_semantics<parallel>, #tpu.dimension_semantics<parallel>, #tpu.dimension_semantics<parallel>], iteration_bounds = array<i64: 2, 1, 1>, scalar_prefetch = 0 : i64, scratch_operands = 0 : i64, tpu.core_type = #tpu.core_type<tc>, window_params = [{transform_indices = @transform_0, window_bounds = array<i64: 1, 18, 18, 4>}, {transform_indices = @transform_1, window_bounds = array<i64: 3, 3, 4, 128>}, {transform_indices = @transform_2, window_bounds = array<i64: 1, 128>}, {transform_indices = @transform_3, window_bounds = array<i64: 1, 16, 16, 128>}]} {
    %c16_i32 = arith.constant 16 : i32
    %0 = arith.muli %arg1, %c16_i32 : i32
    %cst = arith.constant 0.000000e+00 : f32
    %1 = vector.broadcast %cst : f32 to vector<256x128xf32>
    %c0_i32 = arith.constant 0 : i32
    %2 = arith.addi %0, %c0_i32 : i32
    %c0 = arith.constant 0 : index
    %3 = arith.index_cast %2 : i32 to index
    %c0_0 = arith.constant 0 : index
    %c0_1 = arith.constant 0 : index
    %4 = vector.load %arg3[%c0, %3, %c0_0, %c0_1] : memref<1x18x18x4xbf16, #tpu.memory_space<vmem>>, vector<1x16x16x4xbf16>
    %5 = vector.shape_cast %4 : vector<1x16x16x4xbf16> to vector<16x16x4xbf16>
    %6 = vector.shape_cast %5 : vector<16x16x4xbf16> to vector<256x4xbf16>
    %c0_2 = arith.constant 0 : index
    %c0_3 = arith.constant 0 : index
    %c0_4 = arith.constant 0 : index
    %c0_5 = arith.constant 0 : index
    %7 = vector.load %arg4[%c0_2, %c0_3, %c0_4, %c0_5] : memref<3x3x4x128xbf16, #tpu.memory_space<vmem>>, vector<1x1x4x128xbf16>
    %8 = vector.shape_cast %7 : vector<1x1x4x128xbf16> to vector<4x128xbf16>
    %cst_6 = arith.constant dense<0.000000e+00> : vector<256x128xf32>
    %9 = tpu.matmul %6, %8, %cst_6 {dimension_numbers = #tpu.dot_dimension_numbers<[1], [0], [0], [1], [0, 0, 1, 1], [], []>} : vector<256x4xbf16>, vector<4x128xbf16>, vector<256x128xf32> -> vector<256x128xf32>
    %10 = arith.addf %1, %9 : vector<256x128xf32>
    %c0_i32_7 = arith.constant 0 : i32
    %11 = arith.addi %0, %c0_i32_7 : i32
    %c0_8 = arith.constant 0 : index
    %12 = arith.index_cast %11 : i32 to index
    %c1 = arith.constant 1 : index
    %c0_9 = arith.constant 0 : index
    %13 = vector.load %arg3[%c0_8, %12, %c1, %c0_9] : memref<1x18x18x4xbf16, #tpu.memory_space<vmem>>, vector<1x16x16x4xbf16>
    %14 = vector.shape_cast %13 : vector<1x16x16x4xbf16> to vector<16x16x4xbf16>
    %15 = vector.shape_cast %14 : vector<16x16x4xbf16> to vector<256x4xbf16>
    %c0_10 = arith.constant 0 : index
    %c1_11 = arith.constant 1 : index
    %c0_12 = arith.constant 0 : index
    %c0_13 = arith.constant 0 : index
    %16 = vector.load %arg4[%c0_10, %c1_11, %c0_12, %c0_13] : memref<3x3x4x128xbf16, #tpu.memory_space<vmem>>, vector<1x1x4x128xbf16>
    %17 = vector.shape_cast %16 : vector<1x1x4x128xbf16> to vector<4x128xbf16>
    %cst_14 = arith.constant dense<0.000000e+00> : vector<256x128xf32>
    %18 = tpu.matmul %15, %17, %cst_14 {dimension_numbers = #tpu.dot_dimension_numbers<[1], [0], [0], [1], [0, 0, 1, 1], [], []>} : vector<256x4xbf16>, vector<4x128xbf16>, vector<256x128xf32> -> vector<256x128xf32>
    %19 = arith.addf %10, %18 : vector<256x128xf32>
    %c0_i32_15 = arith.constant 0 : i32
    %20 = arith.addi %0, %c0_i32_15 : i32
    %c0_16 = arith.constant 0 : index
    %21 = arith.index_cast %20 : i32 to index
    %c2 = arith.constant 2 : index
    %c0_17 = arith.constant 0 : index
    %22 = vector.load %arg3[%c0_16, %21, %c2, %c0_17] : memref<1x18x18x4xbf16, #tpu.memory_space<vmem>>, vector<1x16x16x4xbf16>
    %23 = vector.shape_cast %22 : vector<1x16x16x4xbf16> to vector<16x16x4xbf16>
    %24 = vector.shape_cast %23 : vector<16x16x4xbf16> to vector<256x4xbf16>
    %c0_18 = arith.constant 0 : index
    %c2_19 = arith.constant 2 : index
    %c0_20 = arith.constant 0 : index
    %c0_21 = arith.constant 0 : index
    %25 = vector.load %arg4[%c0_18, %c2_19, %c0_20, %c0_21] : memref<3x3x4x128xbf16, #tpu.memory_space<vmem>>, vector<1x1x4x128xbf16>
    %26 = vector.shape_cast %25 : vector<1x1x4x128xbf16> to vector<4x128xbf16>
    %cst_22 = arith.constant dense<0.000000e+00> : vector<256x128xf32>
    %27 = tpu.matmul %24, %26, %cst_22 {dimension_numbers = #tpu.dot_dimension_numbers<[1], [0], [0], [1], [0, 0, 1, 1], [], []>} : vector<256x4xbf16>, vector<4x128xbf16>, vector<256x128xf32> -> vector<256x128xf32>
    %28 = arith.addf %19, %27 : vector<256x128xf32>
    %c1_i32 = arith.constant 1 : i32
    %29 = arith.addi %0, %c1_i32 : i32
    %c0_23 = arith.constant 0 : index
    %30 = arith.index_cast %29 : i32 to index
    %c0_24 = arith.constant 0 : index
    %c0_25 = arith.constant 0 : index
    %31 = vector.load %arg3[%c0_23, %30, %c0_24, %c0_25] : memref<1x18x18x4xbf16, #tpu.memory_space<vmem>>, vector<1x16x16x4xbf16>
    %32 = vector.shape_cast %31 : vector<1x16x16x4xbf16> to vector<16x16x4xbf16>
    %33 = vector.shape_cast %32 : vector<16x16x4xbf16> to vector<256x4xbf16>
    %c1_26 = arith.constant 1 : index
    %c0_27 = arith.constant 0 : index
    %c0_28 = arith.constant 0 : index
    %c0_29 = arith.constant 0 : index
    %34 = vector.load %arg4[%c1_26, %c0_27, %c0_28, %c0_29] : memref<3x3x4x128xbf16, #tpu.memory_space<vmem>>, vector<1x1x4x128xbf16>
    %35 = vector.shape_cast %34 : vector<1x1x4x128xbf16> to vector<4x128xbf16>
    %cst_30 = arith.constant dense<0.000000e+00> : vector<256x128xf32>
    %36 = tpu.matmul %33, %35, %cst_30 {dimension_numbers = #tpu.dot_dimension_numbers<[1], [0], [0], [1], [0, 0, 1, 1], [], []>} : vector<256x4xbf16>, vector<4x128xbf16>, vector<256x128xf32> -> vector<256x128xf32>
    %37 = arith.addf %28, %36 : vector<256x128xf32>
    %c1_i32_31 = arith.constant 1 : i32
    %38 = arith.addi %0, %c1_i32_31 : i32
    %c0_32 = arith.constant 0 : index
    %39 = arith.index_cast %38 : i32 to index
    %c1_33 = arith.constant 1 : index
    %c0_34 = arith.constant 0 : index
    %40 = vector.load %arg3[%c0_32, %39, %c1_33, %c0_34] : memref<1x18x18x4xbf16, #tpu.memory_space<vmem>>, vector<1x16x16x4xbf16>
    %41 = vector.shape_cast %40 : vector<1x16x16x4xbf16> to vector<16x16x4xbf16>
    %42 = vector.shape_cast %41 : vector<16x16x4xbf16> to vector<256x4xbf16>
    %c1_35 = arith.constant 1 : index
    %c1_36 = arith.constant 1 : index
    %c0_37 = arith.constant 0 : index
    %c0_38 = arith.constant 0 : index
    %43 = vector.load %arg4[%c1_35, %c1_36, %c0_37, %c0_38] : memref<3x3x4x128xbf16, #tpu.memory_space<vmem>>, vector<1x1x4x128xbf16>
    %44 = vector.shape_cast %43 : vector<1x1x4x128xbf16> to vector<4x128xbf16>
    %cst_39 = arith.constant dense<0.000000e+00> : vector<256x128xf32>
    %45 = tpu.matmul %42, %44, %cst_39 {dimension_numbers = #tpu.dot_dimension_numbers<[1], [0], [0], [1], [0, 0, 1, 1], [], []>} : vector<256x4xbf16>, vector<4x128xbf16>, vector<256x128xf32> -> vector<256x128xf32>
    %46 = arith.addf %37, %45 : vector<256x128xf32>
    %c1_i32_40 = arith.constant 1 : i32
    %47 = arith.addi %0, %c1_i32_40 : i32
    %c0_41 = arith.constant 0 : index
    %48 = arith.index_cast %47 : i32 to index
    %c2_42 = arith.constant 2 : index
    %c0_43 = arith.constant 0 : index
    %49 = vector.load %arg3[%c0_41, %48, %c2_42, %c0_43] : memref<1x18x18x4xbf16, #tpu.memory_space<vmem>>, vector<1x16x16x4xbf16>
    %50 = vector.shape_cast %49 : vector<1x16x16x4xbf16> to vector<16x16x4xbf16>
    %51 = vector.shape_cast %50 : vector<16x16x4xbf16> to vector<256x4xbf16>
    %c1_44 = arith.constant 1 : index
    %c2_45 = arith.constant 2 : index
    %c0_46 = arith.constant 0 : index
    %c0_47 = arith.constant 0 : index
    %52 = vector.load %arg4[%c1_44, %c2_45, %c0_46, %c0_47] : memref<3x3x4x128xbf16, #tpu.memory_space<vmem>>, vector<1x1x4x128xbf16>
    %53 = vector.shape_cast %52 : vector<1x1x4x128xbf16> to vector<4x128xbf16>
    %cst_48 = arith.constant dense<0.000000e+00> : vector<256x128xf32>
    %54 = tpu.matmul %51, %53, %cst_48 {dimension_numbers = #tpu.dot_dimension_numbers<[1], [0], [0], [1], [0, 0, 1, 1], [], []>} : vector<256x4xbf16>, vector<4x128xbf16>, vector<256x128xf32> -> vector<256x128xf32>
    %55 = arith.addf %46, %54 : vector<256x128xf32>
    %c2_i32 = arith.constant 2 : i32
    %56 = arith.addi %0, %c2_i32 : i32
    %c0_49 = arith.constant 0 : index
    %57 = arith.index_cast %56 : i32 to index
    %c0_50 = arith.constant 0 : index
    %c0_51 = arith.constant 0 : index
    %58 = vector.load %arg3[%c0_49, %57, %c0_50, %c0_51] : memref<1x18x18x4xbf16, #tpu.memory_space<vmem>>, vector<1x16x16x4xbf16>
    %59 = vector.shape_cast %58 : vector<1x16x16x4xbf16> to vector<16x16x4xbf16>
    %60 = vector.shape_cast %59 : vector<16x16x4xbf16> to vector<256x4xbf16>
    %c2_52 = arith.constant 2 : index
    %c0_53 = arith.constant 0 : index
    %c0_54 = arith.constant 0 : index
    %c0_55 = arith.constant 0 : index
    %61 = vector.load %arg4[%c2_52, %c0_53, %c0_54, %c0_55] : memref<3x3x4x128xbf16, #tpu.memory_space<vmem>>, vector<1x1x4x128xbf16>
    %62 = vector.shape_cast %61 : vector<1x1x4x128xbf16> to vector<4x128xbf16>
    %cst_56 = arith.constant dense<0.000000e+00> : vector<256x128xf32>
    %63 = tpu.matmul %60, %62, %cst_56 {dimension_numbers = #tpu.dot_dimension_numbers<[1], [0], [0], [1], [0, 0, 1, 1], [], []>} : vector<256x4xbf16>, vector<4x128xbf16>, vector<256x128xf32> -> vector<256x128xf32>
    %64 = arith.addf %55, %63 : vector<256x128xf32>
    %c2_i32_57 = arith.constant 2 : i32
    %65 = arith.addi %0, %c2_i32_57 : i32
    %c0_58 = arith.constant 0 : index
    %66 = arith.index_cast %65 : i32 to index
    %c1_59 = arith.constant 1 : index
    %c0_60 = arith.constant 0 : index
    %67 = vector.load %arg3[%c0_58, %66, %c1_59, %c0_60] : memref<1x18x18x4xbf16, #tpu.memory_space<vmem>>, vector<1x16x16x4xbf16>
    %68 = vector.shape_cast %67 : vector<1x16x16x4xbf16> to vector<16x16x4xbf16>
    %69 = vector.shape_cast %68 : vector<16x16x4xbf16> to vector<256x4xbf16>
    %c2_61 = arith.constant 2 : index
    %c1_62 = arith.constant 1 : index
    %c0_63 = arith.constant 0 : index
    %c0_64 = arith.constant 0 : index
    %70 = vector.load %arg4[%c2_61, %c1_62, %c0_63, %c0_64] : memref<3x3x4x128xbf16, #tpu.memory_space<vmem>>, vector<1x1x4x128xbf16>
    %71 = vector.shape_cast %70 : vector<1x1x4x128xbf16> to vector<4x128xbf16>
    %cst_65 = arith.constant dense<0.000000e+00> : vector<256x128xf32>
    %72 = tpu.matmul %69, %71, %cst_65 {dimension_numbers = #tpu.dot_dimension_numbers<[1], [0], [0], [1], [0, 0, 1, 1], [], []>} : vector<256x4xbf16>, vector<4x128xbf16>, vector<256x128xf32> -> vector<256x128xf32>
    %73 = arith.addf %64, %72 : vector<256x128xf32>
    %c2_i32_66 = arith.constant 2 : i32
    %74 = arith.addi %0, %c2_i32_66 : i32
    %c0_67 = arith.constant 0 : index
    %75 = arith.index_cast %74 : i32 to index
    %c2_68 = arith.constant 2 : index
    %c0_69 = arith.constant 0 : index
    %76 = vector.load %arg3[%c0_67, %75, %c2_68, %c0_69] : memref<1x18x18x4xbf16, #tpu.memory_space<vmem>>, vector<1x16x16x4xbf16>
    %77 = vector.shape_cast %76 : vector<1x16x16x4xbf16> to vector<16x16x4xbf16>
    %78 = vector.shape_cast %77 : vector<16x16x4xbf16> to vector<256x4xbf16>
    %c2_70 = arith.constant 2 : index
    %c2_71 = arith.constant 2 : index
    %c0_72 = arith.constant 0 : index
    %c0_73 = arith.constant 0 : index
    %79 = vector.load %arg4[%c2_70, %c2_71, %c0_72, %c0_73] : memref<3x3x4x128xbf16, #tpu.memory_space<vmem>>, vector<1x1x4x128xbf16>
    %80 = vector.shape_cast %79 : vector<1x1x4x128xbf16> to vector<4x128xbf16>
    %cst_74 = arith.constant dense<0.000000e+00> : vector<256x128xf32>
    %81 = tpu.matmul %78, %80, %cst_74 {dimension_numbers = #tpu.dot_dimension_numbers<[1], [0], [0], [1], [0, 0, 1, 1], [], []>} : vector<256x4xbf16>, vector<4x128xbf16>, vector<256x128xf32> -> vector<256x128xf32>
    %82 = arith.addf %73, %81 : vector<256x128xf32>
    %c0_75 = arith.constant 0 : index
    %c0_76 = arith.constant 0 : index
    %83 = vector.load %arg5[%c0_75, %c0_76] : memref<1x128xf32, #tpu.memory_space<vmem>>, vector<1x128xf32>
    %84 = vector.broadcast %83 : vector<1x128xf32> to vector<256x128xf32>
    %85 = arith.addf %82, %84 : vector<256x128xf32>
    %cst_77 = arith.constant 0.000000e+00 : f32
    %86 = vector.broadcast %cst_77 : f32 to vector<256x128xf32>
    %87 = arith.maximumf %85, %86 : vector<256x128xf32>
    %88 = vector.shape_cast %87 : vector<256x128xf32> to vector<16x16x128xf32>
    %c0_78 = arith.constant 0 : index
    %c0_79 = arith.constant 0 : index
    %c0_80 = arith.constant 0 : index
    %c0_81 = arith.constant 0 : index
    %89 = vector.load %arg6[%c0_78, %c0_79, %c0_80, %c0_81] : memref<1x16x16x128xf32, #tpu.memory_space<vmem>>, vector<1x16x16x128xf32>
    %90 = vector.shape_cast %89 : vector<1x16x16x128xf32> to vector<16x16x128xf32>
    %91 = vector.shape_cast %88 : vector<16x16x128xf32> to vector<1x16x16x128xf32>
    tpu.vector_store %arg6[%c0_78, %c0_79, %c0_80, %c0_81], %91 {strides = array<i32>} : memref<1x16x16x128xf32, #tpu.memory_space<vmem>>, vector<1x16x16x128xf32>,
    return
  }
  func.func @transform_0(%arg0: i32, %arg1: i32, %arg2: i32) -> (i32, i32, i32, i32) {
    %c0_i32 = arith.constant 0 : i32
    %c0_i32_0 = arith.constant 0 : i32
    %c0_i32_1 = arith.constant 0 : i32
    %c0_i32_2 = arith.constant 0 : i32
    return %arg0, %c0_i32, %c0_i32_0, %c0_i32_1 : i32, i32, i32, i32
  }
  func.func @transform_1(%arg0: i32, %arg1: i32, %arg2: i32) -> (i32, i32, i32, i32) {
    %c0_i32 = arith.constant 0 : i32
    %c0_i32_0 = arith.constant 0 : i32
    %c0_i32_1 = arith.constant 0 : i32
    %c0_i32_2 = arith.constant 0 : i32
    return %c0_i32, %c0_i32_0, %c0_i32_1, %arg2 : i32, i32, i32, i32
  }
  func.func @transform_2(%arg0: i32, %arg1: i32, %arg2: i32) -> (i32, i32) {
    %c0_i32 = arith.constant 0 : i32
    %c0_i32_0 = arith.constant 0 : i32
    return %c0_i32, %arg2 : i32, i32
  }
  func.func @transform_3(%arg0: i32, %arg1: i32, %arg2: i32) -> (i32, i32, i32, i32) {
    %c0_i32 = arith.constant 0 : i32
    %c0_i32_0 = arith.constant 0 : i32
    return %arg0, %arg1, %c0_i32, %arg2 : i32, i32, i32, i32
  }
}

</mosaic_0001>

<llo_original>
// kernel: conv_block_forward.1
$region0: #{conv_block_forward.1}
  #allocation0 [shape = 'u32[]', space=smem, size = 0x4, offset = 0x4, fixed_abs, tag = 'smem constant byte address 0x4 - core index']
  #allocation1 [shape = 'u32[144,128]{1,0:T(1,128)}', space=vmem, size = 0x12000, scoped, tag = 'internal scratch']
  %s0 = inlined_call_operand.vmem [shape: bf16[2,18,18,4], index: 0, kind: input, shape index: {}]
  %s1 = inlined_call_operand.vmem [shape: bf16[3,3,4,128], index: 1, kind: input, shape index: {}]
  %s2 = inlined_call_operand.vmem [shape: f32[1,128], index: 2, kind: input, shape index: {}]
  %s3 = inlined_call_operand.vmem [shape: f32[2,16,16,128], index: 3, kind: output, shape index: {}]
  %s4 = sld [smem:[#allocation0]]
  $region45: #{conv_block_forward.1} parent=0
    _
  %s6 = ssub.s32 1, %s4
  %s7 = scalar_select 0, %s6, %s4
  loop: start=0, step=1, limit=4
  $region2: #{conv_block_forward.1} parent=0 // loop_pre_header
    _
  $region3: #{conv_block_forward.1} parent=0 // loop_header
    %s9 = sphi 0, %s13
    %p10 = scmp.ge.s32.totalorder %s9, 4
    %s16 = sphi 0, %s35
    %s17 = sphi 0, %s31
    %s18 = sphi 0, %s27
    %s19 = sphi 0, %s16
    %s20 = sphi 0, %s17
    %s21 = sphi 0, %s18
    %s22 = sphi 0, %s19
    %s23 = sphi 0, %s20
    %s24 = sphi 0, %s21
    %s38 = sphi 0, %s40
    %s41 = sphi 0, %s38
    %s42 = sphi 0, %s41
    %s58 = sphi 0, %s42
    %s64 = sphi 0, %s66
    %s67 = sphi 0, %s64
    %s68 = sphi 0, %s67
    %s84 = sphi 0, %s68
    %s90 = sphi 0, %s92
    %s93 = sphi 0, %s90
    %s94 = sphi 0, %s93
    %s110 = sphi 0, %s94
    %s120 = sphi 0, %s122
    %s123 = sphi 0, %s120
    %s124 = sphi 0, %s123
    %s140 = sphi 0, %s124
  $region4: #{conv_block_forward.1} parent=0 // loop_header_branch
    %12 = sbr.rel (%p10) target = $region8
  $region5: #{conv_block_forward.1} parent=0 // loop_body
    %s14 = ssub.s32 %s9, 1
    %s15 = ssub.s32 %s9, 2
    %s25 = sadd.s32 1, %s18
    %p26 = scmp.ge.s32.totalorder %s25, 1
    %s27 = scalar_select %p26, 0, %s25
    %s28 = sadd.s32 1, %s17
    %s29 = scalar_select %p26, %s28, %s17
    %p30 = scmp.ge.s32.totalorder %s29, 1
    %s31 = scalar_select %p30, 0, %s29
    %s32 = sadd.s32 1, %s16
    %s33 = scalar_select %p30, %s32, %s16
    %p34 = scmp.ge.s32.totalorder %s33, 2
    %s35 = scalar_select %p34, 0, %s33
    %s36 = ssub.s32 %s16, %s35
    %p37 = scmp.eq.s32.totalorder %s36, 0
    %s39 = sadd.s32 %s38, 1
    %s40 = scalar_select %p37, %s38, %s39
    %p43 = pneg %p37
    %p44 = scmp.eq.s32.totalorder %s9, 1
    %p45 = por %p43, %p44
    %p46 = scmp.ne.s32.totalorder %s38, %s41
    %p47 = scmp.eq.s32.totalorder %s9, 0
    %p48 = por %p46, %p47
    %p49 = scmp.ne.s32.totalorder %s38, %s41
    %p50 = scmp.eq.s32.totalorder %s14, 1
    %p51 = por %p49, %p50
    %p52 = scmp.ne.s32.totalorder %s41, %s42
    %p53 = scmp.eq.s32.totalorder %s14, 0
    %p54 = por %p52, %p53
    %p55 = scmp.ne.s32.totalorder %s41, %s42
    %p56 = scmp.eq.s32.totalorder %s15, 1
    %p57 = por %p55, %p56
    %p59 = scmp.ne.s32.totalorder %s42, %s58
    %p60 = scmp.eq.s32.totalorder %s15, 0
    %p61 = por %p59, %p60
    %s62 = ssub.s32 %s18, %s27
    %p63 = scmp.eq.s32.totalorder %s62, 0
    %s65 = sadd.s32 %s64, 1
    %s66 = scalar_select %p63, %s64, %s65
    %p69 = pneg %p63
    %p70 = scmp.eq.s32.totalorder %s9, 1
    %p71 = por %p69, %p70
    %p72 = scmp.ne.s32.totalorder %s64, %s67
    %p73 = scmp.eq.s32.totalorder %s9, 0
    %p74 = por %p72, %p73
    %p75 = scmp.ne.s32.totalorder %s64, %s67
    %p76 = scmp.eq.s32.totalorder %s14, 1
    %p77 = por %p75, %p76
    %p78 = scmp.ne.s32.totalorder %s67, %s68
    %p79 = scmp.eq.s32.totalorder %s14, 0
    %p80 = por %p78, %p79
    %p81 = scmp.ne.s32.totalorder %s67, %s68
    %p82 = scmp.eq.s32.totalorder %s15, 1
    %p83 = por %p81, %p82
    %p85 = scmp.ne.s32.totalorder %s68, %s84
    %p86 = scmp.eq.s32.totalorder %s15, 0
    %p87 = por %p85, %p86
    %s88 = ssub.s32 %s18, %s27
    %p89 = scmp.eq.s32.totalorder %s88, 0
    %s91 = sadd.s32 %s90, 1
    %s92 = scalar_select %p89, %s90, %s91
    %p95 = pneg %p89
    %p96 = scmp.eq.s32.totalorder %s9, 1
    %p97 = por %p95, %p96
    %p98 = scmp.ne.s32.totalorder %s90, %s93
    %p99 = scmp.eq.s32.totalorder %s9, 0
    %p100 = por %p98, %p99
    %p101 = scmp.ne.s32.totalorder %s90, %s93
    %p102 = scmp.eq.s32.totalorder %s14, 1
    %p103 = por %p101, %p102
    %p104 = scmp.ne.s32.totalorder %s93, %s94
    %p105 = scmp.eq.s32.totalorder %s14, 0
    %p106 = por %p104, %p105
    %p107 = scmp.ne.s32.totalorder %s93, %s94
    %p108 = scmp.eq.s32.totalorder %s15, 1
    %p109 = por %p107, %p108
    %p111 = scmp.ne.s32.totalorder %s94, %s110
    %p112 = scmp.eq.s32.totalorder %s15, 0
    %p113 = por %p111, %p112
    %s114 = ssub.s32 %s16, %s35
    %s115 = ssub.s32 %s17, %s31
    %s116 = sor.u32 %s114, %s115
    %s117 = ssub.s32 %s18, %s27
    %s118 = sor.u32 %s116, %s117
    %p119 = scmp.eq.s32.totalorder %s118, 0
    %s121 = sadd.s32 %s120, 1
    %s122 = scalar_select %p119, %s120, %s121
    %p125 = pneg %p119
    %p126 = scmp.eq.s32.totalorder %s9, 1
    %p127 = por %p125, %p126
    %p128 = scmp.ne.s32.totalorder %s120, %s123
    %p129 = scmp.eq.s32.totalorder %s9, 0
    %p130 = por %p128, %p129
    %p131 = scmp.ne.s32.totalorder %s120, %s123
    %p132 = scmp.eq.s32.totalorder %s14, 1
    %p133 = por %p131, %p132
    %p134 = scmp.ne.s32.totalorder %s123, %s124
    %p135 = scmp.eq.s32.totalorder %s14, 0
    %p136 = por %p134, %p135
    %p137 = scmp.ne.s32.totalorder %s123, %s124
    %p138 = scmp.eq.s32.totalorder %s15, 1
    %p139 = por %p137, %p138
    %p141 = scmp.ne.s32.totalorder %s124, %s140
    %p142 = scmp.eq.s32.totalorder %s15, 0
    %p143 = por %p141, %p142
    %p144 = scmp.le.s32.totalorder 1, %s9
    %p145 = scmp.lt.s32.totalorder %s9, 3
    %p146 = pnand %p144, %p145
    %p147 = pneg %p146
    // Predicated region
    $region9: #{conv_block_forward.1} parent=5 // pred_check
      _
    $region10: #{conv_block_forward.1} parent=5 // pred_check_branch
      %149 = sbr.rel (%p146) target = $region12
    $region11: #{conv_block_forward.1} parent=5 // pred_region
      %s150 = ssub.s32 %s9, 1
      // Predicated region
      $region13: #{conv_block_forward.1} parent=11 // pred_check
        %p151 = pneg %p80
      $region14: #{conv_block_forward.1} parent=11 // pred_check_branch
        %153 = sbr.rel (%p151) target = $region16
      $region15: #{conv_block_forward.1} parent=11 // pred_region
        %p154 = scmp.lt.s32.totalorder %s21, 0
        %s155 = scalar_select %p154, %s21, 0
        %s156 = smul.addr %s155, 2
        %s157 = scalar_lea.vmem %s1, %s156
      $region16: #{conv_block_forward.1} parent=11 // pred_fallthru
        _
      // Predicated region
      $region17: #{conv_block_forward.1} parent=11 // pred_check
        %p158 = pneg %p106
      $region18: #{conv_block_forward.1} parent=11 // pred_check_branch
        %160 = sbr.rel (%p158) target = $region20
      $region19: #{conv_block_forward.1} parent=11 // pred_region
        %p161 = scmp.lt.s32.totalorder %s21, 0
        %s162 = scalar_select %p161, %s21, 0
        %s163 = scalar_lea.vmem %s2, %s162
      $region20: #{conv_block_forward.1} parent=11 // pred_fallthru
        _
    $region12: #{conv_block_forward.1} parent=5 // pred_fallthru
      _
    %p164 = scmp.lt.s32.totalorder %s9, 2
    // Predicated region
    $region21: #{conv_block_forward.1} parent=5 // pred_check
      %p165 = pneg %p164
    $region22: #{conv_block_forward.1} parent=5 // pred_check_branch
      %167 = sbr.rel (%p165) target = $region24
    $region23: #{conv_block_forward.1} parent=5 // pred_region
      // Predicated region
      $region25: #{conv_block_forward.1} parent=23 // pred_check
        %p168 = pneg %p48
      $region26: #{conv_block_forward.1} parent=23 // pred_check_branch
        %170 = sbr.rel (%p168) target = $region28
      $region27: #{conv_block_forward.1} parent=23 // pred_region
        %p171 = scmp.lt.s32.totalorder %s16, 1
        %s172 = scalar_select %p171, %s16, 1
        %s173 = smul.addr %s172, 54
        %s174 = smul.addr %s173, 4
        %s175 = scalar_lea.vmem %s0, %s174
      $region28: #{conv_block_forward.1} parent=23 // pred_fallthru
        _
    $region24: #{conv_block_forward.1} parent=5 // pred_fallthru
      _
    %p176 = scmp.le.s32.totalorder 1, %s9
    %p177 = scmp.lt.s32.totalorder %s9, 3
    %p178 = pnand %p176, %p177
    %p179 = pneg %p178
    // Predicated region
    $region29: #{conv_block_forward.1} parent=5 // pred_check
      _
    $region30: #{conv_block_forward.1} parent=5 // pred_check_branch
      %181 = sbr.rel (%p178) target = $region32
    $region31: #{conv_block_forward.1} parent=5 // pred_region
      %s182 = ssub.s32 %s9, 1
      %p183 = scmp.lt.s32.totalorder %s19, 1
      %s184 = scalar_select %p183, %s19, 1
      %s185 = smul.addr %s184, 54
      %s186 = smul.addr %s185, 4
      %s187 = scalar_lea.vmem %s0, %s186
      %p188 = pneg %p54
      %p189 = pneg %p51
      %p190 = scmp.lt.s32.totalorder %s21, 0
      %s191 = scalar_select %p190, %s21, 0
      %s192 = smul.addr %s191, 2
      %s193 = scalar_lea.vmem %s1, %s192
      %p194 = pneg %p80
      %p195 = pneg %p77
      %p196 = scmp.lt.s32.totalorder %s21, 0
      %s197 = scalar_select %p196, %s21, 0
      %s198 = scalar_lea.vmem %s2, %s197
      %p199 = pneg %p106
      %p200 = pneg %p103
      %p201 = pneg %p136
      %p202 = pneg %p133
      %s203 = smul.u32 16, %s20
      %p204 = scmp.lt.s32.totalorder %s19, 1
      %s205 = scalar_select %p204, %s19, 1
      %p206 = scmp.lt.s32.totalorder %s203, 15
      %s207 = scalar_select %p206, %s203, 15
      %p208 = scmp.lt.s32.totalorder %s21, 0
      %s209 = scalar_select %p208, %s21, 0
      %s210 = smul.addr %s207, 2
      %s211 = sadd.s32 %s209, %s210
      %s212 = smul.addr %s205, 32
      %s213 = sadd.s32 %s211, %s212
      %s214 = smul.addr %s213, 8
      %s215 = scalar_lea.vmem %s3, %s214
      %p216 = scmp.lt.s32.totalorder %s19, 1
      %s217 = scalar_select %p216, %s19, 1
      %s218 = smul.addr %s217, 54
      %s219 = smul.addr %s218, 4
      %s220 = scalar_lea.vmem %s0, %s219
      %p221 = scmp.lt.s32.totalorder %s21, 0
      %s222 = scalar_select %p221, %s21, 0
      %s223 = smul.addr %s222, 2
      %s224 = scalar_lea.vmem %s1, %s223
      %p225 = scmp.lt.s32.totalorder %s21, 0
      %s226 = scalar_select %p225, %s21, 0
      %s227 = scalar_lea.vmem %s2, %s226
      %s228 = smul.u32 16, %s20
      %p229 = scmp.lt.s32.totalorder %s19, 1
      %s230 = scalar_select %p229, %s19, 1
      %p231 = scmp.lt.s32.totalorder %s228, 15
      %s232 = scalar_select %p231, %s228, 15
      %p233 = scmp.lt.s32.totalorder %s21, 0
      %s234 = scalar_select %p233, %s21, 0
      %s235 = smul.addr %s232, 2
      %s236 = sadd.s32 %s234, %s235
      %s237 = smul.addr %s230, 32
      %s238 = sadd.s32 %s236, %s237
      %s239 = smul.addr %s238, 8
      %s240 = scalar_lea.vmem %s3, %s239
      %s241 = smul.u32 16, %s20
      %s243 = smul.u32 %s20, 16
      %s244 = smul.u32 %s243, 3
      %s245 = smul.addr %s244, 4
      %s246 = scalar_lea.vmem %s220, %s245
      %v247 = vld [vmem:[%s246] sm:$0xf]
      %v248 = vld [vmem:[%s246 + $0x4] sm:$0xf]
      %v249 = vld [vmem:[%s246 + $0xc] sm:$0xf]
      %v250 = vld [vmem:[%s246 + $0x10] sm:$0xf]
      %v251 = vld [vmem:[%s246 + $0x18] sm:$0xf]
      %v252 = vld [vmem:[%s246 + $0x1c] sm:$0xf]
      %v253 = vld [vmem:[%s246 + $0x24] sm:$0xf]
      %v254 = vld [vmem:[%s246 + $0x28] sm:$0xf]
      %v255 = vld [vmem:[%s246 + $0x30] sm:$0xf]
      %v256 = vld [vmem:[%s246 + $0x34] sm:$0xf]
      %v257 = vld [vmem:[%s246 + $0x3c] sm:$0xf]
      %v258 = vld [vmem:[%s246 + $0x40] sm:$0xf]
      %v259 = vld [vmem:[%s246 + $0x48] sm:$0xf]
      %v260 = vld [vmem:[%s246 + $0x4c] sm:$0xf]
      %v261 = vld [vmem:[%s246 + $0x54] sm:$0xf]
      %v262 = vld [vmem:[%s246 + $0x58] sm:$0xf]
      %v263 = vld [vmem:[%s246 + $0x60] sm:$0xf]
      %v264 = vld [vmem:[%s246 + $0x64] sm:$0xf]
      %v265 = vld [vmem:[%s246 + $0x6c] sm:$0xf]
      %v266 = vld [vmem:[%s246 + $0x70] sm:$0xf]
      %v267 = vld [vmem:[%s246 + $0x78] sm:$0xf]
      %v268 = vld [vmem:[%s246 + $0x7c] sm:$0xf]
      %v269 = vld [vmem:[%s246 + $0x84] sm:$0xf]
      %v270 = vld [vmem:[%s246 + $0x88] sm:$0xf]
      %v271 = vld [vmem:[%s246 + $0x90] sm:$0xf]
      %v272 = vld [vmem:[%s246 + $0x94] sm:$0xf]
      %v273 = vld [vmem:[%s246 + $0x9c] sm:$0xf]
      %v274 = vld [vmem:[%s246 + $0xa0] sm:$0xf]
      %v275 = vld [vmem:[%s246 + $0xa8] sm:$0xf]
      %v276 = vld [vmem:[%s246 + $0xac] sm:$0xf]
      %v277 = vld [vmem:[%s246 + $0xb4] sm:$0xf]
      %v278 = vld [vmem:[%s246 + $0xb8] sm:$0xf]
      %v279 = vld [vmem:[%s224] sm:$0x3]
      %v280 = vld [vmem:[%s246 + $0x8] sm:$0x1]
      %v281 = vld [vmem:[%s246 + $0x14] sm:$0x1]
      %v282 = vld [vmem:[%s246 + $0x20] sm:$0x1]
      %v283 = vld [vmem:[%s246 + $0x2c] sm:$0x1]
      %v284 = vld [vmem:[%s246 + $0x38] sm:$0x1]
      %v285 = vld [vmem:[%s246 + $0x44] sm:$0x1]
      %v286 = vld [vmem:[%s246 + $0x50] sm:$0x1]
      %v287 = vld [vmem:[%s246 + $0x5c] sm:$0x1]
      %v288 = vld [vmem:[%s246 + $0x68] sm:$0x1]
      %v289 = vld [vmem:[%s246 + $0x74] sm:$0x1]
      %v290 = vld [vmem:[%s246 + $0x80] sm:$0x1]
      %v291 = vld [vmem:[%s246 + $0x8c] sm:$0x1]
      %v292 = vld [vmem:[%s246 + $0x98] sm:$0x1]
      %v293 = vld [vmem:[%s246 + $0xa4] sm:$0x1]
      %v294 = vld [vmem:[%s246 + $0xb0] sm:$0x1]
      %v295 = vld [vmem:[%s246 + $0xbc] sm:$0x1]
      %vm296 = vsmask.f32 3328
      %vm297 = vsmask.f32 7440
      %vm298 = vmor %vm296, %vm297
      %v300 = vshrl.u32 %v247, 16
      %v302 = vrot.slane %v300, 4
      %v303 = vshll.u32 %v247, 16
      %v305 = vrot.slane %v303, 5
      %v306 = vor.u32 %v302, %v305
      %v307 = vrot.slane %v306, 4
      %v309 = vshll.u32 %v248, 16
      %v311 = vrot.slane %v309, 5
      %v312 = vsel %vm298, %v307, %v311
      %v313 = vshrl.u32 %v248, 16
      %v315 = vrot.slane %v313, 4
      %v316 = vor.u32 %v315, %v311
      %v317 = vrot.slane %v316, 4
      %v319 = vshll.u32 %v280, 16
      %v321 = vrot.slane %v319, 5
      %v322 = vsel %vm298, %v317, %v321
      %v324 = vshrl.u32 %v249, 16
      %v326 = vrot.slane %v324, 4
      %v327 = vshll.u32 %v249, 16
      %v329 = vrot.slane %v327, 5
      %v330 = vor.u32 %v326, %v329
      %v331 = vrot.slane %v330, 4
      %v333 = vshll.u32 %v250, 16
      %v335 = vrot.slane %v333, 5
      %v336 = vsel %vm298, %v331, %v335
      %v337 = vshrl.u32 %v250, 16
      %v339 = vrot.slane %v337, 4
      %v340 = vor.u32 %v339, %v335
      %v341 = vrot.slane %v340, 4
      %v343 = vshll.u32 %v281, 16
      %v345 = vrot.slane %v343, 5
      %v346 = vsel %vm298, %v341, %v345
      %v348 = vshrl.u32 %v251, 16
      %v350 = vrot.slane %v348, 4
      %v351 = vshll.u32 %v251, 16
      %v353 = vrot.slane %v351, 5
      %v354 = vor.u32 %v350, %v353
      %v355 = vrot.slane %v354, 4
      %v357 = vshll.u32 %v252, 16
      %v359 = vrot.slane %v357, 5
      %v360 = vsel %vm298, %v355, %v359
      %v361 = vshrl.u32 %v252, 16
      %v363 = vrot.slane %v361, 4
      %v364 = vor.u32 %v363, %v359
      %v365 = vrot.slane %v364, 4
      %v367 = vshll.u32 %v282, 16
      %v369 = vrot.slane %v367, 5
      %v370 = vsel %vm298, %v365, %v369
      %v372 = vshrl.u32 %v253, 16
      %v374 = vrot.slane %v372, 4
      %v375 = vshll.u32 %v253, 16
      %v377 = vrot.slane %v375, 5
      %v378 = vor.u32 %v374, %v377
      %v379 = vrot.slane %v378, 4
      %v381 = vshll.u32 %v254, 16
      %v383 = vrot.slane %v381, 5
      %v384 = vsel %vm298, %v379, %v383
      %v385 = vshrl.u32 %v254, 16
      %v387 = vrot.slane %v385, 4
      %v388 = vor.u32 %v387, %v383
      %v389 = vrot.slane %v388, 4
      %v391 = vshll.u32 %v283, 16
      %v393 = vrot.slane %v391, 5
      %v394 = vsel %vm298, %v389, %v393
      %v396 = vshrl.u32 %v255, 16
      %v398 = vrot.slane %v396, 4
      %v399 = vshll.u32 %v255, 16
      %v401 = vrot.slane %v399, 5
      %v402 = vor.u32 %v398, %v401
      %v403 = vrot.slane %v402, 4
      %v405 = vshll.u32 %v256, 16
      %v407 = vrot.slane %v405, 5
      %v408 = vsel %vm298, %v403, %v407
      %v409 = vshrl.u32 %v256, 16
      %v411 = vrot.slane %v409, 4
      %v412 = vor.u32 %v411, %v407
      %v413 = vrot.slane %v412, 4
      %v415 = vshll.u32 %v284, 16
      %v417 = vrot.slane %v415, 5
      %v418 = vsel %vm298, %v413, %v417
      %v420 = vshrl.u32 %v257, 16
      %v422 = vrot.slane %v420, 4
      %v423 = vshll.u32 %v257, 16
      %v425 = vrot.slane %v423, 5
      %v426 = vor.u32 %v422, %v425
      %v427 = vrot.slane %v426, 4
      %v429 = vshll.u32 %v258, 16
      %v431 = vrot.slane %v429, 5
      %v432 = vsel %vm298, %v427, %v431
      %v433 = vshrl.u32 %v258, 16
      %v435 = vrot.slane %v433, 4
      %v436 = vor.u32 %v435, %v431
      %v437 = vrot.slane %v436, 4
      %v439 = vshll.u32 %v285, 16
      %v441 = vrot.slane %v439, 5
      %v442 = vsel %vm298, %v437, %v441
      %v444 = vshrl.u32 %v259, 16
      %v446 = vrot.slane %v444, 4
      %v447 = vshll.u32 %v259, 16
      %v449 = vrot.slane %v447, 5
      %v450 = vor.u32 %v446, %v449
      %v451 = vrot.slane %v450, 4
      %v453 = vshll.u32 %v260, 16
      %v455 = vrot.slane %v453, 5
      %v456 = vsel %vm298, %v451, %v455
      %v457 = vshrl.u32 %v260, 16
      %v459 = vrot.slane %v457, 4
      %v460 = vor.u32 %v459, %v455
      %v461 = vrot.slane %v460, 4
      %v463 = vshll.u32 %v286, 16
      %v465 = vrot.slane %v463, 5
      %v466 = vsel %vm298, %v461, %v465
      %v468 = vshrl.u32 %v261, 16
      %v470 = vrot.slane %v468, 4
      %v471 = vshll.u32 %v261, 16
      %v473 = vrot.slane %v471, 5
      %v474 = vor.u32 %v470, %v473
      %v475 = vrot.slane %v474, 4
      %v477 = vshll.u32 %v262, 16
      %v479 = vrot.slane %v477, 5
      %v480 = vsel %vm298, %v475, %v479
      %v481 = vshrl.u32 %v262, 16
      %v483 = vrot.slane %v481, 4
      %v484 = vor.u32 %v483, %v479
      %v485 = vrot.slane %v484, 4
      %v487 = vshll.u32 %v287, 16
      %v489 = vrot.slane %v487, 5
      %v490 = vsel %vm298, %v485, %v489
      %v492 = vshrl.u32 %v263, 16
      %v494 = vrot.slane %v492, 4
      %v495 = vshll.u32 %v263, 16
      %v497 = vrot.slane %v495, 5
      %v498 = vor.u32 %v494, %v497
      %v499 = vrot.slane %v498, 4
      %v501 = vshll.u32 %v264, 16
      %v503 = vrot.slane %v501, 5
      %v504 = vsel %vm298, %v499, %v503
      %v505 = vshrl.u32 %v264, 16
      %v507 = vrot.slane %v505, 4
      %v508 = vor.u32 %v507, %v503
      %v509 = vrot.slane %v508, 4
      %v511 = vshll.u32 %v288, 16
      %v513 = vrot.slane %v511, 5
      %v514 = vsel %vm298, %v509, %v513
      %v516 = vshrl.u32 %v265, 16
      %v518 = vrot.slane %v516, 4
      %v519 = vshll.u32 %v265, 16
      %v521 = vrot.slane %v519, 5
      %v522 = vor.u32 %v518, %v521
      %v523 = vrot.slane %v522, 4
      %v525 = vshll.u32 %v266, 16
      %v527 = vrot.slane %v525, 5
      %v528 = vsel %vm298, %v523, %v527
      %v529 = vshrl.u32 %v266, 16
      %v531 = vrot.slane %v529, 4
      %v532 = vor.u32 %v531, %v527
      %v533 = vrot.slane %v532, 4
      %v535 = vshll.u32 %v289, 16
      %v537 = vrot.slane %v535, 5
      %v538 = vsel %vm298, %v533, %v537
      %v540 = vshrl.u32 %v267, 16
      %v542 = vrot.slane %v540, 4
      %v543 = vshll.u32 %v267, 16
      %v545 = vrot.slane %v543, 5
      %v546 = vor.u32 %v542, %v545
      %v547 = vrot.slane %v546, 4
      %v549 = vshll.u32 %v268, 16
      %v551 = vrot.slane %v549, 5
      %v552 = vsel %vm298, %v547, %v551
      %v553 = vshrl.u32 %v268, 16
      %v555 = vrot.slane %v553, 4
      %v556 = vor.u32 %v555, %v551
      %v557 = vrot.slane %v556, 4
      %v559 = vshll.u32 %v290, 16
      %v561 = vrot.slane %v559, 5
      %v562 = vsel %vm298, %v557, %v561
      %v564 = vshrl.u32 %v269, 16
      %v566 = vrot.slane %v564, 4
      %v567 = vshll.u32 %v269, 16
      %v569 = vrot.slane %v567, 5
      %v570 = vor.u32 %v566, %v569
      %v571 = vrot.slane %v570, 4
      %v573 = vshll.u32 %v270, 16
      %v575 = vrot.slane %v573, 5
      %v576 = vsel %vm298, %v571, %v575
      %v577 = vshrl.u32 %v270, 16
      %v579 = vrot.slane %v577, 4
      %v580 = vor.u32 %v579, %v575
      %v581 = vrot.slane %v580, 4
      %v583 = vshll.u32 %v291, 16
      %v585 = vrot.slane %v583, 5
      %v586 = vsel %vm298, %v581, %v585
      %v588 = vshrl.u32 %v271, 16
      %v590 = vrot.slane %v588, 4
      %v591 = vshll.u32 %v271, 16
      %v593 = vrot.slane %v591, 5
      %v594 = vor.u32 %v590, %v593
      %v595 = vrot.slane %v594, 4
      %v597 = vshll.u32 %v272, 16
      %v599 = vrot.slane %v597, 5
      %v600 = vsel %vm298, %v595, %v599
      %v601 = vshrl.u32 %v272, 16
      %v603 = vrot.slane %v601, 4
      %v604 = vor.u32 %v603, %v599
      %v605 = vrot.slane %v604, 4
      %v607 = vshll.u32 %v292, 16
      %v609 = vrot.slane %v607, 5
      %v610 = vsel %vm298, %v605, %v609
      %v612 = vshrl.u32 %v273, 16
      %v614 = vrot.slane %v612, 4
      %v615 = vshll.u32 %v273, 16
      %v617 = vrot.slane %v615, 5
      %v618 = vor.u32 %v614, %v617
      %v619 = vrot.slane %v618, 4
      %v621 = vshll.u32 %v274, 16
      %v623 = vrot.slane %v621, 5
      %v624 = vsel %vm298, %v619, %v623
      %v625 = vshrl.u32 %v274, 16
      %v627 = vrot.slane %v625, 4
      %v628 = vor.u32 %v627, %v623
      %v629 = vrot.slane %v628, 4
      %v631 = vshll.u32 %v293, 16
      %v633 = vrot.slane %v631, 5
      %v634 = vsel %vm298, %v629, %v633
      %v636 = vshrl.u32 %v275, 16
      %v638 = vrot.slane %v636, 4
      %v639 = vshll.u32 %v275, 16
      %v641 = vrot.slane %v639, 5
      %v642 = vor.u32 %v638, %v641
      %v643 = vrot.slane %v642, 4
      %v645 = vshll.u32 %v276, 16
      %v647 = vrot.slane %v645, 5
      %v648 = vsel %vm298, %v643, %v647
      %v649 = vshrl.u32 %v276, 16
      %v651 = vrot.slane %v649, 4
      %v652 = vor.u32 %v651, %v647
      %v653 = vrot.slane %v652, 4
      %v655 = vshll.u32 %v294, 16
      %v657 = vrot.slane %v655, 5
      %v658 = vsel %vm298, %v653, %v657
      %v660 = vshrl.u32 %v277, 16
      %v662 = vrot.slane %v660, 4
      %v663 = vshll.u32 %v277, 16
      %v665 = vrot.slane %v663, 5
      %v666 = vor.u32 %v662, %v665
      %v667 = vrot.slane %v666, 4
      %v669 = vshll.u32 %v278, 16
      %v671 = vrot.slane %v669, 5
      %v672 = vsel %vm298, %v667, %v671
      %v673 = vshrl.u32 %v278, 16
      %v675 = vrot.slane %v673, 4
      %v676 = vor.u32 %v675, %v671
      %v677 = vrot.slane %v676, 4
      %v679 = vshll.u32 %v295, 16
      %v681 = vrot.slane %v679, 5
      %v682 = vsel %vm298, %v677, %v681
      %s683 = scalar_lea.vmem %s224, 2
      %v684 = vld [vmem:[%s683] sm:$0x3]
      %v685 = vunpack.c.l.b16 %v312
      %v686 = vunpack.c.l.b16 %v322
      %v687 = vunpack.c.l.b16 %v336
      %v688 = vunpack.c.l.b16 %v346
      %v689 = vunpack.c.l.b16 %v360
      %v690 = vunpack.c.l.b16 %v370
      %v691 = vunpack.c.l.b16 %v384
      %v692 = vunpack.c.l.b16 %v394
      %v693 = vunpack.c.l.b16 %v408
      %v694 = vunpack.c.l.b16 %v418
      %v695 = vunpack.c.l.b16 %v432
      %v696 = vunpack.c.l.b16 %v442
      %v697 = vunpack.c.l.b16 %v456
      %v698 = vunpack.c.l.b16 %v466
      %v699 = vunpack.c.l.b16 %v480
      %v700 = vunpack.c.l.b16 %v490
      %v701 = vunpack.c.l.b16 %v504
      %v702 = vunpack.c.l.b16 %v514
      %v703 = vunpack.c.l.b16 %v528
      %v704 = vunpack.c.l.b16 %v538
      %v705 = vunpack.c.l.b16 %v552
      %v706 = vunpack.c.l.b16 %v562
      %v707 = vunpack.c.l.b16 %v576
      %v708 = vunpack.c.l.b16 %v586
      %v709 = vunpack.c.l.b16 %v600
      %v710 = vunpack.c.l.b16 %v610
      %v711 = vunpack.c.l.b16 %v624
      %v712 = vunpack.c.l.b16 %v634
      %v713 = vunpack.c.l.b16 %v648
      %v714 = vunpack.c.l.b16 %v658
      %v715 = vunpack.c.l.b16 %v672
      %v716 = vunpack.c.l.b16 %v682
      %v717 = vpack.c.b16 %v686, %v685
      %v718 = vpack.c.b16 %v688, %v687
      %v719 = vpack.c.b16 %v690, %v689
      %v720 = vpack.c.b16 %v692, %v691
      %v721 = vpack.c.b16 %v694, %v693
      %v722 = vpack.c.b16 %v696, %v695
      %v723 = vpack.c.b16 %v698, %v697
      %v724 = vpack.c.b16 %v700, %v699
      %v725 = vpack.c.b16 %v702, %v701
      %v726 = vpack.c.b16 %v704, %v703
      %v727 = vpack.c.b16 %v706, %v705
      %v728 = vpack.c.b16 %v708, %v707
      %v729 = vpack.c.b16 %v710, %v709
      %v730 = vpack.c.b16 %v712, %v711
      %v731 = vpack.c.b16 %v714, %v713
      %v732 = vpack.c.b16 %v716, %v715
      %vm733 = vcmask 31744
      %v735 = vsel %vm733, %v717, 0
      %v738 = vsel %vm733, %v718, 0
      %v741 = vsel %vm733, %v719, 0
      %v744 = vsel %vm733, %v720, 0
      %v747 = vsel %vm733, %v721, 0
      %v750 = vsel %vm733, %v722, 0
      %v753 = vsel %vm733, %v723, 0
      %v756 = vsel %vm733, %v724, 0
      %v759 = vsel %vm733, %v725, 0
      %v762 = vsel %vm733, %v726, 0
      %v765 = vsel %vm733, %v727, 0
      %v768 = vsel %vm733, %v728, 0
      %v771 = vsel %vm733, %v729, 0
      %v774 = vsel %vm733, %v730, 0
      %v777 = vsel %vm733, %v731, 0
      %v780 = vsel %vm733, %v732, 0
      %vm782 = vcmask 1041408
      %v784 = vsel %vm782, %v684, 0
      %786 = vmatprep.subr.bf16.mxu0 0
      %787 = vmatpush1.bf16.msra.mxu0 0
      %788 = vmatprep.subr.bf16.mxu0 0
      %789 = vmatpush1.bf16.msra.mxu0 0
      %790 = vmatprep.subr.bf16.mxu0 0
      %791 = vmatpush1.bf16.msra.mxu0 0
      %792 = vmatprep.subr.bf16.mxu0 0
      %793 = vmatpush1.bf16.msra.mxu0 0
      %794 = vmatprep.subr.bf16.mxu0 0
      %795 = vmatpush1.bf16.msra.mxu0 0
      %796 = vmatprep.subr.bf16.mxu0 0
      %797 = vmatpush1.bf16.msra.mxu0 0
      %798 = vmatprep.subr.bf16.mxu0 0
      %799 = vmatpush1.bf16.msra.mxu0 0
      %800 = vmatprep.subr.bf16.mxu0 0
      %801 = vmatpush1.bf16.msra.mxu0 %v784
      %802 = vmatprep.subr.bf16.mxu0 0
      %803 = vmatpush2.bf16.msra.mxu0 0
      %804 = vmatprep.subr.bf16.mxu0 0
      %805 = vmatpush2.bf16.msra.mxu0 0
      %806 = vmatprep.subr.bf16.mxu0 0
      %807 = vmatpush2.bf16.msra.mxu0 0
      %808 = vmatprep.subr.bf16.mxu0 0
      %809 = vmatpush2.bf16.msra.mxu0 0
      %810 = vmatprep.subr.bf16.mxu0 0
      %811 = vmatpush2.bf16.msra.mxu0 0
      %812 = vmatprep.subr.bf16.mxu0 0
      %813 = vmatpush2.bf16.msra.mxu0 0
      %814 = vmatprep.subr.bf16.mxu0 0
      %815 = vmatpush2.bf16.msra.mxu0 0
      %816 = vmatprep.subr.bf16.mxu0 0
      %817 = vmatpush2.bf16.msra.mxu0 0
      %818 = vmatprep.mubr.bf16.mxu0 0
      %819 = vmatmul.mubr.bf16.gmra.mxu0 %v735
      %v820 = vpop.f32.mrf.mxu0
      %v821 = vadd.f32 0.0, %v820
      %v822 = vpop.f32.mrf.mxu0
      %v823 = vpop.f32.mrf.mxu0
      %v824 = vadd.f32 0.0, %v823
      %v825 = vpop.f32.mrf.mxu0
      %826 = vmatprep.mubr.bf16.mxu0 0
      %827 = vmatmul.mubr.bf16.gmra.mxu0 %v738
      %v828 = vpop.f32.mrf.mxu0
      %v829 = vadd.f32 0.0, %v828
      %v830 = vpop.f32.mrf.mxu0
      %v831 = vpop.f32.mrf.mxu0
      %v832 = vadd.f32 0.0, %v831
      %v833 = vpop.f32.mrf.mxu0
      %834 = vmatprep.mubr.bf16.mxu0 0
      %835 = vmatmul.mubr.bf16.gmra.mxu0 %v741
      %v836 = vpop.f32.mrf.mxu0
      %v837 = vadd.f32 0.0, %v836
      %v838 = vpop.f32.mrf.mxu0
      %v839 = vpop.f32.mrf.mxu0
      %v840 = vadd.f32 0.0, %v839
      %v841 = vpop.f32.mrf.mxu0
      %842 = vmatprep.mubr.bf16.mxu0 0
      %843 = vmatmul.mubr.bf16.gmra.mxu0 %v744
      %v844 = vpop.f32.mrf.mxu0
      %v845 = vadd.f32 0.0, %v844
      %v846 = vpop.f32.mrf.mxu0
      %v847 = vpop.f32.mrf.mxu0
      %v848 = vadd.f32 0.0, %v847
      %v849 = vpop.f32.mrf.mxu0
      %850 = vmatprep.mubr.bf16.mxu0 0
      %851 = vmatmul.mubr.bf16.gmra.mxu0 %v747
      %v852 = vpop.f32.mrf.mxu0
      %v853 = vadd.f32 0.0, %v852
      %v854 = vpop.f32.mrf.mxu0
      %v855 = vpop.f32.mrf.mxu0
      %v856 = vadd.f32 0.0, %v855
      %v857 = vpop.f32.mrf.mxu0
      %858 = vmatprep.mubr.bf16.mxu0 0
      %859 = vmatmul.mubr.bf16.gmra.mxu0 %v750
      %v860 = vpop.f32.mrf.mxu0
      %v861 = vadd.f32 0.0, %v860
      %v862 = vpop.f32.mrf.mxu0
      %v863 = vpop.f32.mrf.mxu0
      %v864 = vadd.f32 0.0, %v863
      %v865 = vpop.f32.mrf.mxu0
      %866 = vmatprep.mubr.bf16.mxu0 0
      %867 = vmatmul.mubr.bf16.gmra.mxu0 %v753
      %v868 = vpop.f32.mrf.mxu0
      %v869 = vadd.f32 0.0, %v868
      %v870 = vpop.f32.mrf.mxu0
      %v871 = vpop.f32.mrf.mxu0
      %v872 = vadd.f32 0.0, %v871
      %v873 = vpop.f32.mrf.mxu0
      %874 = vmatprep.mubr.bf16.mxu0 0
      %875 = vmatmul.mubr.bf16.gmra.mxu0 %v756
      %v876 = vpop.f32.mrf.mxu0
      %v877 = vadd.f32 0.0, %v876
      %v878 = vpop.f32.mrf.mxu0
      %v879 = vpop.f32.mrf.mxu0
      %v880 = vadd.f32 0.0, %v879
      %v881 = vpop.f32.mrf.mxu0
      %882 = vmatprep.mubr.bf16.mxu0 0
      %883 = vmatmul.mubr.bf16.gmra.mxu0 %v759
      %v884 = vpop.f32.mrf.mxu0
      %v885 = vadd.f32 0.0, %v884
      %v886 = vpop.f32.mrf.mxu0
      %v887 = vpop.f32.mrf.mxu0
      %v888 = vadd.f32 0.0, %v887
      %v889 = vpop.f32.mrf.mxu0
      %890 = vmatprep.mubr.bf16.mxu0 0
      %891 = vmatmul.mubr.bf16.gmra.mxu0 %v762
      %v892 = vpop.f32.mrf.mxu0
      %v893 = vadd.f32 0.0, %v892
      %v894 = vpop.f32.mrf.mxu0
      %v895 = vpop.f32.mrf.mxu0
      %v896 = vadd.f32 0.0, %v895
      %v897 = vpop.f32.mrf.mxu0
      %898 = vmatprep.mubr.bf16.mxu0 0
      %899 = vmatmul.mubr.bf16.gmra.mxu0 %v765
      %v900 = vpop.f32.mrf.mxu0
      %v901 = vadd.f32 0.0, %v900
      %v902 = vpop.f32.mrf.mxu0
      %v903 = vpop.f32.mrf.mxu0
      %v904 = vadd.f32 0.0, %v903
      %v905 = vpop.f32.mrf.mxu0
      %906 = vmatprep.mubr.bf16.mxu0 0
      %907 = vmatmul.mubr.bf16.gmra.mxu0 %v768
      %v908 = vpop.f32.mrf.mxu0
      %v909 = vadd.f32 0.0, %v908
      %v910 = vpop.f32.mrf.mxu0
      %v911 = vpop.f32.mrf.mxu0
      %v912 = vadd.f32 0.0, %v911
      %v913 = vpop.f32.mrf.mxu0
      %914 = vmatprep.mubr.bf16.mxu0 0
      %915 = vmatmul.mubr.bf16.gmra.mxu0 %v771
      %v916 = vpop.f32.mrf.mxu0
      %v917 = vadd.f32 0.0, %v916
      %v918 = vpop.f32.mrf.mxu0
      %v919 = vpop.f32.mrf.mxu0
      %v920 = vadd.f32 0.0, %v919
      %v921 = vpop.f32.mrf.mxu0
      %922 = vmatprep.mubr.bf16.mxu0 0
      %923 = vmatmul.mubr.bf16.gmra.mxu0 %v774
      %v924 = vpop.f32.mrf.mxu0
      %v925 = vadd.f32 0.0, %v924
      %v926 = vpop.f32.mrf.mxu0
      %v927 = vpop.f32.mrf.mxu0
      %v928 = vadd.f32 0.0, %v927
      %v929 = vpop.f32.mrf.mxu0
      %930 = vmatprep.mubr.bf16.mxu0 0
      %931 = vmatmul.mubr.bf16.gmra.mxu0 %v777
      %v932 = vpop.f32.mrf.mxu0
      %v933 = vadd.f32 0.0, %v932
      %v934 = vpop.f32.mrf.mxu0
      %v935 = vpop.f32.mrf.mxu0
      %v936 = vadd.f32 0.0, %v935
      %v937 = vpop.f32.mrf.mxu0
      %938 = vmatprep.mubr.bf16.mxu0 0
      %939 = vmatmul.mubr.bf16.gmra.mxu0 %v780
      %v940 = vpop.f32.mrf.mxu0
      %v941 = vadd.f32 0.0, %v940
      %v942 = vpop.f32.mrf.mxu0
      %v943 = vpop.f32.mrf.mxu0
      %v944 = vadd.f32 0.0, %v943
      %v945 = vpop.f32.mrf.mxu0
      %946 = vdwg.mxu0
      %v979 = vunpack.c.l.b16 %v247
      %v980 = vunpack.c.l.b16 %v248
      %v981 = vunpack.c.l.b16 %v249
      %v982 = vunpack.c.l.b16 %v250
      %v983 = vunpack.c.l.b16 %v251
      %v984 = vunpack.c.l.b16 %v252
      %v985 = vunpack.c.l.b16 %v253
      %v986 = vunpack.c.l.b16 %v254
      %v987 = vunpack.c.l.b16 %v255
      %v988 = vunpack.c.l.b16 %v256
      %v989 = vunpack.c.l.b16 %v257
      %v990 = vunpack.c.l.b16 %v258
      %v991 = vunpack.c.l.b16 %v259
      %v992 = vunpack.c.l.b16 %v260
      %v993 = vunpack.c.l.b16 %v261
      %v994 = vunpack.c.l.b16 %v262
      %v995 = vunpack.c.l.b16 %v263
      %v996 = vunpack.c.l.b16 %v264
      %v997 = vunpack.c.l.b16 %v265
      %v998 = vunpack.c.l.b16 %v266
      %v999 = vunpack.c.l.b16 %v267
      %v1000 = vunpack.c.l.b16 %v268
      %v1001 = vunpack.c.l.b16 %v269
      %v1002 = vunpack.c.l.b16 %v270
      %v1003 = vunpack.c.l.b16 %v271
      %v1004 = vunpack.c.l.b16 %v272
      %v1005 = vunpack.c.l.b16 %v273
      %v1006 = vunpack.c.l.b16 %v274
      %v1007 = vunpack.c.l.b16 %v275
      %v1008 = vunpack.c.l.b16 %v276
      %v1009 = vunpack.c.l.b16 %v277
      %v1010 = vunpack.c.l.b16 %v278
      %v1011 = vpack.c.b16 %v980, %v979
      %v1012 = vpack.c.b16 %v982, %v981
      %v1013 = vpack.c.b16 %v984, %v983
      %v1014 = vpack.c.b16 %v986, %v985
      %v1015 = vpack.c.b16 %v988, %v987
      %v1016 = vpack.c.b16 %v990, %v989
      %v1017 = vpack.c.b16 %v992, %v991
      %v1018 = vpack.c.b16 %v994, %v993
      %v1019 = vpack.c.b16 %v996, %v995
      %v1020 = vpack.c.b16 %v998, %v997
      %v1021 = vpack.c.b16 %v1000, %v999
      %v1022 = vpack.c.b16 %v1002, %v1001
      %v1023 = vpack.c.b16 %v1004, %v1003
      %v1024 = vpack.c.b16 %v1006, %v1005
      %v1025 = vpack.c.b16 %v1008, %v1007
      %v1026 = vpack.c.b16 %v1010, %v1009
      %v1028 = vsel %vm733, %v1011, 0
      %v1031 = vsel %vm733, %v1012, 0
      %v1034 = vsel %vm733, %v1013, 0
      %v1037 = vsel %vm733, %v1014, 0
      %v1040 = vsel %vm733, %v1015, 0
      %v1043 = vsel %vm733, %v1016, 0
      %v1046 = vsel %vm733, %v1017, 0
      %v1049 = vsel %vm733, %v1018, 0
      %v1052 = vsel %vm733, %v1019, 0
      %v1055 = vsel %vm733, %v1020, 0
      %v1058 = vsel %vm733, %v1021, 0
      %v1061 = vsel %vm733, %v1022, 0
      %v1064 = vsel %vm733, %v1023, 0
      %v1067 = vsel %vm733, %v1024, 0
      %v1070 = vsel %vm733, %v1025, 0
      %v1073 = vsel %vm733, %v1026, 0
      %v1076 = vsel %vm782, %v279, 0
      %1078 = vmatprep.subr.bf16.mxu0 0
      %1079 = vmatpush1.bf16.msra.mxu0 0
      %1080 = vmatprep.subr.bf16.mxu0 0
      %1081 = vmatpush1.bf16.msra.mxu0 0
      %1082 = vmatprep.subr.bf16.mxu0 0
      %1083 = vmatpush1.bf16.msra.mxu0 0
      %1084 = vmatprep.subr.bf16.mxu0 0
      %1085 = vmatpush1.bf16.msra.mxu0 0
      %1086 = vmatprep.subr.bf16.mxu0 0
      %1087 = vmatpush1.bf16.msra.mxu0 0
      %1088 = vmatprep.subr.bf16.mxu0 0
      %1089 = vmatpush1.bf16.msra.mxu0 0
      %1090 = vmatprep.subr.bf16.mxu0 0
      %1091 = vmatpush1.bf16.msra.mxu0 0
      %1092 = vmatprep.subr.bf16.mxu0 0
      %1093 = vmatpush1.bf16.msra.mxu0 %v1076
      %1094 = vmatprep.subr.bf16.mxu0 0
      %1095 = vmatpush2.bf16.msra.mxu0 0
      %1096 = vmatprep.subr.bf16.mxu0 0
      %1097 = vmatpush2.bf16.msra.mxu0 0
      %1098 = vmatprep.subr.bf16.mxu0 0
      %1099 = vmatpush2.bf16.msra.mxu0 0
      %1100 = vmatprep.subr.bf16.mxu0 0
      %1101 = vmatpush2.bf16.msra.mxu0 0
      %1102 = vmatprep.subr.bf16.mxu0 0
      %1103 = vmatpush2.bf16.msra.mxu0 0
      %1104 = vmatprep.subr.bf16.mxu0 0
      %1105 = vmatpush2.bf16.msra.mxu0 0
      %1106 = vmatprep.subr.bf16.mxu0 0
      %1107 = vmatpush2.bf16.msra.mxu0 0
      %1108 = vmatprep.subr.bf16.mxu0 0
      %1109 = vmatpush2.bf16.msra.mxu0 0
      %1110 = vmatprep.mubr.bf16.mxu0 0
      %1111 = vmatmul.mubr.bf16.gmra.mxu0 %v1028
      %v1112 = vpop.f32.mrf.mxu0
      %v1113 = vadd.f32 %v821, %v1112
      %v1114 = vpop.f32.mrf.mxu0
      %v1115 = vpop.f32.mrf.mxu0
      %v1116 = vadd.f32 %v824, %v1115
      %v1117 = vpop.f32.mrf.mxu0
      %1118 = vmatprep.mubr.bf16.mxu0 0
      %1119 = vmatmul.mubr.bf16.gmra.mxu0 %v1031
      %v1120 = vpop.f32.mrf.mxu0
      %v1121 = vadd.f32 %v829, %v1120
      %v1122 = vpop.f32.mrf.mxu0
      %v1123 = vpop.f32.mrf.mxu0
      %v1124 = vadd.f32 %v832, %v1123
      %v1125 = vpop.f32.mrf.mxu0
      %1126 = vmatprep.mubr.bf16.mxu0 0
      %1127 = vmatmul.mubr.bf16.gmra.mxu0 %v1034
      %v1128 = vpop.f32.mrf.mxu0
      %v1129 = vadd.f32 %v837, %v1128
      %v1130 = vpop.f32.mrf.mxu0
      %v1131 = vpop.f32.mrf.mxu0
      %v1132 = vadd.f32 %v840, %v1131
      %v1133 = vpop.f32.mrf.mxu0
      %1134 = vmatprep.mubr.bf16.mxu0 0
      %1135 = vmatmul.mubr.bf16.gmra.mxu0 %v1037
      %v1136 = vpop.f32.mrf.mxu0
      %v1137 = vadd.f32 %v845, %v1136
      %v1138 = vpop.f32.mrf.mxu0
      %v1139 = vpop.f32.mrf.mxu0
      %v1140 = vadd.f32 %v848, %v1139
      %v1141 = vpop.f32.mrf.mxu0
      %1142 = vmatprep.mubr.bf16.mxu0 0
      %1143 = vmatmul.mubr.bf16.gmra.mxu0 %v1040
      %v1144 = vpop.f32.mrf.mxu0
      %v1145 = vadd.f32 %v853, %v1144
      %v1146 = vpop.f32.mrf.mxu0
      %v1147 = vpop.f32.mrf.mxu0
      %v1148 = vadd.f32 %v856, %v1147
      %v1149 = vpop.f32.mrf.mxu0
      %1150 = vmatprep.mubr.bf16.mxu0 0
      %1151 = vmatmul.mubr.bf16.gmra.mxu0 %v1043
      %v1152 = vpop.f32.mrf.mxu0
      %v1153 = vadd.f32 %v861, %v1152
      %v1154 = vpop.f32.mrf.mxu0
      %v1155 = vpop.f32.mrf.mxu0
      %v1156 = vadd.f32 %v864, %v1155
      %v1157 = vpop.f32.mrf.mxu0
      %1158 = vmatprep.mubr.bf16.mxu0 0
      %1159 = vmatmul.mubr.bf16.gmra.mxu0 %v1046
      %v1160 = vpop.f32.mrf.mxu0
      %v1161 = vadd.f32 %v869, %v1160
      %v1162 = vpop.f32.mrf.mxu0
      %v1163 = vpop.f32.mrf.mxu0
      %v1164 = vadd.f32 %v872, %v1163
      %v1165 = vpop.f32.mrf.mxu0
      %1166 = vmatprep.mubr.bf16.mxu0 0
      %1167 = vmatmul.mubr.bf16.gmra.mxu0 %v1049
      %v1168 = vpop.f32.mrf.mxu0
      %v1169 = vadd.f32 %v877, %v1168
      %v1170 = vpop.f32.mrf.mxu0
      %v1171 = vpop.f32.mrf.mxu0
      %v1172 = vadd.f32 %v880, %v1171
      %v1173 = vpop.f32.mrf.mxu0
      %1174 = vmatprep.mubr.bf16.mxu0 0
      %1175 = vmatmul.mubr.bf16.gmra.mxu0 %v1052
      %v1176 = vpop.f32.mrf.mxu0
      %v1177 = vadd.f32 %v885, %v1176
      %v1178 = vpop.f32.mrf.mxu0
      %v1179 = vpop.f32.mrf.mxu0
      %v1180 = vadd.f32 %v888, %v1179
      %v1181 = vpop.f32.mrf.mxu0
      %1182 = vmatprep.mubr.bf16.mxu0 0
      %1183 = vmatmul.mubr.bf16.gmra.mxu0 %v1055
      %v1184 = vpop.f32.mrf.mxu0
      %v1185 = vadd.f32 %v893, %v1184
      %v1186 = vpop.f32.mrf.mxu0
      %v1187 = vpop.f32.mrf.mxu0
      %v1188 = vadd.f32 %v896, %v1187
      %v1189 = vpop.f32.mrf.mxu0
      %1190 = vmatprep.mubr.bf16.mxu0 0
      %1191 = vmatmul.mubr.bf16.gmra.mxu0 %v1058
      %v1192 = vpop.f32.mrf.mxu0
      %v1193 = vadd.f32 %v901, %v1192
      %v1194 = vpop.f32.mrf.mxu0
      %v1195 = vpop.f32.mrf.mxu0
      %v1196 = vadd.f32 %v904, %v1195
      %v1197 = vpop.f32.mrf.mxu0
      %1198 = vmatprep.mubr.bf16.mxu0 0
      %1199 = vmatmul.mubr.bf16.gmra.mxu0 %v1061
      %v1200 = vpop.f32.mrf.mxu0
      %v1201 = vadd.f32 %v909, %v1200
      %v1202 = vpop.f32.mrf.mxu0
      %v1203 = vpop.f32.mrf.mxu0
      %v1204 = vadd.f32 %v912, %v1203
      %v1205 = vpop.f32.mrf.mxu0
      %1206 = vmatprep.mubr.bf16.mxu0 0
      %1207 = vmatmul.mubr.bf16.gmra.mxu0 %v1064
      %v1208 = vpop.f32.mrf.mxu0
      %v1209 = vadd.f32 %v917, %v1208
      %v1210 = vpop.f32.mrf.mxu0
      %v1211 = vpop.f32.mrf.mxu0
      %v1212 = vadd.f32 %v920, %v1211
      %v1213 = vpop.f32.mrf.mxu0
      %1214 = vmatprep.mubr.bf16.mxu0 0
      %1215 = vmatmul.mubr.bf16.gmra.mxu0 %v1067
      %v1216 = vpop.f32.mrf.mxu0
      %v1217 = vadd.f32 %v925, %v1216
      %v1218 = vpop.f32.mrf.mxu0
      %v1219 = vpop.f32.mrf.mxu0
      %v1220 = vadd.f32 %v928, %v1219
      %v1221 = vpop.f32.mrf.mxu0
      %1222 = vmatprep.mubr.bf16.mxu0 0
      %1223 = vmatmul.mubr.bf16.gmra.mxu0 %v1070
      %v1224 = vpop.f32.mrf.mxu0
      %v1225 = vadd.f32 %v933, %v1224
      %v1226 = vpop.f32.mrf.mxu0
      %v1227 = vpop.f32.mrf.mxu0
      %v1228 = vadd.f32 %v936, %v1227
      %v1229 = vpop.f32.mrf.mxu0
      %1230 = vmatprep.mubr.bf16.mxu0 0
      %1231 = vmatmul.mubr.bf16.gmra.mxu0 %v1073
      %v1232 = vpop.f32.mrf.mxu0
      %v1233 = vadd.f32 %v941, %v1232
      %v1234 = vpop.f32.mrf.mxu0
      %v1235 = vpop.f32.mrf.mxu0
      %v1236 = vadd.f32 %v944, %v1235
      %v1237 = vpop.f32.mrf.mxu0
      %1238 = vdwg.mxu0
      %v1239 = vld [vmem:[%s246] sm:$0xe]
      %v1240 = vld [vmem:[%s246 + $0xc] sm:$0xe]
      %v1241 = vld [vmem:[%s246 + $0x18] sm:$0xe]
      %v1242 = vld [vmem:[%s246 + $0x24] sm:$0xe]
      %v1243 = vld [vmem:[%s246 + $0x30] sm:$0xe]
      %v1244 = vld [vmem:[%s246 + $0x3c] sm:$0xe]
      %v1245 = vld [vmem:[%s246 + $0x48] sm:$0xe]
      %v1246 = vld [vmem:[%s246 + $0x54] sm:$0xe]
      %v1247 = vld [vmem:[%s246 + $0x60] sm:$0xe]
      %v1248 = vld [vmem:[%s246 + $0x6c] sm:$0xe]
      %v1249 = vld [vmem:[%s246 + $0x78] sm:$0xe]
      %v1250 = vld [vmem:[%s246 + $0x84] sm:$0xe]
      %v1251 = vld [vmem:[%s246 + $0x90] sm:$0xe]
      %v1252 = vld [vmem:[%s246 + $0x9c] sm:$0xe]
      %v1253 = vld [vmem:[%s246 + $0xa8] sm:$0xe]
      %v1254 = vld [vmem:[%s246 + $0xb4] sm:$0xe]
      %vm1287 = vcmask 1042432
      %vm1288 = vcmask 1046532
      %vm1289 = vmor %vm1287, %vm1288
      %v1290 = vrot.slane %v1239, 5
      %v1291 = vrot.slane %v1290, 4
      %v1292 = vrot.slane %v248, 5
      %v1293 = vsel %vm1289, %v1291, %v1292
      %v1294 = vrot.slane %v1292, 4
      %v1295 = vrot.slane %v280, 5
      %v1296 = vsel %vm1289, %v1294, %v1295
      %v1297 = vrot.slane %v1240, 5
      %v1298 = vrot.slane %v1297, 4
      %v1299 = vrot.slane %v250, 5
      %v1300 = vsel %vm1289, %v1298, %v1299
      %v1301 = vrot.slane %v1299, 4
      %v1302 = vrot.slane %v281, 5
      %v1303 = vsel %vm1289, %v1301, %v1302
      %v1304 = vrot.slane %v1241, 5
      %v1305 = vrot.slane %v1304, 4
      %v1306 = vrot.slane %v252, 5
      %v1307 = vsel %vm1289, %v1305, %v1306
      %v1308 = vrot.slane %v1306, 4
      %v1309 = vrot.slane %v282, 5
      %v1310 = vsel %vm1289, %v1308, %v1309
      %v1311 = vrot.slane %v1242, 5
      %v1312 = vrot.slane %v1311, 4
      %v1313 = vrot.slane %v254, 5
      %v1314 = vsel %vm1289, %v1312, %v1313
      %v1315 = vrot.slane %v1313, 4
      %v1316 = vrot.slane %v283, 5
      %v1317 = vsel %vm1289, %v1315, %v1316
      %v1318 = vrot.slane %v1243, 5
      %v1319 = vrot.slane %v1318, 4
      %v1320 = vrot.slane %v256, 5
      %v1321 = vsel %vm1289, %v1319, %v1320
      %v1322 = vrot.slane %v1320, 4
      %v1323 = vrot.slane %v284, 5
      %v1324 = vsel %vm1289, %v1322, %v1323
      %v1325 = vrot.slane %v1244, 5
      %v1326 = vrot.slane %v1325, 4
      %v1327 = vrot.slane %v258, 5
      %v1328 = vsel %vm1289, %v1326, %v1327
      %v1329 = vrot.slane %v1327, 4
      %v1330 = vrot.slane %v285, 5
      %v1331 = vsel %vm1289, %v1329, %v1330
      %v1332 = vrot.slane %v1245, 5
      %v1333 = vrot.slane %v1332, 4
      %v1334 = vrot.slane %v260, 5
      %v1335 = vsel %vm1289, %v1333, %v1334
      %v1336 = vrot.slane %v1334, 4
      %v1337 = vrot.slane %v286, 5
      %v1338 = vsel %vm1289, %v1336, %v1337
      %v1339 = vrot.slane %v1246, 5
      %v1340 = vrot.slane %v1339, 4
      %v1341 = vrot.slane %v262, 5
      %v1342 = vsel %vm1289, %v1340, %v1341
      %v1343 = vrot.slane %v1341, 4
      %v1344 = vrot.slane %v287, 5
      %v1345 = vsel %vm1289, %v1343, %v1344
      %v1346 = vrot.slane %v1247, 5
      %v1347 = vrot.slane %v1346, 4
      %v1348 = vrot.slane %v264, 5
      %v1349 = vsel %vm1289, %v1347, %v1348
      %v1350 = vrot.slane %v1348, 4
      %v1351 = vrot.slane %v288, 5
      %v1352 = vsel %vm1289, %v1350, %v1351
      %v1353 = vrot.slane %v1248, 5
      %v1354 = vrot.slane %v1353, 4
      %v1355 = vrot.slane %v266, 5
      %v1356 = vsel %vm1289, %v1354, %v1355
      %v1357 = vrot.slane %v1355, 4
      %v1358 = vrot.slane %v289, 5
      %v1359 = vsel %vm1289, %v1357, %v1358
      %v1360 = vrot.slane %v1249, 5
      %v1361 = vrot.slane %v1360, 4
      %v1362 = vrot.slane %v268, 5
      %v1363 = vsel %vm1289, %v1361, %v1362
      %v1364 = vrot.slane %v1362, 4
      %v1365 = vrot.slane %v290, 5
      %v1366 = vsel %vm1289, %v1364, %v1365
      %v1367 = vrot.slane %v1250, 5
      %v1368 = vrot.slane %v1367, 4
      %v1369 = vrot.slane %v270, 5
      %v1370 = vsel %vm1289, %v1368, %v1369
      %v1371 = vrot.slane %v1369, 4
      %v1372 = vrot.slane %v291, 5
      %v1373 = vsel %vm1289, %v1371, %v1372
      %v1374 = vrot.slane %v1251, 5
      %v1375 = vrot.slane %v1374, 4
      %v1376 = vrot.slane %v272, 5
      %v1377 = vsel %vm1289, %v1375, %v1376
      %v1378 = vrot.slane %v1376, 4
      %v1379 = vrot.slane %v292, 5
      %v1380 = vsel %vm1289, %v1378, %v1379
      %v1381 = vrot.slane %v1252, 5
      %v1382 = vrot.slane %v1381, 4
      %v1383 = vrot.slane %v274, 5
      %v1384 = vsel %vm1289, %v1382, %v1383
      %v1385 = vrot.slane %v1383, 4
      %v1386 = vrot.slane %v293, 5
      %v1387 = vsel %vm1289, %v1385, %v1386
      %v1388 = vrot.slane %v1253, 5
      %v1389 = vrot.slane %v1388, 4
      %v1390 = vrot.slane %v276, 5
      %v1391 = vsel %vm1289, %v1389, %v1390
      %v1392 = vrot.slane %v1390, 4
      %v1393 = vrot.slane %v294, 5
      %v1394 = vsel %vm1289, %v1392, %v1393
      %v1395 = vrot.slane %v1254, 5
      %v1396 = vrot.slane %v1395, 4
      %v1397 = vrot.slane %v278, 5
      %v1398 = vsel %vm1289, %v1396, %v1397
      %v1399 = vrot.slane %v1397, 4
      %v1400 = vrot.slane %v295, 5
      %v1401 = vsel %vm1289, %v1399, %v1400
      %s1402 = scalar_lea.vmem %s224, 4
      %v1403 = vld [vmem:[%s1402] sm:$0x3]
      %v1404 = vunpack.c.l.b16 %v1293
      %v1405 = vunpack.c.l.b16 %v1296
      %v1406 = vunpack.c.l.b16 %v1300
      %v1407 = vunpack.c.l.b16 %v1303
      %v1408 = vunpack.c.l.b16 %v1307
      %v1409 = vunpack.c.l.b16 %v1310
      %v1410 = vunpack.c.l.b16 %v1314
      %v1411 = vunpack.c.l.b16 %v1317
      %v1412 = vunpack.c.l.b16 %v1321
      %v1413 = vunpack.c.l.b16 %v1324
      %v1414 = vunpack.c.l.b16 %v1328
      %v1415 = vunpack.c.l.b16 %v1331
      %v1416 = vunpack.c.l.b16 %v1335
      %v1417 = vunpack.c.l.b16 %v1338
      %v1418 = vunpack.c.l.b16 %v1342
      %v1419 = vunpack.c.l.b16 %v1345
      %v1420 = vunpack.c.l.b16 %v1349
      %v1421 = vunpack.c.l.b16 %v1352
      %v1422 = vunpack.c.l.b16 %v1356
      %v1423 = vunpack.c.l.b16 %v1359
      %v1424 = vunpack.c.l.b16 %v1363
      %v1425 = vunpack.c.l.b16 %v1366
      %v1426 = vunpack.c.l.b16 %v1370
      %v1427 = vunpack.c.l.b16 %v1373
      %v1428 = vunpack.c.l.b16 %v1377
      %v1429 = vunpack.c.l.b16 %v1380
      %v1430 = vunpack.c.l.b16 %v1384
      %v1431 = vunpack.c.l.b16 %v1387
      %v1432 = vunpack.c.l.b16 %v1391
      %v1433 = vunpack.c.l.b16 %v1394
      %v1434 = vunpack.c.l.b16 %v1398
      %v1435 = vunpack.c.l.b16 %v1401
      %v1436 = vpack.c.b16 %v1405, %v1404
      %v1437 = vpack.c.b16 %v1407, %v1406
      %v1438 = vpack.c.b16 %v1409, %v1408
      %v1439 = vpack.c.b16 %v1411, %v1410
      %v1440 = vpack.c.b16 %v1413, %v1412
      %v1441 = vpack.c.b16 %v1415, %v1414
      %v1442 = vpack.c.b16 %v1417, %v1416
      %v1443 = vpack.c.b16 %v1419, %v1418
      %v1444 = vpack.c.b16 %v1421, %v1420
      %v1445 = vpack.c.b16 %v1423, %v1422
      %v1446 = vpack.c.b16 %v1425, %v1424
      %v1447 = vpack.c.b16 %v1427, %v1426
      %v1448 = vpack.c.b16 %v1429, %v1428
      %v1449 = vpack.c.b16 %v1431, %v1430
      %v1450 = vpack.c.b16 %v1433, %v1432
      %v1451 = vpack.c.b16 %v1435, %v1434
      %v1453 = vsel %vm733, %v1436, 0
      %v1456 = vsel %vm733, %v1437, 0
      %v1459 = vsel %vm733, %v1438, 0
      %v1462 = vsel %vm733, %v1439, 0
      %v1465 = vsel %vm733, %v1440, 0
      %v1468 = vsel %vm733, %v1441, 0
      %v1471 = vsel %vm733, %v1442, 0
      %v1474 = vsel %vm733, %v1443, 0
      %v1477 = vsel %vm733, %v1444, 0
      %v1480 = vsel %vm733, %v1445, 0
      %v1483 = vsel %vm733, %v1446, 0
      %v1486 = vsel %vm733, %v1447, 0
      %v1489 = vsel %vm733, %v1448, 0
      %v1492 = vsel %vm733, %v1449, 0
      %v1495 = vsel %vm733, %v1450, 0
      %v1498 = vsel %vm733, %v1451, 0
      %v1501 = vsel %vm782, %v1403, 0
      %1503 = vmatprep.subr.bf16.mxu0 0
      %1504 = vmatpush1.bf16.msra.mxu0 0
      %1505 = vmatprep.subr.bf16.mxu0 0
      %1506 = vmatpush1.bf16.msra.mxu0 0
      %1507 = vmatprep.subr.bf16.mxu0 0
      %1508 = vmatpush1.bf16.msra.mxu0 0
      %1509 = vmatprep.subr.bf16.mxu0 0
      %1510 = vmatpush1.bf16.msra.mxu0 0
      %1511 = vmatprep.subr.bf16.mxu0 0
      %1512 = vmatpush1.bf16.msra.mxu0 0
      %1513 = vmatprep.subr.bf16.mxu0 0
      %1514 = vmatpush1.bf16.msra.mxu0 0
      %1515 = vmatprep.subr.bf16.mxu0 0
      %1516 = vmatpush1.bf16.msra.mxu0 0
      %1517 = vmatprep.subr.bf16.mxu0 0
      %1518 = vmatpush1.bf16.msra.mxu0 %v1501
      %1519 = vmatprep.subr.bf16.mxu0 0
      %1520 = vmatpush2.bf16.msra.mxu0 0
      %1521 = vmatprep.subr.bf16.mxu0 0
      %1522 = vmatpush2.bf16.msra.mxu0 0
      %1523 = vmatprep.subr.bf16.mxu0 0
      %1524 = vmatpush2.bf16.msra.mxu0 0
      %1525 = vmatprep.subr.bf16.mxu0 0
      %1526 = vmatpush2.bf16.msra.mxu0 0
      %1527 = vmatprep.subr.bf16.mxu0 0
      %1528 = vmatpush2.bf16.msra.mxu0 0
      %1529 = vmatprep.subr.bf16.mxu0 0
      %1530 = vmatpush2.bf16.msra.mxu0 0
      %1531 = vmatprep.subr.bf16.mxu0 0
      %1532 = vmatpush2.bf16.msra.mxu0 0
      %1533 = vmatprep.subr.bf16.mxu0 0
      %1534 = vmatpush2.bf16.msra.mxu0 0
      %1535 = vmatprep.mubr.bf16.mxu0 0
      %1536 = vmatmul.mubr.bf16.gmra.mxu0 %v1453
      %v1537 = vpop.f32.mrf.mxu0
      %v1538 = vadd.f32 0.0, %v1537
      %v1539 = vpop.f32.mrf.mxu0
      %v1540 = vpop.f32.mrf.mxu0
      %v1541 = vadd.f32 0.0, %v1540
      %v1542 = vpop.f32.mrf.mxu0
      %1543 = vmatprep.mubr.bf16.mxu0 0
      %1544 = vmatmul.mubr.bf16.gmra.mxu0 %v1456
      %v1545 = vpop.f32.mrf.mxu0
      %v1546 = vadd.f32 0.0, %v1545
      %v1547 = vpop.f32.mrf.mxu0
      %v1548 = vpop.f32.mrf.mxu0
      %v1549 = vadd.f32 0.0, %v1548
      %v1550 = vpop.f32.mrf.mxu0
      %1551 = vmatprep.mubr.bf16.mxu0 0
      %1552 = vmatmul.mubr.bf16.gmra.mxu0 %v1459
      %v1553 = vpop.f32.mrf.mxu0
      %v1554 = vadd.f32 0.0, %v1553
      %v1555 = vpop.f32.mrf.mxu0
      %v1556 = vpop.f32.mrf.mxu0
      %v1557 = vadd.f32 0.0, %v1556
      %v1558 = vpop.f32.mrf.mxu0
      %1559 = vmatprep.mubr.bf16.mxu0 0
      %1560 = vmatmul.mubr.bf16.gmra.mxu0 %v1462
      %v1561 = vpop.f32.mrf.mxu0
      %v1562 = vadd.f32 0.0, %v1561
      %v1563 = vpop.f32.mrf.mxu0
      %v1564 = vpop.f32.mrf.mxu0
      %v1565 = vadd.f32 0.0, %v1564
      %v1566 = vpop.f32.mrf.mxu0
      %1567 = vmatprep.mubr.bf16.mxu0 0
      %1568 = vmatmul.mubr.bf16.gmra.mxu0 %v1465
      %v1569 = vpop.f32.mrf.mxu0
      %v1570 = vadd.f32 0.0, %v1569
      %v1571 = vpop.f32.mrf.mxu0
      %v1572 = vpop.f32.mrf.mxu0
      %v1573 = vadd.f32 0.0, %v1572
      %v1574 = vpop.f32.mrf.mxu0
      %1575 = vmatprep.mubr.bf16.mxu0 0
      %1576 = vmatmul.mubr.bf16.gmra.mxu0 %v1468
      %v1577 = vpop.f32.mrf.mxu0
      %v1578 = vadd.f32 0.0, %v1577
      %v1579 = vpop.f32.mrf.mxu0
      %v1580 = vpop.f32.mrf.mxu0
      %v1581 = vadd.f32 0.0, %v1580
      %v1582 = vpop.f32.mrf.mxu0
      %1583 = vmatprep.mubr.bf16.mxu0 0
      %1584 = vmatmul.mubr.bf16.gmra.mxu0 %v1471
      %v1585 = vpop.f32.mrf.mxu0
      %v1586 = vadd.f32 0.0, %v1585
      %v1587 = vpop.f32.mrf.mxu0
      %v1588 = vpop.f32.mrf.mxu0
      %v1589 = vadd.f32 0.0, %v1588
      %v1590 = vpop.f32.mrf.mxu0
      %1591 = vmatprep.mubr.bf16.mxu0 0
      %1592 = vmatmul.mubr.bf16.gmra.mxu0 %v1474
      %v1593 = vpop.f32.mrf.mxu0
      %v1594 = vadd.f32 0.0, %v1593
      %v1595 = vpop.f32.mrf.mxu0
      %v1596 = vpop.f32.mrf.mxu0
      %v1597 = vadd.f32 0.0, %v1596
      %v1598 = vpop.f32.mrf.mxu0
      %1599 = vmatprep.mubr.bf16.mxu0 0
      %1600 = vmatmul.mubr.bf16.gmra.mxu0 %v1477
      %v1601 = vpop.f32.mrf.mxu0
      %v1602 = vadd.f32 0.0, %v1601
      %v1603 = vpop.f32.mrf.mxu0
      %v1604 = vpop.f32.mrf.mxu0
      %v1605 = vadd.f32 0.0, %v1604
      %v1606 = vpop.f32.mrf.mxu0
      %1607 = vmatprep.mubr.bf16.mxu0 0
      %1608 = vmatmul.mubr.bf16.gmra.mxu0 %v1480
      %v1609 = vpop.f32.mrf.mxu0
      %v1610 = vadd.f32 0.0, %v1609
      %v1611 = vpop.f32.mrf.mxu0
      %v1612 = vpop.f32.mrf.mxu0
      %v1613 = vadd.f32 0.0, %v1612
      %v1614 = vpop.f32.mrf.mxu0
      %1615 = vmatprep.mubr.bf16.mxu0 0
      %1616 = vmatmul.mubr.bf16.gmra.mxu0 %v1483
      %v1617 = vpop.f32.mrf.mxu0
      %v1618 = vadd.f32 0.0, %v1617
      %v1619 = vpop.f32.mrf.mxu0
      %v1620 = vpop.f32.mrf.mxu0
      %v1621 = vadd.f32 0.0, %v1620
      %v1622 = vpop.f32.mrf.mxu0
      %1623 = vmatprep.mubr.bf16.mxu0 0
      %1624 = vmatmul.mubr.bf16.gmra.mxu0 %v1486
      %v1625 = vpop.f32.mrf.mxu0
      %v1626 = vadd.f32 0.0, %v1625
      %v1627 = vpop.f32.mrf.mxu0
      %v1628 = vpop.f32.mrf.mxu0
      %v1629 = vadd.f32 0.0, %v1628
      %v1630 = vpop.f32.mrf.mxu0
      %1631 = vmatprep.mubr.bf16.mxu0 0
      %1632 = vmatmul.mubr.bf16.gmra.mxu0 %v1489
      %v1633 = vpop.f32.mrf.mxu0
      %v1634 = vadd.f32 0.0, %v1633
      %v1635 = vpop.f32.mrf.mxu0
      %v1636 = vpop.f32.mrf.mxu0
      %v1637 = vadd.f32 0.0, %v1636
      %v1638 = vpop.f32.mrf.mxu0
      %1639 = vmatprep.mubr.bf16.mxu0 0
      %1640 = vmatmul.mubr.bf16.gmra.mxu0 %v1492
      %v1641 = vpop.f32.mrf.mxu0
      %v1642 = vadd.f32 0.0, %v1641
      %v1643 = vpop.f32.mrf.mxu0
      %v1644 = vpop.f32.mrf.mxu0
      %v1645 = vadd.f32 0.0, %v1644
      %v1646 = vpop.f32.mrf.mxu0
      %1647 = vmatprep.mubr.bf16.mxu0 0
      %1648 = vmatmul.mubr.bf16.gmra.mxu0 %v1495
      %v1649 = vpop.f32.mrf.mxu0
      %v1650 = vadd.f32 0.0, %v1649
      %v1651 = vpop.f32.mrf.mxu0
      %v1652 = vpop.f32.mrf.mxu0
      %v1653 = vadd.f32 0.0, %v1652
      %v1654 = vpop.f32.mrf.mxu0
      %1655 = vmatprep.mubr.bf16.mxu0 0
      %1656 = vmatmul.mubr.bf16.gmra.mxu0 %v1498
      %v1657 = vpop.f32.mrf.mxu0
      %v1658 = vadd.f32 0.0, %v1657
      %v1659 = vpop.f32.mrf.mxu0
      %v1660 = vpop.f32.mrf.mxu0
      %v1661 = vadd.f32 0.0, %v1660
      %v1662 = vpop.f32.mrf.mxu0
      %1663 = vdwg.mxu0
      %v1664 = vadd.f32 %v1113, %v1538
      %v1665 = vadd.f32 %v1116, %v1541
      %v1666 = vadd.f32 %v1121, %v1546
      %v1667 = vadd.f32 %v1124, %v1549
      %v1668 = vadd.f32 %v1129, %v1554
      %v1669 = vadd.f32 %v1132, %v1557
      %v1670 = vadd.f32 %v1137, %v1562
      %v1671 = vadd.f32 %v1140, %v1565
      %v1672 = vadd.f32 %v1145, %v1570
      %v1673 = vadd.f32 %v1148, %v1573
      %v1674 = vadd.f32 %v1153, %v1578
      %v1675 = vadd.f32 %v1156, %v1581
      %v1676 = vadd.f32 %v1161, %v1586
      %v1677 = vadd.f32 %v1164, %v1589
      %v1678 = vadd.f32 %v1169, %v1594
      %v1679 = vadd.f32 %v1172, %v1597
      %v1680 = vadd.f32 %v1177, %v1602
      %v1681 = vadd.f32 %v1180, %v1605
      %v1682 = vadd.f32 %v1185, %v1610
      %v1683 = vadd.f32 %v1188, %v1613
      %v1684 = vadd.f32 %v1193, %v1618
      %v1685 = vadd.f32 %v1196, %v1621
      %v1686 = vadd.f32 %v1201, %v1626
      %v1687 = vadd.f32 %v1204, %v1629
      %v1688 = vadd.f32 %v1209, %v1634
      %v1689 = vadd.f32 %v1212, %v1637
      %v1690 = vadd.f32 %v1217, %v1642
      %v1691 = vadd.f32 %v1220, %v1645
      %v1692 = vadd.f32 %v1225, %v1650
      %v1693 = vadd.f32 %v1228, %v1653
      %v1694 = vadd.f32 %v1233, %v1658
      %v1695 = vadd.f32 %v1236, %v1661
      %s1696 = sadd.s32 %s243, 1
      %s1697 = smul.u32 %s1696, 3
      %s1698 = smul.addr %s1697, 4
      %s1699 = scalar_lea.vmem %s220, %s1698
      %v1700 = vld [vmem:[%s1699] sm:$0xf]
      %v1701 = vld [vmem:[%s1699 + $0x4] sm:$0xf]
      %v1702 = vld [vmem:[%s1699 + $0xc] sm:$0xf]
      %v1703 = vld [vmem:[%s1699 + $0x10] sm:$0xf]
      %v1704 = vld [vmem:[%s1699 + $0x18] sm:$0xf]
      %v1705 = vld [vmem:[%s1699 + $0x1c] sm:$0xf]
      %v1706 = vld [vmem:[%s1699 + $0x24] sm:$0xf]
      %v1707 = vld [vmem:[%s1699 + $0x28] sm:$0xf]
      %v1708 = vld [vmem:[%s1699 + $0x30] sm:$0xf]
      %v1709 = vld [vmem:[%s1699 + $0x34] sm:$0xf]
      %v1710 = vld [vmem:[%s1699 + $0x3c] sm:$0xf]
      %v1711 = vld [vmem:[%s1699 + $0x40] sm:$0xf]
      %v1712 = vld [vmem:[%s1699 + $0x48] sm:$0xf]
      %v1713 = vld [vmem:[%s1699 + $0x4c] sm:$0xf]
      %v1714 = vld [vmem:[%s1699 + $0x54] sm:$0xf]
      %v1715 = vld [vmem:[%s1699 + $0x58] sm:$0xf]
      %v1716 = vld [vmem:[%s1699 + $0x60] sm:$0xf]
      %v1717 = vld [vmem:[%s1699 + $0x64] sm:$0xf]
      %v1718 = vld [vmem:[%s1699 + $0x6c] sm:$0xf]
      %v1719 = vld [vmem:[%s1699 + $0x70] sm:$0xf]
      %v1720 = vld [vmem:[%s1699 + $0x78] sm:$0xf]
      %v1721 = vld [vmem:[%s1699 + $0x7c] sm:$0xf]
      %v1722 = vld [vmem:[%s1699 + $0x84] sm:$0xf]
      %v1723 = vld [vmem:[%s1699 + $0x88] sm:$0xf]
      %v1724 = vld [vmem:[%s1699 + $0x90] sm:$0xf]
      %v1725 = vld [vmem:[%s1699 + $0x94] sm:$0xf]
      %v1726 = vld [vmem:[%s1699 + $0x9c] sm:$0xf]
      %v1727 = vld [vmem:[%s1699 + $0xa0] sm:$0xf]
      %v1728 = vld [vmem:[%s1699 + $0xa8] sm:$0xf]
      %v1729 = vld [vmem:[%s1699 + $0xac] sm:$0xf]
      %v1730 = vld [vmem:[%s1699 + $0xb4] sm:$0xf]
      %v1731 = vld [vmem:[%s1699 + $0xb8] sm:$0xf]
      %s1732 = scalar_lea.vmem %s224, 6
      %v1733 = vld [vmem:[%s1732] sm:$0x3]
      %v1766 = vunpack.c.l.b16 %v1700
      %v1767 = vunpack.c.l.b16 %v1701
      %v1768 = vunpack.c.l.b16 %v1702
      %v1769 = vunpack.c.l.b16 %v1703
      %v1770 = vunpack.c.l.b16 %v1704
      %v1771 = vunpack.c.l.b16 %v1705
      %v1772 = vunpack.c.l.b16 %v1706
      %v1773 = vunpack.c.l.b16 %v1707
      %v1774 = vunpack.c.l.b16 %v1708
      %v1775 = vunpack.c.l.b16 %v1709
      %v1776 = vunpack.c.l.b16 %v1710
      %v1777 = vunpack.c.l.b16 %v1711
      %v1778 = vunpack.c.l.b16 %v1712
      %v1779 = vunpack.c.l.b16 %v1713
      %v1780 = vunpack.c.l.b16 %v1714
      %v1781 = vunpack.c.l.b16 %v1715
      %v1782 = vunpack.c.l.b16 %v1716
      %v1783 = vunpack.c.l.b16 %v1717
      %v1784 = vunpack.c.l.b16 %v1718
      %v1785 = vunpack.c.l.b16 %v1719
      %v1786 = vunpack.c.l.b16 %v1720
      %v1787 = vunpack.c.l.b16 %v1721
      %v1788 = vunpack.c.l.b16 %v1722
      %v1789 = vunpack.c.l.b16 %v1723
      %v1790 = vunpack.c.l.b16 %v1724
      %v1791 = vunpack.c.l.b16 %v1725
      %v1792 = vunpack.c.l.b16 %v1726
      %v1793 = vunpack.c.l.b16 %v1727
      %v1794 = vunpack.c.l.b16 %v1728
      %v1795 = vunpack.c.l.b16 %v1729
      %v1796 = vunpack.c.l.b16 %v1730
      %v1797 = vunpack.c.l.b16 %v1731
      %v1798 = vpack.c.b16 %v1767, %v1766
      %v1799 = vpack.c.b16 %v1769, %v1768
      %v1800 = vpack.c.b16 %v1771, %v1770
      %v1801 = vpack.c.b16 %v1773, %v1772
      %v1802 = vpack.c.b16 %v1775, %v1774
      %v1803 = vpack.c.b16 %v1777, %v1776
      %v1804 = vpack.c.b16 %v1779, %v1778
      %v1805 = vpack.c.b16 %v1781, %v1780
      %v1806 = vpack.c.b16 %v1783, %v1782
      %v1807 = vpack.c.b16 %v1785, %v1784
      %v1808 = vpack.c.b16 %v1787, %v1786
      %v1809 = vpack.c.b16 %v1789, %v1788
      %v1810 = vpack.c.b16 %v1791, %v1790
      %v1811 = vpack.c.b16 %v1793, %v1792
      %v1812 = vpack.c.b16 %v1795, %v1794
      %v1813 = vpack.c.b16 %v1797, %v1796
      %v1815 = vsel %vm733, %v1798, 0
      %v1818 = vsel %vm733, %v1799, 0
      %v1821 = vsel %vm733, %v1800, 0
      %v1824 = vsel %vm733, %v1801, 0
      %v1827 = vsel %vm733, %v1802, 0
      %v1830 = vsel %vm733, %v1803, 0
      %v1833 = vsel %vm733, %v1804, 0
      %v1836 = vsel %vm733, %v1805, 0
      %v1839 = vsel %vm733, %v1806, 0
      %v1842 = vsel %vm733, %v1807, 0
      %v1845 = vsel %vm733, %v1808, 0
      %v1848 = vsel %vm733, %v1809, 0
      %v1851 = vsel %vm733, %v1810, 0
      %v1854 = vsel %vm733, %v1811, 0
      %v1857 = vsel %vm733, %v1812, 0
      %v1860 = vsel %vm733, %v1813, 0
      %v1863 = vsel %vm782, %v1733, 0
      %1865 = vmatprep.subr.bf16.mxu0 0
      %1866 = vmatpush1.bf16.msra.mxu0 0
      %1867 = vmatprep.subr.bf16.mxu0 0
      %1868 = vmatpush1.bf16.msra.mxu0 0
      %1869 = vmatprep.subr.bf16.mxu0 0
      %1870 = vmatpush1.bf16.msra.mxu0 0
      %1871 = vmatprep.subr.bf16.mxu0 0
      %1872 = vmatpush1.bf16.msra.mxu0 0
      %1873 = vmatprep.subr.bf16.mxu0 0
      %1874 = vmatpush1.bf16.msra.mxu0 0
      %1875 = vmatprep.subr.bf16.mxu0 0
      %1876 = vmatpush1.bf16.msra.mxu0 0
      %1877 = vmatprep.subr.bf16.mxu0 0
      %1878 = vmatpush1.bf16.msra.mxu0 0
      %1879 = vmatprep.subr.bf16.mxu0 0
      %1880 = vmatpush1.bf16.msra.mxu0 %v1863
      %1881 = vmatprep.subr.bf16.mxu0 0
      %1882 = vmatpush2.bf16.msra.mxu0 0
      %1883 = vmatprep.subr.bf16.mxu0 0
      %1884 = vmatpush2.bf16.msra.mxu0 0
      %1885 = vmatprep.subr.bf16.mxu0 0
      %1886 = vmatpush2.bf16.msra.mxu0 0
      %1887 = vmatprep.subr.bf16.mxu0 0
      %1888 = vmatpush2.bf16.msra.mxu0 0
      %1889 = vmatprep.subr.bf16.mxu0 0
      %1890 = vmatpush2.bf16.msra.mxu0 0
      %1891 = vmatprep.subr.bf16.mxu0 0
      %1892 = vmatpush2.bf16.msra.mxu0 0
      %1893 = vmatprep.subr.bf16.mxu0 0
      %1894 = vmatpush2.bf16.msra.mxu0 0
      %1895 = vmatprep.subr.bf16.mxu0 0
      %1896 = vmatpush2.bf16.msra.mxu0 0
      %1897 = vmatprep.mubr.bf16.mxu0 0
      %1898 = vmatmul.mubr.bf16.gmra.mxu0 %v1815
      %v1899 = vpop.f32.mrf.mxu0
      %v1900 = vadd.f32 0.0, %v1899
      %v1901 = vpop.f32.mrf.mxu0
      %v1902 = vpop.f32.mrf.mxu0
      %v1903 = vadd.f32 0.0, %v1902
      %v1904 = vpop.f32.mrf.mxu0
      %1905 = vmatprep.mubr.bf16.mxu0 0
      %1906 = vmatmul.mubr.bf16.gmra.mxu0 %v1818
      %v1907 = vpop.f32.mrf.mxu0
      %v1908 = vadd.f32 0.0, %v1907
      %v1909 = vpop.f32.mrf.mxu0
      %v1910 = vpop.f32.mrf.mxu0
      %v1911 = vadd.f32 0.0, %v1910
      %v1912 = vpop.f32.mrf.mxu0
      %1913 = vmatprep.mubr.bf16.mxu0 0
      %1914 = vmatmul.mubr.bf16.gmra.mxu0 %v1821
      %v1915 = vpop.f32.mrf.mxu0
      %v1916 = vadd.f32 0.0, %v1915
      %v1917 = vpop.f32.mrf.mxu0
      %v1918 = vpop.f32.mrf.mxu0
      %v1919 = vadd.f32 0.0, %v1918
      %v1920 = vpop.f32.mrf.mxu0
      %1921 = vmatprep.mubr.bf16.mxu0 0
      %1922 = vmatmul.mubr.bf16.gmra.mxu0 %v1824
      %v1923 = vpop.f32.mrf.mxu0
      %v1924 = vadd.f32 0.0, %v1923
      %v1925 = vpop.f32.mrf.mxu0
      %v1926 = vpop.f32.mrf.mxu0
      %v1927 = vadd.f32 0.0, %v1926
      %v1928 = vpop.f32.mrf.mxu0
      %1929 = vmatprep.mubr.bf16.mxu0 0
      %1930 = vmatmul.mubr.bf16.gmra.mxu0 %v1827
      %v1931 = vpop.f32.mrf.mxu0
      %v1932 = vadd.f32 0.0, %v1931
      %v1933 = vpop.f32.mrf.mxu0
      %v1934 = vpop.f32.mrf.mxu0
      %v1935 = vadd.f32 0.0, %v1934
      %v1936 = vpop.f32.mrf.mxu0
      %1937 = vmatprep.mubr.bf16.mxu0 0
      %1938 = vmatmul.mubr.bf16.gmra.mxu0 %v1830
      %v1939 = vpop.f32.mrf.mxu0
      %v1940 = vadd.f32 0.0, %v1939
      %v1941 = vpop.f32.mrf.mxu0
      %v1942 = vpop.f32.mrf.mxu0
      %v1943 = vadd.f32 0.0, %v1942
      %v1944 = vpop.f32.mrf.mxu0
      %1945 = vmatprep.mubr.bf16.mxu0 0
      %1946 = vmatmul.mubr.bf16.gmra.mxu0 %v1833
      %v1947 = vpop.f32.mrf.mxu0
      %v1948 = vadd.f32 0.0, %v1947
      %v1949 = vpop.f32.mrf.mxu0
      %v1950 = vpop.f32.mrf.mxu0
      %v1951 = vadd.f32 0.0, %v1950
      %v1952 = vpop.f32.mrf.mxu0
      %1953 = vmatprep.mubr.bf16.mxu0 0
      %1954 = vmatmul.mubr.bf16.gmra.mxu0 %v1836
      %v1955 = vpop.f32.mrf.mxu0
      %v1956 = vadd.f32 0.0, %v1955
      %v1957 = vpop.f32.mrf.mxu0
      %v1958 = vpop.f32.mrf.mxu0
      %v1959 = vadd.f32 0.0, %v1958
      %v1960 = vpop.f32.mrf.mxu0
      %1961 = vmatprep.mubr.bf16.mxu0 0
      %1962 = vmatmul.mubr.bf16.gmra.mxu0 %v1839
      %v1963 = vpop.f32.mrf.mxu0
      %v1964 = vadd.f32 0.0, %v1963
      %v1965 = vpop.f32.mrf.mxu0
      %v1966 = vpop.f32.mrf.mxu0
      %v1967 = vadd.f32 0.0, %v1966
      %v1968 = vpop.f32.mrf.mxu0
      %1969 = vmatprep.mubr.bf16.mxu0 0
      %1970 = vmatmul.mubr.bf16.gmra.mxu0 %v1842
      %v1971 = vpop.f32.mrf.mxu0
      %v1972 = vadd.f32 0.0, %v1971
      %v1973 = vpop.f32.mrf.mxu0
      %v1974 = vpop.f32.mrf.mxu0
      %v1975 = vadd.f32 0.0, %v1974
      %v1976 = vpop.f32.mrf.mxu0
      %1977 = vmatprep.mubr.bf16.mxu0 0
      %1978 = vmatmul.mubr.bf16.gmra.mxu0 %v1845
      %v1979 = vpop.f32.mrf.mxu0
      %v1980 = vadd.f32 0.0, %v1979
      %v1981 = vpop.f32.mrf.mxu0
      %v1982 = vpop.f32.mrf.mxu0
      %v1983 = vadd.f32 0.0, %v1982
      %v1984 = vpop.f32.mrf.mxu0
      %1985 = vmatprep.mubr.bf16.mxu0 0
      %1986 = vmatmul.mubr.bf16.gmra.mxu0 %v1848
      %v1987 = vpop.f32.mrf.mxu0
      %v1988 = vadd.f32 0.0, %v1987
      %v1989 = vpop.f32.mrf.mxu0
      %v1990 = vpop.f32.mrf.mxu0
      %v1991 = vadd.f32 0.0, %v1990
      %v1992 = vpop.f32.mrf.mxu0
      %1993 = vmatprep.mubr.bf16.mxu0 0
      %1994 = vmatmul.mubr.bf16.gmra.mxu0 %v1851
      %v1995 = vpop.f32.mrf.mxu0
      %v1996 = vadd.f32 0.0, %v1995
      %v1997 = vpop.f32.mrf.mxu0
      %v1998 = vpop.f32.mrf.mxu0
      %v1999 = vadd.f32 0.0, %v1998
      %v2000 = vpop.f32.mrf.mxu0
      %2001 = vmatprep.mubr.bf16.mxu0 0
      %2002 = vmatmul.mubr.bf16.gmra.mxu0 %v1854
      %v2003 = vpop.f32.mrf.mxu0
      %v2004 = vadd.f32 0.0, %v2003
      %v2005 = vpop.f32.mrf.mxu0
      %v2006 = vpop.f32.mrf.mxu0
      %v2007 = vadd.f32 0.0, %v2006
      %v2008 = vpop.f32.mrf.mxu0
      %2009 = vmatprep.mubr.bf16.mxu0 0
      %2010 = vmatmul.mubr.bf16.gmra.mxu0 %v1857
      %v2011 = vpop.f32.mrf.mxu0
      %v2012 = vadd.f32 0.0, %v2011
      %v2013 = vpop.f32.mrf.mxu0
      %v2014 = vpop.f32.mrf.mxu0
      %v2015 = vadd.f32 0.0, %v2014
      %v2016 = vpop.f32.mrf.mxu0
      %2017 = vmatprep.mubr.bf16.mxu0 0
      %2018 = vmatmul.mubr.bf16.gmra.mxu0 %v1860
      %v2019 = vpop.f32.mrf.mxu0
      %v2020 = vadd.f32 0.0, %v2019
      %v2021 = vpop.f32.mrf.mxu0
      %v2022 = vpop.f32.mrf.mxu0
      %v2023 = vadd.f32 0.0, %v2022
      %v2024 = vpop.f32.mrf.mxu0
      %2025 = vdwg.mxu0
      %v2026 = vadd.f32 %v1664, %v1900
      %v2027 = vadd.f32 %v1665, %v1903
      %v2028 = vadd.f32 %v1666, %v1908
      %v2029 = vadd.f32 %v1667, %v1911
      %v2030 = vadd.f32 %v1668, %v1916
      %v2031 = vadd.f32 %v1669, %v1919
      %v2032 = vadd.f32 %v1670, %v1924
      %v2033 = vadd.f32 %v1671, %v1927
      %v2034 = vadd.f32 %v1672, %v1932
      %v2035 = vadd.f32 %v1673, %v1935
      %v2036 = vadd.f32 %v1674, %v1940
      %v2037 = vadd.f32 %v1675, %v1943
      %v2038 = vadd.f32 %v1676, %v1948
      %v2039 = vadd.f32 %v1677, %v1951
      %v2040 = vadd.f32 %v1678, %v1956
      %v2041 = vadd.f32 %v1679, %v1959
      %v2042 = vadd.f32 %v1680, %v1964
      %v2043 = vadd.f32 %v1681, %v1967
      %v2044 = vadd.f32 %v1682, %v1972
      %v2045 = vadd.f32 %v1683, %v1975
      %v2046 = vadd.f32 %v1684, %v1980
      %v2047 = vadd.f32 %v1685, %v1983
      %v2048 = vadd.f32 %v1686, %v1988
      %v2049 = vadd.f32 %v1687, %v1991
      %v2050 = vadd.f32 %v1688, %v1996
      %v2051 = vadd.f32 %v1689, %v1999
      %v2052 = vadd.f32 %v1690, %v2004
      %v2053 = vadd.f32 %v1691, %v2007
      %v2054 = vadd.f32 %v1692, %v2012
      %v2055 = vadd.f32 %v1693, %v2015
      %v2056 = vadd.f32 %v1694, %v2020
      %v2057 = vadd.f32 %v1695, %v2023
      %v2058 = vld [vmem:[%s1699] sm:$0xf]
      %v2059 = vld [vmem:[%s1699 + $0x4] sm:$0xf]
      %v2060 = vld [vmem:[%s1699 + $0x8] sm:$0x1]
      %v2061 = vld [vmem:[%s1699 + $0xc] sm:$0xf]
      %v2062 = vld [vmem:[%s1699 + $0x10] sm:$0xf]
      %v2063 = vld [vmem:[%s1699 + $0x14] sm:$0x1]
      %v2064 = vld [vmem:[%s1699 + $0x18] sm:$0xf]
      %v2065 = vld [vmem:[%s1699 + $0x1c] sm:$0xf]
      %v2066 = vld [vmem:[%s1699 + $0x20] sm:$0x1]
      %v2067 = vld [vmem:[%s1699 + $0x24] sm:$0xf]
      %v2068 = vld [vmem:[%s1699 + $0x28] sm:$0xf]
      %v2069 = vld [vmem:[%s1699 + $0x2c] sm:$0x1]
      %v2070 = vld [vmem:[%s1699 + $0x30] sm:$0xf]
      %v2071 = vld [vmem:[%s1699 + $0x34] sm:$0xf]
      %v2072 = vld [vmem:[%s1699 + $0x38] sm:$0x1]
      %v2073 = vld [vmem:[%s1699 + $0x3c] sm:$0xf]
      %v2074 = vld [vmem:[%s1699 + $0x40] sm:$0xf]
      %v2075 = vld [vmem:[%s1699 + $0x44] sm:$0x1]
      %v2076 = vld [vmem:[%s1699 + $0x48] sm:$0xf]
      %v2077 = vld [vmem:[%s1699 + $0x4c] sm:$0xf]
      %v2078 = vld [vmem:[%s1699 + $0x50] sm:$0x1]
      %v2079 = vld [vmem:[%s1699 + $0x54] sm:$0xf]
      %v2080 = vld [vmem:[%s1699 + $0x58] sm:$0xf]
      %v2081 = vld [vmem:[%s1699 + $0x5c] sm:$0x1]
      %v2082 = vld [vmem:[%s1699 + $0x60] sm:$0xf]
      %v2083 = vld [vmem:[%s1699 + $0x64] sm:$0xf]
      %v2084 = vld [vmem:[%s1699 + $0x68] sm:$0x1]
      %v2085 = vld [vmem:[%s1699 + $0x6c] sm:$0xf]
      %v2086 = vld [vmem:[%s1699 + $0x70] sm:$0xf]
      %v2087 = vld [vmem:[%s1699 + $0x74] sm:$0x1]
      %v2088 = vld [vmem:[%s1699 + $0x78] sm:$0xf]
      %v2089 = vld [vmem:[%s1699 + $0x7c] sm:$0xf]
      %v2090 = vld [vmem:[%s1699 + $0x80] sm:$0x1]
      %v2091 = vld [vmem:[%s1699 + $0x84] sm:$0xf]
      %v2092 = vld [vmem:[%s1699 + $0x88] sm:$0xf]
      %v2093 = vld [vmem:[%s1699 + $0x8c] sm:$0x1]
      %v2094 = vld [vmem:[%s1699 + $0x90] sm:$0xf]
      %v2095 = vld [vmem:[%s1699 + $0x94] sm:$0xf]
      %v2096 = vld [vmem:[%s1699 + $0x98] sm:$0x1]
      %v2097 = vld [vmem:[%s1699 + $0x9c] sm:$0xf]
      %v2098 = vld [vmem:[%s1699 + $0xa0] sm:$0xf]
      %v2099 = vld [vmem:[%s1699 + $0xa4] sm:$0x1]
      %v2100 = vld [vmem:[%s1699 + $0xa8] sm:$0xf]
      %v2101 = vld [vmem:[%s1699 + $0xac] sm:$0xf]
      %v2102 = vld [vmem:[%s1699 + $0xb0] sm:$0x1]
      %v2103 = vld [vmem:[%s1699 + $0xb4] sm:$0xf]
      %v2104 = vld [vmem:[%s1699 + $0xb8] sm:$0xf]
      %v2105 = vld [vmem:[%s1699 + $0xbc] sm:$0x1]
      %v2107 = vshrl.u32 %v2058, 16
      %v2109 = vrot.slane %v2107, 4
      %v2110 = vshll.u32 %v2058, 16
      %v2112 = vrot.slane %v2110, 5
      %v2113 = vor.u32 %v2109, %v2112
      %v2114 = vrot.slane %v2113, 4
      %v2116 = vshll.u32 %v2059, 16
      %v2118 = vrot.slane %v2116, 5
      %v2119 = vsel %vm298, %v2114, %v2118
      %v2120 = vshrl.u32 %v2059, 16
      %v2122 = vrot.slane %v2120, 4
      %v2123 = vor.u32 %v2122, %v2118
      %v2124 = vrot.slane %v2123, 4
      %v2126 = vshll.u32 %v2060, 16
      %v2128 = vrot.slane %v2126, 5
      %v2129 = vsel %vm298, %v2124, %v2128
      %v2131 = vshrl.u32 %v2061, 16
      %v2133 = vrot.slane %v2131, 4
      %v2134 = vshll.u32 %v2061, 16
      %v2136 = vrot.slane %v2134, 5
      %v2137 = vor.u32 %v2133, %v2136
      %v2138 = vrot.slane %v2137, 4
      %v2140 = vshll.u32 %v2062, 16
      %v2142 = vrot.slane %v2140, 5
      %v2143 = vsel %vm298, %v2138, %v2142
      %v2144 = vshrl.u32 %v2062, 16
      %v2146 = vrot.slane %v2144, 4
      %v2147 = vor.u32 %v2146, %v2142
      %v2148 = vrot.slane %v2147, 4
      %v2150 = vshll.u32 %v2063, 16
      %v2152 = vrot.slane %v2150, 5
      %v2153 = vsel %vm298, %v2148, %v2152
      %v2155 = vshrl.u32 %v2064, 16
      %v2157 = vrot.slane %v2155, 4
      %v2158 = vshll.u32 %v2064, 16
      %v2160 = vrot.slane %v2158, 5
      %v2161 = vor.u32 %v2157, %v2160
      %v2162 = vrot.slane %v2161, 4
      %v2164 = vshll.u32 %v2065, 16
      %v2166 = vrot.slane %v2164, 5
      %v2167 = vsel %vm298, %v2162, %v2166
      %v2168 = vshrl.u32 %v2065, 16
      %v2170 = vrot.slane %v2168, 4
      %v2171 = vor.u32 %v2170, %v2166
      %v2172 = vrot.slane %v2171, 4
      %v2174 = vshll.u32 %v2066, 16
      %v2176 = vrot.slane %v2174, 5
      %v2177 = vsel %vm298, %v2172, %v2176
      %v2179 = vshrl.u32 %v2067, 16
      %v2181 = vrot.slane %v2179, 4
      %v2182 = vshll.u32 %v2067, 16
      %v2184 = vrot.slane %v2182, 5
      %v2185 = vor.u32 %v2181, %v2184
      %v2186 = vrot.slane %v2185, 4
      %v2188 = vshll.u32 %v2068, 16
      %v2190 = vrot.slane %v2188, 5
      %v2191 = vsel %vm298, %v2186, %v2190
      %v2192 = vshrl.u32 %v2068, 16
      %v2194 = vrot.slane %v2192, 4
      %v2195 = vor.u32 %v2194, %v2190
      %v2196 = vrot.slane %v2195, 4
      %v2198 = vshll.u32 %v2069, 16
      %v2200 = vrot.slane %v2198, 5
      %v2201 = vsel %vm298, %v2196, %v2200
      %v2203 = vshrl.u32 %v2070, 16
      %v2205 = vrot.slane %v2203, 4
      %v2206 = vshll.u32 %v2070, 16
      %v2208 = vrot.slane %v2206, 5
      %v2209 = vor.u32 %v2205, %v2208
      %v2210 = vrot.slane %v2209, 4
      %v2212 = vshll.u32 %v2071, 16
      %v2214 = vrot.slane %v2212, 5
      %v2215 = vsel %vm298, %v2210, %v2214
      %v2216 = vshrl.u32 %v2071, 16
      %v2218 = vrot.slane %v2216, 4
      %v2219 = vor.u32 %v2218, %v2214
      %v2220 = vrot.slane %v2219, 4
      %v2222 = vshll.u32 %v2072, 16
      %v2224 = vrot.slane %v2222, 5
      %v2225 = vsel %vm298, %v2220, %v2224
      %v2227 = vshrl.u32 %v2073, 16
      %v2229 = vrot.slane %v2227, 4
      %v2230 = vshll.u32 %v2073, 16
      %v2232 = vrot.slane %v2230, 5
      %v2233 = vor.u32 %v2229, %v2232
      %v2234 = vrot.slane %v2233, 4
      %v2236 = vshll.u32 %v2074, 16
      %v2238 = vrot.slane %v2236, 5
      %v2239 = vsel %vm298, %v2234, %v2238
      %v2240 = vshrl.u32 %v2074, 16
      %v2242 = vrot.slane %v2240, 4
      %v2243 = vor.u32 %v2242, %v2238
      %v2244 = vrot.slane %v2243, 4
      %v2246 = vshll.u32 %v2075, 16
      %v2248 = vrot.slane %v2246, 5
      %v2249 = vsel %vm298, %v2244, %v2248
      %v2251 = vshrl.u32 %v2076, 16
      %v2253 = vrot.slane %v2251, 4
      %v2254 = vshll.u32 %v2076, 16
      %v2256 = vrot.slane %v2254, 5
      %v2257 = vor.u32 %v2253, %v2256
      %v2258 = vrot.slane %v2257, 4
      %v2260 = vshll.u32 %v2077, 16
      %v2262 = vrot.slane %v2260, 5
      %v2263 = vsel %vm298, %v2258, %v2262
      %v2264 = vshrl.u32 %v2077, 16
      %v2266 = vrot.slane %v2264, 4
      %v2267 = vor.u32 %v2266, %v2262
      %v2268 = vrot.slane %v2267, 4
      %v2270 = vshll.u32 %v2078, 16
      %v2272 = vrot.slane %v2270, 5
      %v2273 = vsel %vm298, %v2268, %v2272
      %v2275 = vshrl.u32 %v2079, 16
      %v2277 = vrot.slane %v2275, 4
      %v2278 = vshll.u32 %v2079, 16
      %v2280 = vrot.slane %v2278, 5
      %v2281 = vor.u32 %v2277, %v2280
      %v2282 = vrot.slane %v2281, 4
      %v2284 = vshll.u32 %v2080, 16
      %v2286 = vrot.slane %v2284, 5
      %v2287 = vsel %vm298, %v2282, %v2286
      %v2288 = vshrl.u32 %v2080, 16
      %v2290 = vrot.slane %v2288, 4
      %v2291 = vor.u32 %v2290, %v2286
      %v2292 = vrot.slane %v2291, 4
      %v2294 = vshll.u32 %v2081, 16
      %v2296 = vrot.slane %v2294, 5
      %v2297 = vsel %vm298, %v2292, %v2296
      %v2299 = vshrl.u32 %v2082, 16
      %v2301 = vrot.slane %v2299, 4
      %v2302 = vshll.u32 %v2082, 16
      %v2304 = vrot.slane %v2302, 5
      %v2305 = vor.u32 %v2301, %v2304
      %v2306 = vrot.slane %v2305, 4
      %v2308 = vshll.u32 %v2083, 16
      %v2310 = vrot.slane %v2308, 5
      %v2311 = vsel %vm298, %v2306, %v2310
      %v2312 = vshrl.u32 %v2083, 16
      %v2314 = vrot.slane %v2312, 4
      %v2315 = vor.u32 %v2314, %v2310
      %v2316 = vrot.slane %v2315, 4
      %v2318 = vshll.u32 %v2084, 16
      %v2320 = vrot.slane %v2318, 5
      %v2321 = vsel %vm298, %v2316, %v2320
      %v2323 = vshrl.u32 %v2085, 16
      %v2325 = vrot.slane %v2323, 4
      %v2326 = vshll.u32 %v2085, 16
      %v2328 = vrot.slane %v2326, 5
      %v2329 = vor.u32 %v2325, %v2328
      %v2330 = vrot.slane %v2329, 4
      %v2332 = vshll.u32 %v2086, 16
      %v2334 = vrot.slane %v2332, 5
      %v2335 = vsel %vm298, %v2330, %v2334
      %v2336 = vshrl.u32 %v2086, 16
      %v2338 = vrot.slane %v2336, 4
      %v2339 = vor.u32 %v2338, %v2334
      %v2340 = vrot.slane %v2339, 4
      %v2342 = vshll.u32 %v2087, 16
      %v2344 = vrot.slane %v2342, 5
      %v2345 = vsel %vm298, %v2340, %v2344
      %v2347 = vshrl.u32 %v2088, 16
      %v2349 = vrot.slane %v2347, 4
      %v2350 = vshll.u32 %v2088, 16
      %v2352 = vrot.slane %v2350, 5
      %v2353 = vor.u32 %v2349, %v2352
      %v2354 = vrot.slane %v2353, 4
      %v2356 = vshll.u32 %v2089, 16
      %v2358 = vrot.slane %v2356, 5
      %v2359 = vsel %vm298, %v2354, %v2358
      %v2360 = vshrl.u32 %v2089, 16
      %v2362 = vrot.slane %v2360, 4
      %v2363 = vor.u32 %v2362, %v2358
      %v2364 = vrot.slane %v2363, 4
      %v2366 = vshll.u32 %v2090, 16
      %v2368 = vrot.slane %v2366, 5
      %v2369 = vsel %vm298, %v2364, %v2368
      %v2371 = vshrl.u32 %v2091, 16
      %v2373 = vrot.slane %v2371, 4
      %v2374 = vshll.u32 %v2091, 16
      %v2376 = vrot.slane %v2374, 5
      %v2377 = vor.u32 %v2373, %v2376
      %v2378 = vrot.slane %v2377, 4
      %v2380 = vshll.u32 %v2092, 16
      %v2382 = vrot.slane %v2380, 5
      %v2383 = vsel %vm298, %v2378, %v2382
      %v2384 = vshrl.u32 %v2092, 16
      %v2386 = vrot.slane %v2384, 4
      %v2387 = vor.u32 %v2386, %v2382
      %v2388 = vrot.slane %v2387, 4
      %v2390 = vshll.u32 %v2093, 16
      %v2392 = vrot.slane %v2390, 5
      %v2393 = vsel %vm298, %v2388, %v2392
      %v2395 = vshrl.u32 %v2094, 16
      %v2397 = vrot.slane %v2395, 4
      %v2398 = vshll.u32 %v2094, 16
      %v2400 = vrot.slane %v2398, 5
      %v2401 = vor.u32 %v2397, %v2400
      %v2402 = vrot.slane %v2401, 4
      %v2404 = vshll.u32 %v2095, 16
      %v2406 = vrot.slane %v2404, 5
      %v2407 = vsel %vm298, %v2402, %v2406
      %v2408 = vshrl.u32 %v2095, 16
      %v2410 = vrot.slane %v2408, 4
      %v2411 = vor.u32 %v2410, %v2406
      %v2412 = vrot.slane %v2411, 4
      %v2414 = vshll.u32 %v2096, 16
      %v2416 = vrot.slane %v2414, 5
      %v2417 = vsel %vm298, %v2412, %v2416
      %v2419 = vshrl.u32 %v2097, 16
      %v2421 = vrot.slane %v2419, 4
      %v2422 = vshll.u32 %v2097, 16
      %v2424 = vrot.slane %v2422, 5
      %v2425 = vor.u32 %v2421, %v2424
      %v2426 = vrot.slane %v2425, 4
      %v2428 = vshll.u32 %v2098, 16
      %v2430 = vrot.slane %v2428, 5
      %v2431 = vsel %vm298, %v2426, %v2430
      %v2432 = vshrl.u32 %v2098, 16
      %v2434 = vrot.slane %v2432, 4
      %v2435 = vor.u32 %v2434, %v2430
      %v2436 = vrot.slane %v2435, 4
      %v2438 = vshll.u32 %v2099, 16
      %v2440 = vrot.slane %v2438, 5
      %v2441 = vsel %vm298, %v2436, %v2440
      %v2443 = vshrl.u32 %v2100, 16
      %v2445 = vrot.slane %v2443, 4
      %v2446 = vshll.u32 %v2100, 16
      %v2448 = vrot.slane %v2446, 5
      %v2449 = vor.u32 %v2445, %v2448
      %v2450 = vrot.slane %v2449, 4
      %v2452 = vshll.u32 %v2101, 16
      %v2454 = vrot.slane %v2452, 5
      %v2455 = vsel %vm298, %v2450, %v2454
      %v2456 = vshrl.u32 %v2101, 16
      %v2458 = vrot.slane %v2456, 4
      %v2459 = vor.u32 %v2458, %v2454
      %v2460 = vrot.slane %v2459, 4
      %v2462 = vshll.u32 %v2102, 16
      %v2464 = vrot.slane %v2462, 5
      %v2465 = vsel %vm298, %v2460, %v2464
      %v2467 = vshrl.u32 %v2103, 16
      %v2469 = vrot.slane %v2467, 4
      %v2470 = vshll.u32 %v2103, 16
      %v2472 = vrot.slane %v2470, 5
      %v2473 = vor.u32 %v2469, %v2472
      %v2474 = vrot.slane %v2473, 4
      %v2476 = vshll.u32 %v2104, 16
      %v2478 = vrot.slane %v2476, 5
      %v2479 = vsel %vm298, %v2474, %v2478
      %v2480 = vshrl.u32 %v2104, 16
      %v2482 = vrot.slane %v2480, 4
      %v2483 = vor.u32 %v2482, %v2478
      %v2484 = vrot.slane %v2483, 4
      %v2486 = vshll.u32 %v2105, 16
      %v2488 = vrot.slane %v2486, 5
      %v2489 = vsel %vm298, %v2484, %v2488
      %s2490 = scalar_lea.vmem %s224, 8
      %v2491 = vld [vmem:[%s2490] sm:$0x3]
      %v2492 = vunpack.c.l.b16 %v2119
      %v2493 = vunpack.c.l.b16 %v2129
      %v2494 = vunpack.c.l.b16 %v2143
      %v2495 = vunpack.c.l.b16 %v2153
      %v2496 = vunpack.c.l.b16 %v2167
      %v2497 = vunpack.c.l.b16 %v2177
      %v2498 = vunpack.c.l.b16 %v2191
      %v2499 = vunpack.c.l.b16 %v2201
      %v2500 = vunpack.c.l.b16 %v2215
      %v2501 = vunpack.c.l.b16 %v2225
      %v2502 = vunpack.c.l.b16 %v2239
      %v2503 = vunpack.c.l.b16 %v2249
      %v2504 = vunpack.c.l.b16 %v2263
      %v2505 = vunpack.c.l.b16 %v2273
      %v2506 = vunpack.c.l.b16 %v2287
      %v2507 = vunpack.c.l.b16 %v2297
      %v2508 = vunpack.c.l.b16 %v2311
      %v2509 = vunpack.c.l.b16 %v2321
      %v2510 = vunpack.c.l.b16 %v2335
      %v2511 = vunpack.c.l.b16 %v2345
      %v2512 = vunpack.c.l.b16 %v2359
      %v2513 = vunpack.c.l.b16 %v2369
      %v2514 = vunpack.c.l.b16 %v2383
      %v2515 = vunpack.c.l.b16 %v2393
      %v2516 = vunpack.c.l.b16 %v2407
      %v2517 = vunpack.c.l.b16 %v2417
      %v2518 = vunpack.c.l.b16 %v2431
      %v2519 = vunpack.c.l.b16 %v2441
      %v2520 = vunpack.c.l.b16 %v2455
      %v2521 = vunpack.c.l.b16 %v2465
      %v2522 = vunpack.c.l.b16 %v2479
      %v2523 = vunpack.c.l.b16 %v2489
      %v2524 = vpack.c.b16 %v2493, %v2492
      %v2525 = vpack.c.b16 %v2495, %v2494
      %v2526 = vpack.c.b16 %v2497, %v2496
      %v2527 = vpack.c.b16 %v2499, %v2498
      %v2528 = vpack.c.b16 %v2501, %v2500
      %v2529 = vpack.c.b16 %v2503, %v2502
      %v2530 = vpack.c.b16 %v2505, %v2504
      %v2531 = vpack.c.b16 %v2507, %v2506
      %v2532 = vpack.c.b16 %v2509, %v2508
      %v2533 = vpack.c.b16 %v2511, %v2510
      %v2534 = vpack.c.b16 %v2513, %v2512
      %v2535 = vpack.c.b16 %v2515, %v2514
      %v2536 = vpack.c.b16 %v2517, %v2516
      %v2537 = vpack.c.b16 %v2519, %v2518
      %v2538 = vpack.c.b16 %v2521, %v2520
      %v2539 = vpack.c.b16 %v2523, %v2522
      %v2541 = vsel %vm733, %v2524, 0
      %v2544 = vsel %vm733, %v2525, 0
      %v2547 = vsel %vm733, %v2526, 0
      %v2550 = vsel %vm733, %v2527, 0
      %v2553 = vsel %vm733, %v2528, 0
      %v2556 = vsel %vm733, %v2529, 0
      %v2559 = vsel %vm733, %v2530, 0
      %v2562 = vsel %vm733, %v2531, 0
      %v2565 = vsel %vm733, %v2532, 0
      %v2568 = vsel %vm733, %v2533, 0
      %v2571 = vsel %vm733, %v2534, 0
      %v2574 = vsel %vm733, %v2535, 0
      %v2577 = vsel %vm733, %v2536, 0
      %v2580 = vsel %vm733, %v2537, 0
      %v2583 = vsel %vm733, %v2538, 0
      %v2586 = vsel %vm733, %v2539, 0
      %v2589 = vsel %vm782, %v2491, 0
      %2591 = vmatprep.subr.bf16.mxu0 0
      %2592 = vmatpush1.bf16.msra.mxu0 0
      %2593 = vmatprep.subr.bf16.mxu0 0
      %2594 = vmatpush1.bf16.msra.mxu0 0
      %2595 = vmatprep.subr.bf16.mxu0 0
      %2596 = vmatpush1.bf16.msra.mxu0 0
      %2597 = vmatprep.subr.bf16.mxu0 0
      %2598 = vmatpush1.bf16.msra.mxu0 0
      %2599 = vmatprep.subr.bf16.mxu0 0
      %2600 = vmatpush1.bf16.msra.mxu0 0
      %2601 = vmatprep.subr.bf16.mxu0 0
      %2602 = vmatpush1.bf16.msra.mxu0 0
      %2603 = vmatprep.subr.bf16.mxu0 0
      %2604 = vmatpush1.bf16.msra.mxu0 0
      %2605 = vmatprep.subr.bf16.mxu0 0
      %2606 = vmatpush1.bf16.msra.mxu0 %v2589
      %2607 = vmatprep.subr.bf16.mxu0 0
      %2608 = vmatpush2.bf16.msra.mxu0 0
      %2609 = vmatprep.subr.bf16.mxu0 0
      %2610 = vmatpush2.bf16.msra.mxu0 0
      %2611 = vmatprep.subr.bf16.mxu0 0
      %2612 = vmatpush2.bf16.msra.mxu0 0
      %2613 = vmatprep.subr.bf16.mxu0 0
      %2614 = vmatpush2.bf16.msra.mxu0 0
      %2615 = vmatprep.subr.bf16.mxu0 0
      %2616 = vmatpush2.bf16.msra.mxu0 0
      %2617 = vmatprep.subr.bf16.mxu0 0
      %2618 = vmatpush2.bf16.msra.mxu0 0
      %2619 = vmatprep.subr.bf16.mxu0 0
      %2620 = vmatpush2.bf16.msra.mxu0 0
      %2621 = vmatprep.subr.bf16.mxu0 0
      %2622 = vmatpush2.bf16.msra.mxu0 0
      %2623 = vmatprep.mubr.bf16.mxu0 0
      %2624 = vmatmul.mubr.bf16.gmra.mxu0 %v2541
      %v2625 = vpop.f32.mrf.mxu0
      %v2626 = vadd.f32 0.0, %v2625
      %v2627 = vpop.f32.mrf.mxu0
      %v2628 = vpop.f32.mrf.mxu0
      %v2629 = vadd.f32 0.0, %v2628
      %v2630 = vpop.f32.mrf.mxu0
      %2631 = vmatprep.mubr.bf16.mxu0 0
      %2632 = vmatmul.mubr.bf16.gmra.mxu0 %v2544
      %v2633 = vpop.f32.mrf.mxu0
      %v2634 = vadd.f32 0.0, %v2633
      %v2635 = vpop.f32.mrf.mxu0
      %v2636 = vpop.f32.mrf.mxu0
      %v2637 = vadd.f32 0.0, %v2636
      %v2638 = vpop.f32.mrf.mxu0
      %2639 = vmatprep.mubr.bf16.mxu0 0
      %2640 = vmatmul.mubr.bf16.gmra.mxu0 %v2547
      %v2641 = vpop.f32.mrf.mxu0
      %v2642 = vadd.f32 0.0, %v2641
      %v2643 = vpop.f32.mrf.mxu0
      %v2644 = vpop.f32.mrf.mxu0
      %v2645 = vadd.f32 0.0, %v2644
      %v2646 = vpop.f32.mrf.mxu0
      %2647 = vmatprep.mubr.bf16.mxu0 0
      %2648 = vmatmul.mubr.bf16.gmra.mxu0 %v2550
      %v2649 = vpop.f32.mrf.mxu0
      %v2650 = vadd.f32 0.0, %v2649
      %v2651 = vpop.f32.mrf.mxu0
      %v2652 = vpop.f32.mrf.mxu0
      %v2653 = vadd.f32 0.0, %v2652
      %v2654 = vpop.f32.mrf.mxu0
      %2655 = vmatprep.mubr.bf16.mxu0 0
      %2656 = vmatmul.mubr.bf16.gmra.mxu0 %v2553
      %v2657 = vpop.f32.mrf.mxu0
      %v2658 = vadd.f32 0.0, %v2657
      %v2659 = vpop.f32.mrf.mxu0
      %v2660 = vpop.f32.mrf.mxu0
      %v2661 = vadd.f32 0.0, %v2660
      %v2662 = vpop.f32.mrf.mxu0
      %2663 = vmatprep.mubr.bf16.mxu0 0
      %2664 = vmatmul.mubr.bf16.gmra.mxu0 %v2556
      %v2665 = vpop.f32.mrf.mxu0
      %v2666 = vadd.f32 0.0, %v2665
      %v2667 = vpop.f32.mrf.mxu0
      %v2668 = vpop.f32.mrf.mxu0
      %v2669 = vadd.f32 0.0, %v2668
      %v2670 = vpop.f32.mrf.mxu0
      %2671 = vmatprep.mubr.bf16.mxu0 0
      %2672 = vmatmul.mubr.bf16.gmra.mxu0 %v2559
      %v2673 = vpop.f32.mrf.mxu0
      %v2674 = vadd.f32 0.0, %v2673
      %v2675 = vpop.f32.mrf.mxu0
      %v2676 = vpop.f32.mrf.mxu0
      %v2677 = vadd.f32 0.0, %v2676
      %v2678 = vpop.f32.mrf.mxu0
      %2679 = vmatprep.mubr.bf16.mxu0 0
      %2680 = vmatmul.mubr.bf16.gmra.mxu0 %v2562
      %v2681 = vpop.f32.mrf.mxu0
      %v2682 = vadd.f32 0.0, %v2681
      %v2683 = vpop.f32.mrf.mxu0
      %v2684 = vpop.f32.mrf.mxu0
      %v2685 = vadd.f32 0.0, %v2684
      %v2686 = vpop.f32.mrf.mxu0
      %2687 = vmatprep.mubr.bf16.mxu0 0
      %2688 = vmatmul.mubr.bf16.gmra.mxu0 %v2565
      %v2689 = vpop.f32.mrf.mxu0
      %v2690 = vadd.f32 0.0, %v2689
      %v2691 = vpop.f32.mrf.mxu0
      %v2692 = vpop.f32.mrf.mxu0
      %v2693 = vadd.f32 0.0, %v2692
      %v2694 = vpop.f32.mrf.mxu0
      %2695 = vmatprep.mubr.bf16.mxu0 0
      %2696 = vmatmul.mubr.bf16.gmra.mxu0 %v2568
      %v2697 = vpop.f32.mrf.mxu0
      %v2698 = vadd.f32 0.0, %v2697
      %v2699 = vpop.f32.mrf.mxu0
      %v2700 = vpop.f32.mrf.mxu0
      %v2701 = vadd.f32 0.0, %v2700
      %v2702 = vpop.f32.mrf.mxu0
      %2703 = vmatprep.mubr.bf16.mxu0 0
      %2704 = vmatmul.mubr.bf16.gmra.mxu0 %v2571
      %v2705 = vpop.f32.mrf.mxu0
      %v2706 = vadd.f32 0.0, %v2705
      %v2707 = vpop.f32.mrf.mxu0
      %v2708 = vpop.f32.mrf.mxu0
      %v2709 = vadd.f32 0.0, %v2708
      %v2710 = vpop.f32.mrf.mxu0
      %2711 = vmatprep.mubr.bf16.mxu0 0
      %2712 = vmatmul.mubr.bf16.gmra.mxu0 %v2574
      %v2713 = vpop.f32.mrf.mxu0
      %v2714 = vadd.f32 0.0, %v2713
      %v2715 = vpop.f32.mrf.mxu0
      %v2716 = vpop.f32.mrf.mxu0
      %v2717 = vadd.f32 0.0, %v2716
      %v2718 = vpop.f32.mrf.mxu0
      %2719 = vmatprep.mubr.bf16.mxu0 0
      %2720 = vmatmul.mubr.bf16.gmra.mxu0 %v2577
      %v2721 = vpop.f32.mrf.mxu0
      %v2722 = vadd.f32 0.0, %v2721
      %v2723 = vpop.f32.mrf.mxu0
      %v2724 = vpop.f32.mrf.mxu0
      %v2725 = vadd.f32 0.0, %v2724
      %v2726 = vpop.f32.mrf.mxu0
      %2727 = vmatprep.mubr.bf16.mxu0 0
      %2728 = vmatmul.mubr.bf16.gmra.mxu0 %v2580
      %v2729 = vpop.f32.mrf.mxu0
      %v2730 = vadd.f32 0.0, %v2729
      %v2731 = vpop.f32.mrf.mxu0
      %v2732 = vpop.f32.mrf.mxu0
      %v2733 = vadd.f32 0.0, %v2732
      %v2734 = vpop.f32.mrf.mxu0
      %2735 = vmatprep.mubr.bf16.mxu0 0
      %2736 = vmatmul.mubr.bf16.gmra.mxu0 %v2583
      %v2737 = vpop.f32.mrf.mxu0
      %v2738 = vadd.f32 0.0, %v2737
      %v2739 = vpop.f32.mrf.mxu0
      %v2740 = vpop.f32.mrf.mxu0
      %v2741 = vadd.f32 0.0, %v2740
      %v2742 = vpop.f32.mrf.mxu0
      %2743 = vmatprep.mubr.bf16.mxu0 0
      %2744 = vmatmul.mubr.bf16.gmra.mxu0 %v2586
      %v2745 = vpop.f32.mrf.mxu0
      %v2746 = vadd.f32 0.0, %v2745
      %v2747 = vpop.f32.mrf.mxu0
      %v2748 = vpop.f32.mrf.mxu0
      %v2749 = vadd.f32 0.0, %v2748
      %v2750 = vpop.f32.mrf.mxu0
      %2751 = vdwg.mxu0
      %v2752 = vadd.f32 %v2026, %v2626
      %v2753 = vadd.f32 %v2027, %v2629
      %v2754 = vadd.f32 %v2028, %v2634
      %v2755 = vadd.f32 %v2029, %v2637
      %v2756 = vadd.f32 %v2030, %v2642
      %v2757 = vadd.f32 %v2031, %v2645
      %v2758 = vadd.f32 %v2032, %v2650
      %v2759 = vadd.f32 %v2033, %v2653
      %v2760 = vadd.f32 %v2034, %v2658
      %v2761 = vadd.f32 %v2035, %v2661
      %v2762 = vadd.f32 %v2036, %v2666
      %v2763 = vadd.f32 %v2037, %v2669
      %v2764 = vadd.f32 %v2038, %v2674
      %v2765 = vadd.f32 %v2039, %v2677
      %v2766 = vadd.f32 %v2040, %v2682
      %v2767 = vadd.f32 %v2041, %v2685
      %v2768 = vadd.f32 %v2042, %v2690
      %v2769 = vadd.f32 %v2043, %v2693
      %v2770 = vadd.f32 %v2044, %v2698
      %v2771 = vadd.f32 %v2045, %v2701
      %v2772 = vadd.f32 %v2046, %v2706
      %v2773 = vadd.f32 %v2047, %v2709
      %v2774 = vadd.f32 %v2048, %v2714
      %v2775 = vadd.f32 %v2049, %v2717
      %v2776 = vadd.f32 %v2050, %v2722
      %v2777 = vadd.f32 %v2051, %v2725
      %v2778 = vadd.f32 %v2052, %v2730
      %v2779 = vadd.f32 %v2053, %v2733
      %v2780 = vadd.f32 %v2054, %v2738
      %v2781 = vadd.f32 %v2055, %v2741
      %v2782 = vadd.f32 %v2056, %v2746
      %v2783 = vadd.f32 %v2057, %v2749
      %v2784 = vld [vmem:[%s1699] sm:$0xe]
      %v2785 = vld [vmem:[%s1699 + $0xc] sm:$0xe]
      %v2786 = vld [vmem:[%s1699 + $0x18] sm:$0xe]
      %v2787 = vld [vmem:[%s1699 + $0x24] sm:$0xe]
      %v2788 = vld [vmem:[%s1699 + $0x30] sm:$0xe]
      %v2789 = vld [vmem:[%s1699 + $0x3c] sm:$0xe]
      %v2790 = vld [vmem:[%s1699 + $0x48] sm:$0xe]
      %v2791 = vld [vmem:[%s1699 + $0x54] sm:$0xe]
      %v2792 = vld [vmem:[%s1699 + $0x60] sm:$0xe]
      %v2793 = vld [vmem:[%s1699 + $0x6c] sm:$0xe]
      %v2794 = vld [vmem:[%s1699 + $0x78] sm:$0xe]
      %v2795 = vld [vmem:[%s1699 + $0x84] sm:$0xe]
      %v2796 = vld [vmem:[%s1699 + $0x90] sm:$0xe]
      %v2797 = vld [vmem:[%s1699 + $0x9c] sm:$0xe]
      %v2798 = vld [vmem:[%s1699 + $0xa8] sm:$0xe]
      %v2799 = vld [vmem:[%s1699 + $0xb4] sm:$0xe]
      %v2848 = vrot.slane %v2784, 5
      %v2849 = vrot.slane %v2848, 4
      %v2850 = vrot.slane %v2059, 5
      %v2851 = vsel %vm1289, %v2849, %v2850
      %v2852 = vrot.slane %v2850, 4
      %v2853 = vrot.slane %v2060, 5
      %v2854 = vsel %vm1289, %v2852, %v2853
      %v2855 = vrot.slane %v2785, 5
      %v2856 = vrot.slane %v2855, 4
      %v2857 = vrot.slane %v2062, 5
      %v2858 = vsel %vm1289, %v2856, %v2857
      %v2859 = vrot.slane %v2857, 4
      %v2860 = vrot.slane %v2063, 5
      %v2861 = vsel %vm1289, %v2859, %v2860
      %v2862 = vrot.slane %v2786, 5
      %v2863 = vrot.slane %v2862, 4
      %v2864 = vrot.slane %v2065, 5
      %v2865 = vsel %vm1289, %v2863, %v2864
      %v2866 = vrot.slane %v2864, 4
      %v2867 = vrot.slane %v2066, 5
      %v2868 = vsel %vm1289, %v2866, %v2867
      %v2869 = vrot.slane %v2787, 5
      %v2870 = vrot.slane %v2869, 4
      %v2871 = vrot.slane %v2068, 5
      %v2872 = vsel %vm1289, %v2870, %v2871
      %v2873 = vrot.slane %v2871, 4
      %v2874 = vrot.slane %v2069, 5
      %v2875 = vsel %vm1289, %v2873, %v2874
      %v2876 = vrot.slane %v2788, 5
      %v2877 = vrot.slane %v2876, 4
      %v2878 = vrot.slane %v2071, 5
      %v2879 = vsel %vm1289, %v2877, %v2878
      %v2880 = vrot.slane %v2878, 4
      %v2881 = vrot.slane %v2072, 5
      %v2882 = vsel %vm1289, %v2880, %v2881
      %v2883 = vrot.slane %v2789, 5
      %v2884 = vrot.slane %v2883, 4
      %v2885 = vrot.slane %v2074, 5
      %v2886 = vsel %vm1289, %v2884, %v2885
      %v2887 = vrot.slane %v2885, 4
      %v2888 = vrot.slane %v2075, 5
      %v2889 = vsel %vm1289, %v2887, %v2888
      %v2890 = vrot.slane %v2790, 5
      %v2891 = vrot.slane %v2890, 4
      %v2892 = vrot.slane %v2077, 5
      %v2893 = vsel %vm1289, %v2891, %v2892
      %v2894 = vrot.slane %v2892, 4
      %v2895 = vrot.slane %v2078, 5
      %v2896 = vsel %vm1289, %v2894, %v2895
      %v2897 = vrot.slane %v2791, 5
      %v2898 = vrot.slane %v2897, 4
      %v2899 = vrot.slane %v2080, 5
      %v2900 = vsel %vm1289, %v2898, %v2899
      %v2901 = vrot.slane %v2899, 4
      %v2902 = vrot.slane %v2081, 5
      %v2903 = vsel %vm1289, %v2901, %v2902
      %v2904 = vrot.slane %v2792, 5
      %v2905 = vrot.slane %v2904, 4
      %v2906 = vrot.slane %v2083, 5
      %v2907 = vsel %vm1289, %v2905, %v2906
      %v2908 = vrot.slane %v2906, 4
      %v2909 = vrot.slane %v2084, 5
      %v2910 = vsel %vm1289, %v2908, %v2909
      %v2911 = vrot.slane %v2793, 5
      %v2912 = vrot.slane %v2911, 4
      %v2913 = vrot.slane %v2086, 5
      %v2914 = vsel %vm1289, %v2912, %v2913
      %v2915 = vrot.slane %v2913, 4
      %v2916 = vrot.slane %v2087, 5
      %v2917 = vsel %vm1289, %v2915, %v2916
      %v2918 = vrot.slane %v2794, 5
      %v2919 = vrot.slane %v2918, 4
      %v2920 = vrot.slane %v2089, 5
      %v2921 = vsel %vm1289, %v2919, %v2920
      %v2922 = vrot.slane %v2920, 4
      %v2923 = vrot.slane %v2090, 5
      %v2924 = vsel %vm1289, %v2922, %v2923
      %v2925 = vrot.slane %v2795, 5
      %v2926 = vrot.slane %v2925, 4
      %v2927 = vrot.slane %v2092, 5
      %v2928 = vsel %vm1289, %v2926, %v2927
      %v2929 = vrot.slane %v2927, 4
      %v2930 = vrot.slane %v2093, 5
      %v2931 = vsel %vm1289, %v2929, %v2930
      %v2932 = vrot.slane %v2796, 5
      %v2933 = vrot.slane %v2932, 4
      %v2934 = vrot.slane %v2095, 5
      %v2935 = vsel %vm1289, %v2933, %v2934
      %v2936 = vrot.slane %v2934, 4
      %v2937 = vrot.slane %v2096, 5
      %v2938 = vsel %vm1289, %v2936, %v2937
      %v2939 = vrot.slane %v2797, 5
      %v2940 = vrot.slane %v2939, 4
      %v2941 = vrot.slane %v2098, 5
      %v2942 = vsel %vm1289, %v2940, %v2941
      %v2943 = vrot.slane %v2941, 4
      %v2944 = vrot.slane %v2099, 5
      %v2945 = vsel %vm1289, %v2943, %v2944
      %v2946 = vrot.slane %v2798, 5
      %v2947 = vrot.slane %v2946, 4
      %v2948 = vrot.slane %v2101, 5
      %v2949 = vsel %vm1289, %v2947, %v2948
      %v2950 = vrot.slane %v2948, 4
      %v2951 = vrot.slane %v2102, 5
      %v2952 = vsel %vm1289, %v2950, %v2951
      %v2953 = vrot.slane %v2799, 5
      %v2954 = vrot.slane %v2953, 4
      %v2955 = vrot.slane %v2104, 5
      %v2956 = vsel %vm1289, %v2954, %v2955
      %v2957 = vrot.slane %v2955, 4
      %v2958 = vrot.slane %v2105, 5
      %v2959 = vsel %vm1289, %v2957, %v2958
      %s2960 = scalar_lea.vmem %s224, 10
      %v2961 = vld [vmem:[%s2960] sm:$0x3]
      %v2962 = vunpack.c.l.b16 %v2851
      %v2963 = vunpack.c.l.b16 %v2854
      %v2964 = vunpack.c.l.b16 %v2858
      %v2965 = vunpack.c.l.b16 %v2861
      %v2966 = vunpack.c.l.b16 %v2865
      %v2967 = vunpack.c.l.b16 %v2868
      %v2968 = vunpack.c.l.b16 %v2872
      %v2969 = vunpack.c.l.b16 %v2875
      %v2970 = vunpack.c.l.b16 %v2879
      %v2971 = vunpack.c.l.b16 %v2882
      %v2972 = vunpack.c.l.b16 %v2886
      %v2973 = vunpack.c.l.b16 %v2889
      %v2974 = vunpack.c.l.b16 %v2893
      %v2975 = vunpack.c.l.b16 %v2896
      %v2976 = vunpack.c.l.b16 %v2900
      %v2977 = vunpack.c.l.b16 %v2903
      %v2978 = vunpack.c.l.b16 %v2907
      %v2979 = vunpack.c.l.b16 %v2910
      %v2980 = vunpack.c.l.b16 %v2914
      %v2981 = vunpack.c.l.b16 %v2917
      %v2982 = vunpack.c.l.b16 %v2921
      %v2983 = vunpack.c.l.b16 %v2924
      %v2984 = vunpack.c.l.b16 %v2928
      %v2985 = vunpack.c.l.b16 %v2931
      %v2986 = vunpack.c.l.b16 %v2935
      %v2987 = vunpack.c.l.b16 %v2938
      %v2988 = vunpack.c.l.b16 %v2942
      %v2989 = vunpack.c.l.b16 %v2945
      %v2990 = vunpack.c.l.b16 %v2949
      %v2991 = vunpack.c.l.b16 %v2952
      %v2992 = vunpack.c.l.b16 %v2956
      %v2993 = vunpack.c.l.b16 %v2959
      %v2994 = vpack.c.b16 %v2963, %v2962
      %v2995 = vpack.c.b16 %v2965, %v2964
      %v2996 = vpack.c.b16 %v2967, %v2966
      %v2997 = vpack.c.b16 %v2969, %v2968
      %v2998 = vpack.c.b16 %v2971, %v2970
      %v2999 = vpack.c.b16 %v2973, %v2972
      %v3000 = vpack.c.b16 %v2975, %v2974
      %v3001 = vpack.c.b16 %v2977, %v2976
      %v3002 = vpack.c.b16 %v2979, %v2978
      %v3003 = vpack.c.b16 %v2981, %v2980
      %v3004 = vpack.c.b16 %v2983, %v2982
      %v3005 = vpack.c.b16 %v2985, %v2984
      %v3006 = vpack.c.b16 %v2987, %v2986
      %v3007 = vpack.c.b16 %v2989, %v2988
      %v3008 = vpack.c.b16 %v2991, %v2990
      %v3009 = vpack.c.b16 %v2993, %v2992
      %v3011 = vsel %vm733, %v2994, 0
      %v3014 = vsel %vm733, %v2995, 0
      %v3017 = vsel %vm733, %v2996, 0
      %v3020 = vsel %vm733, %v2997, 0
      %v3023 = vsel %vm733, %v2998, 0
      %v3026 = vsel %vm733, %v2999, 0
      %v3029 = vsel %vm733, %v3000, 0
      %v3032 = vsel %vm733, %v3001, 0
      %v3035 = vsel %vm733, %v3002, 0
      %v3038 = vsel %vm733, %v3003, 0
      %v3041 = vsel %vm733, %v3004, 0
      %v3044 = vsel %vm733, %v3005, 0
      %v3047 = vsel %vm733, %v3006, 0
      %v3050 = vsel %vm733, %v3007, 0
      %v3053 = vsel %vm733, %v3008, 0
      %v3056 = vsel %vm733, %v3009, 0
      %v3059 = vsel %vm782, %v2961, 0
      %3061 = vmatprep.subr.bf16.mxu0 0
      %3062 = vmatpush1.bf16.msra.mxu0 0
      %3063 = vmatprep.subr.bf16.mxu0 0
      %3064 = vmatpush1.bf16.msra.mxu0 0
      %3065 = vmatprep.subr.bf16.mxu0 0
      %3066 = vmatpush1.bf16.msra.mxu0 0
      %3067 = vmatprep.subr.bf16.mxu0 0
      %3068 = vmatpush1.bf16.msra.mxu0 0
      %3069 = vmatprep.subr.bf16.mxu0 0
      %3070 = vmatpush1.bf16.msra.mxu0 0
      %3071 = vmatprep.subr.bf16.mxu0 0
      %3072 = vmatpush1.bf16.msra.mxu0 0
      %3073 = vmatprep.subr.bf16.mxu0 0
      %3074 = vmatpush1.bf16.msra.mxu0 0
      %3075 = vmatprep.subr.bf16.mxu0 0
      %3076 = vmatpush1.bf16.msra.mxu0 %v3059
      %3077 = vmatprep.subr.bf16.mxu0 0
      %3078 = vmatpush2.bf16.msra.mxu0 0
      %3079 = vmatprep.subr.bf16.mxu0 0
      %3080 = vmatpush2.bf16.msra.mxu0 0
      %3081 = vmatprep.subr.bf16.mxu0 0
      %3082 = vmatpush2.bf16.msra.mxu0 0
      %3083 = vmatprep.subr.bf16.mxu0 0
      %3084 = vmatpush2.bf16.msra.mxu0 0
      %3085 = vmatprep.subr.bf16.mxu0 0
      %3086 = vmatpush2.bf16.msra.mxu0 0
      %3087 = vmatprep.subr.bf16.mxu0 0
      %3088 = vmatpush2.bf16.msra.mxu0 0
      %3089 = vmatprep.subr.bf16.mxu0 0
      %3090 = vmatpush2.bf16.msra.mxu0 0
      %3091 = vmatprep.subr.bf16.mxu0 0
      %3092 = vmatpush2.bf16.msra.mxu0 0
      %3093 = vmatprep.mubr.bf16.mxu0 0
      %3094 = vmatmul.mubr.bf16.gmra.mxu0 %v3011
      %v3095 = vpop.f32.mrf.mxu0
      %v3096 = vadd.f32 0.0, %v3095
      %v3097 = vpop.f32.mrf.mxu0
      %v3098 = vpop.f32.mrf.mxu0
      %v3099 = vadd.f32 0.0, %v3098
      %v3100 = vpop.f32.mrf.mxu0
      %3101 = vmatprep.mubr.bf16.mxu0 0
      %3102 = vmatmul.mubr.bf16.gmra.mxu0 %v3014
      %v3103 = vpop.f32.mrf.mxu0
      %v3104 = vadd.f32 0.0, %v3103
      %v3105 = vpop.f32.mrf.mxu0
      %v3106 = vpop.f32.mrf.mxu0
      %v3107 = vadd.f32 0.0, %v3106
      %v3108 = vpop.f32.mrf.mxu0
      %3109 = vmatprep.mubr.bf16.mxu0 0
      %3110 = vmatmul.mubr.bf16.gmra.mxu0 %v3017
      %v3111 = vpop.f32.mrf.mxu0
      %v3112 = vadd.f32 0.0, %v3111
      %v3113 = vpop.f32.mrf.mxu0
      %v3114 = vpop.f32.mrf.mxu0
      %v3115 = vadd.f32 0.0, %v3114
      %v3116 = vpop.f32.mrf.mxu0
      %3117 = vmatprep.mubr.bf16.mxu0 0
      %3118 = vmatmul.mubr.bf16.gmra.mxu0 %v3020
      %v3119 = vpop.f32.mrf.mxu0
      %v3120 = vadd.f32 0.0, %v3119
      %v3121 = vpop.f32.mrf.mxu0
      %v3122 = vpop.f32.mrf.mxu0
      %v3123 = vadd.f32 0.0, %v3122
      %v3124 = vpop.f32.mrf.mxu0
      %3125 = vmatprep.mubr.bf16.mxu0 0
      %3126 = vmatmul.mubr.bf16.gmra.mxu0 %v3023
      %v3127 = vpop.f32.mrf.mxu0
      %v3128 = vadd.f32 0.0, %v3127
      %v3129 = vpop.f32.mrf.mxu0
      %v3130 = vpop.f32.mrf.mxu0
      %v3131 = vadd.f32 0.0, %v3130
      %v3132 = vpop.f32.mrf.mxu0
      %3133 = vmatprep.mubr.bf16.mxu0 0
      %3134 = vmatmul.mubr.bf16.gmra.mxu0 %v3026
      %v3135 = vpop.f32.mrf.mxu0
      %v3136 = vadd.f32 0.0, %v3135
      %v3137 = vpop.f32.mrf.mxu0
      %v3138 = vpop.f32.mrf.mxu0
      %v3139 = vadd.f32 0.0, %v3138
      %v3140 = vpop.f32.mrf.mxu0
      %3141 = vmatprep.mubr.bf16.mxu0 0
      %3142 = vmatmul.mubr.bf16.gmra.mxu0 %v3029
      %v3143 = vpop.f32.mrf.mxu0
      %v3144 = vadd.f32 0.0, %v3143
      %v3145 = vpop.f32.mrf.mxu0
      %v3146 = vpop.f32.mrf.mxu0
      %v3147 = vadd.f32 0.0, %v3146
      %v3148 = vpop.f32.mrf.mxu0
      %3149 = vmatprep.mubr.bf16.mxu0 0
      %3150 = vmatmul.mubr.bf16.gmra.mxu0 %v3032
      %v3151 = vpop.f32.mrf.mxu0
      %v3152 = vadd.f32 0.0, %v3151
      %v3153 = vpop.f32.mrf.mxu0
      %v3154 = vpop.f32.mrf.mxu0
      %v3155 = vadd.f32 0.0, %v3154
      %v3156 = vpop.f32.mrf.mxu0
      %3157 = vmatprep.mubr.bf16.mxu0 0
      %3158 = vmatmul.mubr.bf16.gmra.mxu0 %v3035
      %v3159 = vpop.f32.mrf.mxu0
      %v3160 = vadd.f32 0.0, %v3159
      %v3161 = vpop.f32.mrf.mxu0
      %v3162 = vpop.f32.mrf.mxu0
      %v3163 = vadd.f32 0.0, %v3162
      %v3164 = vpop.f32.mrf.mxu0
      %3165 = vmatprep.mubr.bf16.mxu0 0
      %3166 = vmatmul.mubr.bf16.gmra.mxu0 %v3038
      %v3167 = vpop.f32.mrf.mxu0
      %v3168 = vadd.f32 0.0, %v3167
      %v3169 = vpop.f32.mrf.mxu0
      %v3170 = vpop.f32.mrf.mxu0
      %v3171 = vadd.f32 0.0, %v3170
      %v3172 = vpop.f32.mrf.mxu0
      %3173 = vmatprep.mubr.bf16.mxu0 0
      %3174 = vmatmul.mubr.bf16.gmra.mxu0 %v3041
      %v3175 = vpop.f32.mrf.mxu0
      %v3176 = vadd.f32 0.0, %v3175
      %v3177 = vpop.f32.mrf.mxu0
      %v3178 = vpop.f32.mrf.mxu0
      %v3179 = vadd.f32 0.0, %v3178
      %v3180 = vpop.f32.mrf.mxu0
      %3181 = vmatprep.mubr.bf16.mxu0 0
      %3182 = vmatmul.mubr.bf16.gmra.mxu0 %v3044
      %v3183 = vpop.f32.mrf.mxu0
      %v3184 = vadd.f32 0.0, %v3183
      %v3185 = vpop.f32.mrf.mxu0
      %v3186 = vpop.f32.mrf.mxu0
      %v3187 = vadd.f32 0.0, %v3186
      %v3188 = vpop.f32.mrf.mxu0
      %3189 = vmatprep.mubr.bf16.mxu0 0
      %3190 = vmatmul.mubr.bf16.gmra.mxu0 %v3047
      %v3191 = vpop.f32.mrf.mxu0
      %v3192 = vadd.f32 0.0, %v3191
      %v3193 = vpop.f32.mrf.mxu0
      %v3194 = vpop.f32.mrf.mxu0
      %v3195 = vadd.f32 0.0, %v3194
      %v3196 = vpop.f32.mrf.mxu0
      %3197 = vmatprep.mubr.bf16.mxu0 0
      %3198 = vmatmul.mubr.bf16.gmra.mxu0 %v3050
      %v3199 = vpop.f32.mrf.mxu0
      %v3200 = vadd.f32 0.0, %v3199
      %v3201 = vpop.f32.mrf.mxu0
      %v3202 = vpop.f32.mrf.mxu0
      %v3203 = vadd.f32 0.0, %v3202
      %v3204 = vpop.f32.mrf.mxu0
      %3205 = vmatprep.mubr.bf16.mxu0 0
      %3206 = vmatmul.mubr.bf16.gmra.mxu0 %v3053
      %v3207 = vpop.f32.mrf.mxu0
      %v3208 = vadd.f32 0.0, %v3207
      %v3209 = vpop.f32.mrf.mxu0
      %v3210 = vpop.f32.mrf.mxu0
      %v3211 = vadd.f32 0.0, %v3210
      %v3212 = vpop.f32.mrf.mxu0
      %3213 = vmatprep.mubr.bf16.mxu0 0
      %3214 = vmatmul.mubr.bf16.gmra.mxu0 %v3056
      %v3215 = vpop.f32.mrf.mxu0
      %v3216 = vadd.f32 0.0, %v3215
      %v3217 = vpop.f32.mrf.mxu0
      %v3218 = vpop.f32.mrf.mxu0
      %v3219 = vadd.f32 0.0, %v3218
      %v3220 = vpop.f32.mrf.mxu0
      %3221 = vdwg.mxu0
      %v3222 = vadd.f32 %v2752, %v3096
      %v3223 = vadd.f32 %v2753, %v3099
      %v3224 = vadd.f32 %v2754, %v3104
      %v3225 = vadd.f32 %v2755, %v3107
      %v3226 = vadd.f32 %v2756, %v3112
      %v3227 = vadd.f32 %v2757, %v3115
      %v3228 = vadd.f32 %v2758, %v3120
      %v3229 = vadd.f32 %v2759, %v3123
      %v3230 = vadd.f32 %v2760, %v3128
      %v3231 = vadd.f32 %v2761, %v3131
      %v3232 = vadd.f32 %v2762, %v3136
      %v3233 = vadd.f32 %v2763, %v3139
      %v3234 = vadd.f32 %v2764, %v3144
      %v3235 = vadd.f32 %v2765, %v3147
      %v3236 = vadd.f32 %v2766, %v3152
      %v3237 = vadd.f32 %v2767, %v3155
      %v3238 = vadd.f32 %v2768, %v3160
      %v3239 = vadd.f32 %v2769, %v3163
      %v3240 = vadd.f32 %v2770, %v3168
      %v3241 = vadd.f32 %v2771, %v3171
      %v3242 = vadd.f32 %v2772, %v3176
      %v3243 = vadd.f32 %v2773, %v3179
      %v3244 = vadd.f32 %v2774, %v3184
      %v3245 = vadd.f32 %v2775, %v3187
      %v3246 = vadd.f32 %v2776, %v3192
      %v3247 = vadd.f32 %v2777, %v3195
      %v3248 = vadd.f32 %v2778, %v3200
      %v3249 = vadd.f32 %v2779, %v3203
      %v3250 = vadd.f32 %v2780, %v3208
      %v3251 = vadd.f32 %v2781, %v3211
      %v3252 = vadd.f32 %v2782, %v3216
      %v3253 = vadd.f32 %v2783, %v3219
      %s3254 = sadd.s32 %s243, 2
      %s3255 = smul.u32 %s3254, 3
      %s3256 = smul.addr %s3255, 4
      %s3257 = scalar_lea.vmem %s220, %s3256
      %v3258 = vld [vmem:[%s3257] sm:$0xf]
      %v3259 = vld [vmem:[%s3257 + $0x4] sm:$0xf]
      %v3260 = vld [vmem:[%s3257 + $0xc] sm:$0xf]
      %v3261 = vld [vmem:[%s3257 + $0x10] sm:$0xf]
      %v3262 = vld [vmem:[%s3257 + $0x18] sm:$0xf]
      %v3263 = vld [vmem:[%s3257 + $0x1c] sm:$0xf]
      %v3264 = vld [vmem:[%s3257 + $0x24] sm:$0xf]
      %v3265 = vld [vmem:[%s3257 + $0x28] sm:$0xf]
      %v3266 = vld [vmem:[%s3257 + $0x30] sm:$0xf]
      %v3267 = vld [vmem:[%s3257 + $0x34] sm:$0xf]
      %v3268 = vld [vmem:[%s3257 + $0x3c] sm:$0xf]
      %v3269 = vld [vmem:[%s3257 + $0x40] sm:$0xf]
      %v3270 = vld [vmem:[%s3257 + $0x48] sm:$0xf]
      %v3271 = vld [vmem:[%s3257 + $0x4c] sm:$0xf]
      %v3272 = vld [vmem:[%s3257 + $0x54] sm:$0xf]
      %v3273 = vld [vmem:[%s3257 + $0x58] sm:$0xf]
      %v3274 = vld [vmem:[%s3257 + $0x60] sm:$0xf]
      %v3275 = vld [vmem:[%s3257 + $0x64] sm:$0xf]
      %v3276 = vld [vmem:[%s3257 + $0x6c] sm:$0xf]
      %v3277 = vld [vmem:[%s3257 + $0x70] sm:$0xf]
      %v3278 = vld [vmem:[%s3257 + $0x78] sm:$0xf]
      %v3279 = vld [vmem:[%s3257 + $0x7c] sm:$0xf]
      %v3280 = vld [vmem:[%s3257 + $0x84] sm:$0xf]
      %v3281 = vld [vmem:[%s3257 + $0x88] sm:$0xf]
      %v3282 = vld [vmem:[%s3257 + $0x90] sm:$0xf]
      %v3283 = vld [vmem:[%s3257 + $0x94] sm:$0xf]
      %v3284 = vld [vmem:[%s3257 + $0x9c] sm:$0xf]
      %v3285 = vld [vmem:[%s3257 + $0xa0] sm:$0xf]
      %v3286 = vld [vmem:[%s3257 + $0xa8] sm:$0xf]
      %v3287 = vld [vmem:[%s3257 + $0xac] sm:$0xf]
      %v3288 = vld [vmem:[%s3257 + $0xb4] sm:$0xf]
      %v3289 = vld [vmem:[%s3257 + $0xb8] sm:$0xf]
      %s3290 = scalar_lea.vmem %s224, 12
      %v3291 = vld [vmem:[%s3290] sm:$0x3]
      %v3324 = vunpack.c.l.b16 %v3258
      %v3325 = vunpack.c.l.b16 %v3259
      %v3326 = vunpack.c.l.b16 %v3260
      %v3327 = vunpack.c.l.b16 %v3261
      %v3328 = vunpack.c.l.b16 %v3262
      %v3329 = vunpack.c.l.b16 %v3263
      %v3330 = vunpack.c.l.b16 %v3264
      %v3331 = vunpack.c.l.b16 %v3265
      %v3332 = vunpack.c.l.b16 %v3266
      %v3333 = vunpack.c.l.b16 %v3267
      %v3334 = vunpack.c.l.b16 %v3268
      %v3335 = vunpack.c.l.b16 %v3269
      %v3336 = vunpack.c.l.b16 %v3270
      %v3337 = vunpack.c.l.b16 %v3271
      %v3338 = vunpack.c.l.b16 %v3272
      %v3339 = vunpack.c.l.b16 %v3273
      %v3340 = vunpack.c.l.b16 %v3274
      %v3341 = vunpack.c.l.b16 %v3275
      %v3342 = vunpack.c.l.b16 %v3276
      %v3343 = vunpack.c.l.b16 %v3277
      %v3344 = vunpack.c.l.b16 %v3278
      %v3345 = vunpack.c.l.b16 %v3279
      %v3346 = vunpack.c.l.b16 %v3280
      %v3347 = vunpack.c.l.b16 %v3281
      %v3348 = vunpack.c.l.b16 %v3282
      %v3349 = vunpack.c.l.b16 %v3283
      %v3350 = vunpack.c.l.b16 %v3284
      %v3351 = vunpack.c.l.b16 %v3285
      %v3352 = vunpack.c.l.b16 %v3286
      %v3353 = vunpack.c.l.b16 %v3287
      %v3354 = vunpack.c.l.b16 %v3288
      %v3355 = vunpack.c.l.b16 %v3289
      %v3356 = vpack.c.b16 %v3325, %v3324
      %v3357 = vpack.c.b16 %v3327, %v3326
      %v3358 = vpack.c.b16 %v3329, %v3328
      %v3359 = vpack.c.b16 %v3331, %v3330
      %v3360 = vpack.c.b16 %v3333, %v3332
      %v3361 = vpack.c.b16 %v3335, %v3334
      %v3362 = vpack.c.b16 %v3337, %v3336
      %v3363 = vpack.c.b16 %v3339, %v3338
      %v3364 = vpack.c.b16 %v3341, %v3340
      %v3365 = vpack.c.b16 %v3343, %v3342
      %v3366 = vpack.c.b16 %v3345, %v3344
      %v3367 = vpack.c.b16 %v3347, %v3346
      %v3368 = vpack.c.b16 %v3349, %v3348
      %v3369 = vpack.c.b16 %v3351, %v3350
      %v3370 = vpack.c.b16 %v3353, %v3352
      %v3371 = vpack.c.b16 %v3355, %v3354
      %v3373 = vsel %vm733, %v3356, 0
      %v3376 = vsel %vm733, %v3357, 0
      %v3379 = vsel %vm733, %v3358, 0
      %v3382 = vsel %vm733, %v3359, 0
      %v3385 = vsel %vm733, %v3360, 0
      %v3388 = vsel %vm733, %v3361, 0
      %v3391 = vsel %vm733, %v3362, 0
      %v3394 = vsel %vm733, %v3363, 0
      %v3397 = vsel %vm733, %v3364, 0
      %v3400 = vsel %vm733, %v3365, 0
      %v3403 = vsel %vm733, %v3366, 0
      %v3406 = vsel %vm733, %v3367, 0
      %v3409 = vsel %vm733, %v3368, 0
      %v3412 = vsel %vm733, %v3369, 0
      %v3415 = vsel %vm733, %v3370, 0
      %v3418 = vsel %vm733, %v3371, 0
      %v3421 = vsel %vm782, %v3291, 0
      %3423 = vmatprep.subr.bf16.mxu0 0
      %3424 = vmatpush1.bf16.msra.mxu0 0
      %3425 = vmatprep.subr.bf16.mxu0 0
      %3426 = vmatpush1.bf16.msra.mxu0 0
      %3427 = vmatprep.subr.bf16.mxu0 0
      %3428 = vmatpush1.bf16.msra.mxu0 0
      %3429 = vmatprep.subr.bf16.mxu0 0
      %3430 = vmatpush1.bf16.msra.mxu0 0
      %3431 = vmatprep.subr.bf16.mxu0 0
      %3432 = vmatpush1.bf16.msra.mxu0 0
      %3433 = vmatprep.subr.bf16.mxu0 0
      %3434 = vmatpush1.bf16.msra.mxu0 0
      %3435 = vmatprep.subr.bf16.mxu0 0
      %3436 = vmatpush1.bf16.msra.mxu0 0
      %3437 = vmatprep.subr.bf16.mxu0 0
      %3438 = vmatpush1.bf16.msra.mxu0 %v3421
      %3439 = vmatprep.subr.bf16.mxu0 0
      %3440 = vmatpush2.bf16.msra.mxu0 0
      %3441 = vmatprep.subr.bf16.mxu0 0
      %3442 = vmatpush2.bf16.msra.mxu0 0
      %3443 = vmatprep.subr.bf16.mxu0 0
      %3444 = vmatpush2.bf16.msra.mxu0 0
      %3445 = vmatprep.subr.bf16.mxu0 0
      %3446 = vmatpush2.bf16.msra.mxu0 0
      %3447 = vmatprep.subr.bf16.mxu0 0
      %3448 = vmatpush2.bf16.msra.mxu0 0
      %3449 = vmatprep.subr.bf16.mxu0 0
      %3450 = vmatpush2.bf16.msra.mxu0 0
      %3451 = vmatprep.subr.bf16.mxu0 0
      %3452 = vmatpush2.bf16.msra.mxu0 0
      %3453 = vmatprep.subr.bf16.mxu0 0
      %3454 = vmatpush2.bf16.msra.mxu0 0
      %3455 = vmatprep.mubr.bf16.mxu0 0
      %3456 = vmatmul.mubr.bf16.gmra.mxu0 %v3373
      %v3457 = vpop.f32.mrf.mxu0
      %v3458 = vadd.f32 0.0, %v3457
      %v3459 = vpop.f32.mrf.mxu0
      %v3460 = vpop.f32.mrf.mxu0
      %v3461 = vadd.f32 0.0, %v3460
      %v3462 = vpop.f32.mrf.mxu0
      %3463 = vmatprep.mubr.bf16.mxu0 0
      %3464 = vmatmul.mubr.bf16.gmra.mxu0 %v3376
      %v3465 = vpop.f32.mrf.mxu0
      %v3466 = vadd.f32 0.0, %v3465
      %v3467 = vpop.f32.mrf.mxu0
      %v3468 = vpop.f32.mrf.mxu0
      %v3469 = vadd.f32 0.0, %v3468
      %v3470 = vpop.f32.mrf.mxu0
      %3471 = vmatprep.mubr.bf16.mxu0 0
      %3472 = vmatmul.mubr.bf16.gmra.mxu0 %v3379
      %v3473 = vpop.f32.mrf.mxu0
      %v3474 = vadd.f32 0.0, %v3473
      %v3475 = vpop.f32.mrf.mxu0
      %v3476 = vpop.f32.mrf.mxu0
      %v3477 = vadd.f32 0.0, %v3476
      %v3478 = vpop.f32.mrf.mxu0
      %3479 = vmatprep.mubr.bf16.mxu0 0
      %3480 = vmatmul.mubr.bf16.gmra.mxu0 %v3382
      %v3481 = vpop.f32.mrf.mxu0
      %v3482 = vadd.f32 0.0, %v3481
      %v3483 = vpop.f32.mrf.mxu0
      %v3484 = vpop.f32.mrf.mxu0
      %v3485 = vadd.f32 0.0, %v3484
      %v3486 = vpop.f32.mrf.mxu0
      %3487 = vmatprep.mubr.bf16.mxu0 0
      %3488 = vmatmul.mubr.bf16.gmra.mxu0 %v3385
      %v3489 = vpop.f32.mrf.mxu0
      %v3490 = vadd.f32 0.0, %v3489
      %v3491 = vpop.f32.mrf.mxu0
      %v3492 = vpop.f32.mrf.mxu0
      %v3493 = vadd.f32 0.0, %v3492
      %v3494 = vpop.f32.mrf.mxu0
      %3495 = vmatprep.mubr.bf16.mxu0 0
      %3496 = vmatmul.mubr.bf16.gmra.mxu0 %v3388
      %v3497 = vpop.f32.mrf.mxu0
      %v3498 = vadd.f32 0.0, %v3497
      %v3499 = vpop.f32.mrf.mxu0
      %v3500 = vpop.f32.mrf.mxu0
      %v3501 = vadd.f32 0.0, %v3500
      %v3502 = vpop.f32.mrf.mxu0
      %3503 = vmatprep.mubr.bf16.mxu0 0
      %3504 = vmatmul.mubr.bf16.gmra.mxu0 %v3391
      %v3505 = vpop.f32.mrf.mxu0
      %v3506 = vadd.f32 0.0, %v3505
      %v3507 = vpop.f32.mrf.mxu0
      %v3508 = vpop.f32.mrf.mxu0
      %v3509 = vadd.f32 0.0, %v3508
      %v3510 = vpop.f32.mrf.mxu0
      %3511 = vmatprep.mubr.bf16.mxu0 0
      %3512 = vmatmul.mubr.bf16.gmra.mxu0 %v3394
      %v3513 = vpop.f32.mrf.mxu0
      %v3514 = vadd.f32 0.0, %v3513
      %v3515 = vpop.f32.mrf.mxu0
      %v3516 = vpop.f32.mrf.mxu0
      %v3517 = vadd.f32 0.0, %v3516
      %v3518 = vpop.f32.mrf.mxu0
      %3519 = vmatprep.mubr.bf16.mxu0 0
      %3520 = vmatmul.mubr.bf16.gmra.mxu0 %v3397
      %v3521 = vpop.f32.mrf.mxu0
      %v3522 = vadd.f32 0.0, %v3521
      %v3523 = vpop.f32.mrf.mxu0
      %v3524 = vpop.f32.mrf.mxu0
      %v3525 = vadd.f32 0.0, %v3524
      %v3526 = vpop.f32.mrf.mxu0
      %3527 = vmatprep.mubr.bf16.mxu0 0
      %3528 = vmatmul.mubr.bf16.gmra.mxu0 %v3400
      %v3529 = vpop.f32.mrf.mxu0
      %v3530 = vadd.f32 0.0, %v3529
      %v3531 = vpop.f32.mrf.mxu0
      %v3532 = vpop.f32.mrf.mxu0
      %v3533 = vadd.f32 0.0, %v3532
      %v3534 = vpop.f32.mrf.mxu0
      %3535 = vmatprep.mubr.bf16.mxu0 0
      %3536 = vmatmul.mubr.bf16.gmra.mxu0 %v3403
      %v3537 = vpop.f32.mrf.mxu0
      %v3538 = vadd.f32 0.0, %v3537
      %v3539 = vpop.f32.mrf.mxu0
      %v3540 = vpop.f32.mrf.mxu0
      %v3541 = vadd.f32 0.0, %v3540
      %v3542 = vpop.f32.mrf.mxu0
      %3543 = vmatprep.mubr.bf16.mxu0 0
      %3544 = vmatmul.mubr.bf16.gmra.mxu0 %v3406
      %v3545 = vpop.f32.mrf.mxu0
      %v3546 = vadd.f32 0.0, %v3545
      %v3547 = vpop.f32.mrf.mxu0
      %v3548 = vpop.f32.mrf.mxu0
      %v3549 = vadd.f32 0.0, %v3548
      %v3550 = vpop.f32.mrf.mxu0
      %3551 = vmatprep.mubr.bf16.mxu0 0
      %3552 = vmatmul.mubr.bf16.gmra.mxu0 %v3409
      %v3553 = vpop.f32.mrf.mxu0
      %v3554 = vadd.f32 0.0, %v3553
      %v3555 = vpop.f32.mrf.mxu0
      %v3556 = vpop.f32.mrf.mxu0
      %v3557 = vadd.f32 0.0, %v3556
      %v3558 = vpop.f32.mrf.mxu0
      %3559 = vmatprep.mubr.bf16.mxu0 0
      %3560 = vmatmul.mubr.bf16.gmra.mxu0 %v3412
      %v3561 = vpop.f32.mrf.mxu0
      %v3562 = vadd.f32 0.0, %v3561
      %v3563 = vpop.f32.mrf.mxu0
      %v3564 = vpop.f32.mrf.mxu0
      %v3565 = vadd.f32 0.0, %v3564
      %v3566 = vpop.f32.mrf.mxu0
      %3567 = vmatprep.mubr.bf16.mxu0 0
      %3568 = vmatmul.mubr.bf16.gmra.mxu0 %v3415
      %v3569 = vpop.f32.mrf.mxu0
      %v3570 = vadd.f32 0.0, %v3569
      %v3571 = vpop.f32.mrf.mxu0
      %v3572 = vpop.f32.mrf.mxu0
      %v3573 = vadd.f32 0.0, %v3572
      %v3574 = vpop.f32.mrf.mxu0
      %3575 = vmatprep.mubr.bf16.mxu0 0
      %3576 = vmatmul.mubr.bf16.gmra.mxu0 %v3418
      %v3577 = vpop.f32.mrf.mxu0
      %v3578 = vadd.f32 0.0, %v3577
      %v3579 = vpop.f32.mrf.mxu0
      %v3580 = vpop.f32.mrf.mxu0
      %v3581 = vadd.f32 0.0, %v3580
      %v3582 = vpop.f32.mrf.mxu0
      %3583 = vdwg.mxu0
      %v3584 = vadd.f32 %v3222, %v3458
      %v3585 = vadd.f32 %v3223, %v3461
      %v3586 = vadd.f32 %v3224, %v3466
      %v3587 = vadd.f32 %v3225, %v3469
      %v3588 = vadd.f32 %v3226, %v3474
      %v3589 = vadd.f32 %v3227, %v3477
      %v3590 = vadd.f32 %v3228, %v3482
      %v3591 = vadd.f32 %v3229, %v3485
      %v3592 = vadd.f32 %v3230, %v3490
      %v3593 = vadd.f32 %v3231, %v3493
      %v3594 = vadd.f32 %v3232, %v3498
      %v3595 = vadd.f32 %v3233, %v3501
      %v3596 = vadd.f32 %v3234, %v3506
      %v3597 = vadd.f32 %v3235, %v3509
      %v3598 = vadd.f32 %v3236, %v3514
      %v3599 = vadd.f32 %v3237, %v3517
      %v3600 = vadd.f32 %v3238, %v3522
      %v3601 = vadd.f32 %v3239, %v3525
      %v3602 = vadd.f32 %v3240, %v3530
      %v3603 = vadd.f32 %v3241, %v3533
      %v3604 = vadd.f32 %v3242, %v3538
      %v3605 = vadd.f32 %v3243, %v3541
      %v3606 = vadd.f32 %v3244, %v3546
      %v3607 = vadd.f32 %v3245, %v3549
      %v3608 = vadd.f32 %v3246, %v3554
      %v3609 = vadd.f32 %v3247, %v3557
      %v3610 = vadd.f32 %v3248, %v3562
      %v3611 = vadd.f32 %v3249, %v3565
      %v3612 = vadd.f32 %v3250, %v3570
      %v3613 = vadd.f32 %v3251, %v3573
      %v3614 = vadd.f32 %v3252, %v3578
      %v3615 = vadd.f32 %v3253, %v3581
      %v3616 = vld [vmem:[%s3257] sm:$0xf]
      %v3617 = vld [vmem:[%s3257 + $0x4] sm:$0xf]
      %v3618 = vld [vmem:[%s3257 + $0x8] sm:$0x1]
      %v3619 = vld [vmem:[%s3257 + $0xc] sm:$0xf]
      %v3620 = vld [vmem:[%s3257 + $0x10] sm:$0xf]
      %v3621 = vld [vmem:[%s3257 + $0x14] sm:$0x1]
      %v3622 = vld [vmem:[%s3257 + $0x18] sm:$0xf]
      %v3623 = vld [vmem:[%s3257 + $0x1c] sm:$0xf]
      %v3624 = vld [vmem:[%s3257 + $0x20] sm:$0x1]
      %v3625 = vld [vmem:[%s3257 + $0x24] sm:$0xf]
      %v3626 = vld [vmem:[%s3257 + $0x28] sm:$0xf]
      %v3627 = vld [vmem:[%s3257 + $0x2c] sm:$0x1]
      %v3628 = vld [vmem:[%s3257 + $0x30] sm:$0xf]
      %v3629 = vld [vmem:[%s3257 + $0x34] sm:$0xf]
      %v3630 = vld [vmem:[%s3257 + $0x38] sm:$0x1]
      %v3631 = vld [vmem:[%s3257 + $0x3c] sm:$0xf]
      %v3632 = vld [vmem:[%s3257 + $0x40] sm:$0xf]
      %v3633 = vld [vmem:[%s3257 + $0x44] sm:$0x1]
      %v3634 = vld [vmem:[%s3257 + $0x48] sm:$0xf]
      %v3635 = vld [vmem:[%s3257 + $0x4c] sm:$0xf]
      %v3636 = vld [vmem:[%s3257 + $0x50] sm:$0x1]
      %v3637 = vld [vmem:[%s3257 + $0x54] sm:$0xf]
      %v3638 = vld [vmem:[%s3257 + $0x58] sm:$0xf]
      %v3639 = vld [vmem:[%s3257 + $0x5c] sm:$0x1]
      %v3640 = vld [vmem:[%s3257 + $0x60] sm:$0xf]
      %v3641 = vld [vmem:[%s3257 + $0x64] sm:$0xf]
      %v3642 = vld [vmem:[%s3257 + $0x68] sm:$0x1]
      %v3643 = vld [vmem:[%s3257 + $0x6c] sm:$0xf]
      %v3644 = vld [vmem:[%s3257 + $0x70] sm:$0xf]
      %v3645 = vld [vmem:[%s3257 + $0x74] sm:$0x1]
      %v3646 = vld [vmem:[%s3257 + $0x78] sm:$0xf]
      %v3647 = vld [vmem:[%s3257 + $0x7c] sm:$0xf]
      %v3648 = vld [vmem:[%s3257 + $0x80] sm:$0x1]
      %v3649 = vld [vmem:[%s3257 + $0x84] sm:$0xf]
      %v3650 = vld [vmem:[%s3257 + $0x88] sm:$0xf]
      %v3651 = vld [vmem:[%s3257 + $0x8c] sm:$0x1]
      %v3652 = vld [vmem:[%s3257 + $0x90] sm:$0xf]
      %v3653 = vld [vmem:[%s3257 + $0x94] sm:$0xf]
      %v3654 = vld [vmem:[%s3257 + $0x98] sm:$0x1]
      %v3655 = vld [vmem:[%s3257 + $0x9c] sm:$0xf]
      %v3656 = vld [vmem:[%s3257 + $0xa0] sm:$0xf]
      %v3657 = vld [vmem:[%s3257 + $0xa4] sm:$0x1]
      %v3658 = vld [vmem:[%s3257 + $0xa8] sm:$0xf]
      %v3659 = vld [vmem:[%s3257 + $0xac] sm:$0xf]
      %v3660 = vld [vmem:[%s3257 + $0xb0] sm:$0x1]
      %v3661 = vld [vmem:[%s3257 + $0xb4] sm:$0xf]
      %v3662 = vld [vmem:[%s3257 + $0xb8] sm:$0xf]
      %v3663 = vld [vmem:[%s3257 + $0xbc] sm:$0x1]
      %v3665 = vshrl.u32 %v3616, 16
      %v3667 = vrot.slane %v3665, 4
      %v3668 = vshll.u32 %v3616, 16
      %v3670 = vrot.slane %v3668, 5
      %v3671 = vor.u32 %v3667, %v3670
      %v3672 = vrot.slane %v3671, 4
      %v3674 = vshll.u32 %v3617, 16
      %v3676 = vrot.slane %v3674, 5
      %v3677 = vsel %vm298, %v3672, %v3676
      %v3678 = vshrl.u32 %v3617, 16
      %v3680 = vrot.slane %v3678, 4
      %v3681 = vor.u32 %v3680, %v3676
      %v3682 = vrot.slane %v3681, 4
      %v3684 = vshll.u32 %v3618, 16
      %v3686 = vrot.slane %v3684, 5
      %v3687 = vsel %vm298, %v3682, %v3686
      %v3689 = vshrl.u32 %v3619, 16
      %v3691 = vrot.slane %v3689, 4
      %v3692 = vshll.u32 %v3619, 16
      %v3694 = vrot.slane %v3692, 5
      %v3695 = vor.u32 %v3691, %v3694
      %v3696 = vrot.slane %v3695, 4
      %v3698 = vshll.u32 %v3620, 16
      %v3700 = vrot.slane %v3698, 5
      %v3701 = vsel %vm298, %v3696, %v3700
      %v3702 = vshrl.u32 %v3620, 16
      %v3704 = vrot.slane %v3702, 4
      %v3705 = vor.u32 %v3704, %v3700
      %v3706 = vrot.slane %v3705, 4
      %v3708 = vshll.u32 %v3621, 16
      %v3710 = vrot.slane %v3708, 5
      %v3711 = vsel %vm298, %v3706, %v3710
      %v3713 = vshrl.u32 %v3622, 16
      %v3715 = vrot.slane %v3713, 4
      %v3716 = vshll.u32 %v3622, 16
      %v3718 = vrot.slane %v3716, 5
      %v3719 = vor.u32 %v3715, %v3718
      %v3720 = vrot.slane %v3719, 4
      %v3722 = vshll.u32 %v3623, 16
      %v3724 = vrot.slane %v3722, 5
      %v3725 = vsel %vm298, %v3720, %v3724
      %v3726 = vshrl.u32 %v3623, 16
      %v3728 = vrot.slane %v3726, 4
      %v3729 = vor.u32 %v3728, %v3724
      %v3730 = vrot.slane %v3729, 4
      %v3732 = vshll.u32 %v3624, 16
      %v3734 = vrot.slane %v3732, 5
      %v3735 = vsel %vm298, %v3730, %v3734
      %v3737 = vshrl.u32 %v3625, 16
      %v3739 = vrot.slane %v3737, 4
      %v3740 = vshll.u32 %v3625, 16
      %v3742 = vrot.slane %v3740, 5
      %v3743 = vor.u32 %v3739, %v3742
      %v3744 = vrot.slane %v3743, 4
      %v3746 = vshll.u32 %v3626, 16
      %v3748 = vrot.slane %v3746, 5
      %v3749 = vsel %vm298, %v3744, %v3748
      %v3750 = vshrl.u32 %v3626, 16
      %v3752 = vrot.slane %v3750, 4
      %v3753 = vor.u32 %v3752, %v3748
      %v3754 = vrot.slane %v3753, 4
      %v3756 = vshll.u32 %v3627, 16
      %v3758 = vrot.slane %v3756, 5
      %v3759 = vsel %vm298, %v3754, %v3758
      %v3761 = vshrl.u32 %v3628, 16
      %v3763 = vrot.slane %v3761, 4
      %v3764 = vshll.u32 %v3628, 16
      %v3766 = vrot.slane %v3764, 5
      %v3767 = vor.u32 %v3763, %v3766
      %v3768 = vrot.slane %v3767, 4
      %v3770 = vshll.u32 %v3629, 16
      %v3772 = vrot.slane %v3770, 5
      %v3773 = vsel %vm298, %v3768, %v3772
      %v3774 = vshrl.u32 %v3629, 16
      %v3776 = vrot.slane %v3774, 4
      %v3777 = vor.u32 %v3776, %v3772
      %v3778 = vrot.slane %v3777, 4
      %v3780 = vshll.u32 %v3630, 16
      %v3782 = vrot.slane %v3780, 5
      %v3783 = vsel %vm298, %v3778, %v3782
      %v3785 = vshrl.u32 %v3631, 16
      %v3787 = vrot.slane %v3785, 4
      %v3788 = vshll.u32 %v3631, 16
      %v3790 = vrot.slane %v3788, 5
      %v3791 = vor.u32 %v3787, %v3790
      %v3792 = vrot.slane %v3791, 4
      %v3794 = vshll.u32 %v3632, 16
      %v3796 = vrot.slane %v3794, 5
      %v3797 = vsel %vm298, %v3792, %v3796
      %v3798 = vshrl.u32 %v3632, 16
      %v3800 = vrot.slane %v3798, 4
      %v3801 = vor.u32 %v3800, %v3796
      %v3802 = vrot.slane %v3801, 4
      %v3804 = vshll.u32 %v3633, 16
      %v3806 = vrot.slane %v3804, 5
      %v3807 = vsel %vm298, %v3802, %v3806
      %v3809 = vshrl.u32 %v3634, 16
      %v3811 = vrot.slane %v3809, 4
      %v3812 = vshll.u32 %v3634, 16
      %v3814 = vrot.slane %v3812, 5
      %v3815 = vor.u32 %v3811, %v3814
      %v3816 = vrot.slane %v3815, 4
      %v3818 = vshll.u32 %v3635, 16
      %v3820 = vrot.slane %v3818, 5
      %v3821 = vsel %vm298, %v3816, %v3820
      %v3822 = vshrl.u32 %v3635, 16
      %v3824 = vrot.slane %v3822, 4
      %v3825 = vor.u32 %v3824, %v3820
      %v3826 = vrot.slane %v3825, 4
      %v3828 = vshll.u32 %v3636, 16
      %v3830 = vrot.slane %v3828, 5
      %v3831 = vsel %vm298, %v3826, %v3830
      %v3833 = vshrl.u32 %v3637, 16
      %v3835 = vrot.slane %v3833, 4
      %v3836 = vshll.u32 %v3637, 16
      %v3838 = vrot.slane %v3836, 5
      %v3839 = vor.u32 %v3835, %v3838
      %v3840 = vrot.slane %v3839, 4
      %v3842 = vshll.u32 %v3638, 16
      %v3844 = vrot.slane %v3842, 5
      %v3845 = vsel %vm298, %v3840, %v3844
      %v3846 = vshrl.u32 %v3638, 16
      %v3848 = vrot.slane %v3846, 4
      %v3849 = vor.u32 %v3848, %v3844
      %v3850 = vrot.slane %v3849, 4
      %v3852 = vshll.u32 %v3639, 16
      %v3854 = vrot.slane %v3852, 5
      %v3855 = vsel %vm298, %v3850, %v3854
      %v3857 = vshrl.u32 %v3640, 16
      %v3859 = vrot.slane %v3857, 4
      %v3860 = vshll.u32 %v3640, 16
      %v3862 = vrot.slane %v3860, 5
      %v3863 = vor.u32 %v3859, %v3862
      %v3864 = vrot.slane %v3863, 4
      %v3866 = vshll.u32 %v3641, 16
      %v3868 = vrot.slane %v3866, 5
      %v3869 = vsel %vm298, %v3864, %v3868
      %v3870 = vshrl.u32 %v3641, 16
      %v3872 = vrot.slane %v3870, 4
      %v3873 = vor.u32 %v3872, %v3868
      %v3874 = vrot.slane %v3873, 4
      %v3876 = vshll.u32 %v3642, 16
      %v3878 = vrot.slane %v3876, 5
      %v3879 = vsel %vm298, %v3874, %v3878
      %v3881 = vshrl.u32 %v3643, 16
      %v3883 = vrot.slane %v3881, 4
      %v3884 = vshll.u32 %v3643, 16
      %v3886 = vrot.slane %v3884, 5
      %v3887 = vor.u32 %v3883, %v3886
      %v3888 = vrot.slane %v3887, 4
      %v3890 = vshll.u32 %v3644, 16
      %v3892 = vrot.slane %v3890, 5
      %v3893 = vsel %vm298, %v3888, %v3892
      %v3894 = vshrl.u32 %v3644, 16
      %v3896 = vrot.slane %v3894, 4
      %v3897 = vor.u32 %v3896, %v3892
      %v3898 = vrot.slane %v3897, 4
      %v3900 = vshll.u32 %v3645, 16
      %v3902 = vrot.slane %v3900, 5
      %v3903 = vsel %vm298, %v3898, %v3902
      %v3905 = vshrl.u32 %v3646, 16
      %v3907 = vrot.slane %v3905, 4
      %v3908 = vshll.u32 %v3646, 16
      %v3910 = vrot.slane %v3908, 5
      %v3911 = vor.u32 %v3907, %v3910
      %v3912 = vrot.slane %v3911, 4
      %v3914 = vshll.u32 %v3647, 16
      %v3916 = vrot.slane %v3914, 5
      %v3917 = vsel %vm298, %v3912, %v3916
      %v3918 = vshrl.u32 %v3647, 16
      %v3920 = vrot.slane %v3918, 4
      %v3921 = vor.u32 %v3920, %v3916
      %v3922 = vrot.slane %v3921, 4
      %v3924 = vshll.u32 %v3648, 16
      %v3926 = vrot.slane %v3924, 5
      %v3927 = vsel %vm298, %v3922, %v3926
      %v3929 = vshrl.u32 %v3649, 16
      %v3931 = vrot.slane %v3929, 4
      %v3932 = vshll.u32 %v3649, 16
      %v3934 = vrot.slane %v3932, 5
      %v3935 = vor.u32 %v3931, %v3934
      %v3936 = vrot.slane %v3935, 4
      %v3938 = vshll.u32 %v3650, 16
      %v3940 = vrot.slane %v3938, 5
      %v3941 = vsel %vm298, %v3936, %v3940
      %v3942 = vshrl.u32 %v3650, 16
      %v3944 = vrot.slane %v3942, 4
      %v3945 = vor.u32 %v3944, %v3940
      %v3946 = vrot.slane %v3945, 4
      %v3948 = vshll.u32 %v3651, 16
      %v3950 = vrot.slane %v3948, 5
      %v3951 = vsel %vm298, %v3946, %v3950
      %v3953 = vshrl.u32 %v3652, 16
      %v3955 = vrot.slane %v3953, 4
      %v3956 = vshll.u32 %v3652, 16
      %v3958 = vrot.slane %v3956, 5
      %v3959 = vor.u32 %v3955, %v3958
      %v3960 = vrot.slane %v3959, 4
      %v3962 = vshll.u32 %v3653, 16
      %v3964 = vrot.slane %v3962, 5
      %v3965 = vsel %vm298, %v3960, %v3964
      %v3966 = vshrl.u32 %v3653, 16
      %v3968 = vrot.slane %v3966, 4
      %v3969 = vor.u32 %v3968, %v3964
      %v3970 = vrot.slane %v3969, 4
      %v3972 = vshll.u32 %v3654, 16
      %v3974 = vrot.slane %v3972, 5
      %v3975 = vsel %vm298, %v3970, %v3974
      %v3977 = vshrl.u32 %v3655, 16
      %v3979 = vrot.slane %v3977, 4
      %v3980 = vshll.u32 %v3655, 16
      %v3982 = vrot.slane %v3980, 5
      %v3983 = vor.u32 %v3979, %v3982
      %v3984 = vrot.slane %v3983, 4
      %v3986 = vshll.u32 %v3656, 16
      %v3988 = vrot.slane %v3986, 5
      %v3989 = vsel %vm298, %v3984, %v3988
      %v3990 = vshrl.u32 %v3656, 16
      %v3992 = vrot.slane %v3990, 4
      %v3993 = vor.u32 %v3992, %v3988
      %v3994 = vrot.slane %v3993, 4
      %v3996 = vshll.u32 %v3657, 16
      %v3998 = vrot.slane %v3996, 5
      %v3999 = vsel %vm298, %v3994, %v3998
      %v4001 = vshrl.u32 %v3658, 16
      %v4003 = vrot.slane %v4001, 4
      %v4004 = vshll.u32 %v3658, 16
      %v4006 = vrot.slane %v4004, 5
      %v4007 = vor.u32 %v4003, %v4006
      %v4008 = vrot.slane %v4007, 4
      %v4010 = vshll.u32 %v3659, 16
      %v4012 = vrot.slane %v4010, 5
      %v4013 = vsel %vm298, %v4008, %v4012
      %v4014 = vshrl.u32 %v3659, 16
      %v4016 = vrot.slane %v4014, 4
      %v4017 = vor.u32 %v4016, %v4012
      %v4018 = vrot.slane %v4017, 4
      %v4020 = vshll.u32 %v3660, 16
      %v4022 = vrot.slane %v4020, 5
      %v4023 = vsel %vm298, %v4018, %v4022
      %v4025 = vshrl.u32 %v3661, 16
      %v4027 = vrot.slane %v4025, 4
      %v4028 = vshll.u32 %v3661, 16
      %v4030 = vrot.slane %v4028, 5
      %v4031 = vor.u32 %v4027, %v4030
      %v4032 = vrot.slane %v4031, 4
      %v4034 = vshll.u32 %v3662, 16
      %v4036 = vrot.slane %v4034, 5
      %v4037 = vsel %vm298, %v4032, %v4036
      %v4038 = vshrl.u32 %v3662, 16
      %v4040 = vrot.slane %v4038, 4
      %v4041 = vor.u32 %v4040, %v4036
      %v4042 = vrot.slane %v4041, 4
      %v4044 = vshll.u32 %v3663, 16
      %v4046 = vrot.slane %v4044, 5
      %v4047 = vsel %vm298, %v4042, %v4046
      %s4048 = scalar_lea.vmem %s224, 14
      %v4049 = vld [vmem:[%s4048] sm:$0x3]
      %v4050 = vunpack.c.l.b16 %v3677
      %v4051 = vunpack.c.l.b16 %v3687
      %v4052 = vunpack.c.l.b16 %v3701
      %v4053 = vunpack.c.l.b16 %v3711
      %v4054 = vunpack.c.l.b16 %v3725
      %v4055 = vunpack.c.l.b16 %v3735
      %v4056 = vunpack.c.l.b16 %v3749
      %v4057 = vunpack.c.l.b16 %v3759
      %v4058 = vunpack.c.l.b16 %v3773
      %v4059 = vunpack.c.l.b16 %v3783
      %v4060 = vunpack.c.l.b16 %v3797
      %v4061 = vunpack.c.l.b16 %v3807
      %v4062 = vunpack.c.l.b16 %v3821
      %v4063 = vunpack.c.l.b16 %v3831
      %v4064 = vunpack.c.l.b16 %v3845
      %v4065 = vunpack.c.l.b16 %v3855
      %v4066 = vunpack.c.l.b16 %v3869
      %v4067 = vunpack.c.l.b16 %v3879
      %v4068 = vunpack.c.l.b16 %v3893
      %v4069 = vunpack.c.l.b16 %v3903
      %v4070 = vunpack.c.l.b16 %v3917
      %v4071 = vunpack.c.l.b16 %v3927
      %v4072 = vunpack.c.l.b16 %v3941
      %v4073 = vunpack.c.l.b16 %v3951
      %v4074 = vunpack.c.l.b16 %v3965
      %v4075 = vunpack.c.l.b16 %v3975
      %v4076 = vunpack.c.l.b16 %v3989
      %v4077 = vunpack.c.l.b16 %v3999
      %v4078 = vunpack.c.l.b16 %v4013
      %v4079 = vunpack.c.l.b16 %v4023
      %v4080 = vunpack.c.l.b16 %v4037
      %v4081 = vunpack.c.l.b16 %v4047
      %v4082 = vpack.c.b16 %v4051, %v4050
      %v4083 = vpack.c.b16 %v4053, %v4052
      %v4084 = vpack.c.b16 %v4055, %v4054
      %v4085 = vpack.c.b16 %v4057, %v4056
      %v4086 = vpack.c.b16 %v4059, %v4058
      %v4087 = vpack.c.b16 %v4061, %v4060
      %v4088 = vpack.c.b16 %v4063, %v4062
      %v4089 = vpack.c.b16 %v4065, %v4064
      %v4090 = vpack.c.b16 %v4067, %v4066
      %v4091 = vpack.c.b16 %v4069, %v4068
      %v4092 = vpack.c.b16 %v4071, %v4070
      %v4093 = vpack.c.b16 %v4073, %v4072
      %v4094 = vpack.c.b16 %v4075, %v4074
      %v4095 = vpack.c.b16 %v4077, %v4076
      %v4096 = vpack.c.b16 %v4079, %v4078
      %v4097 = vpack.c.b16 %v4081, %v4080
      %v4099 = vsel %vm733, %v4082, 0
      %v4102 = vsel %vm733, %v4083, 0
      %v4105 = vsel %vm733, %v4084, 0
      %v4108 = vsel %vm733, %v4085, 0
      %v4111 = vsel %vm733, %v4086, 0
      %v4114 = vsel %vm733, %v4087, 0
      %v4117 = vsel %vm733, %v4088, 0
      %v4120 = vsel %vm733, %v4089, 0
      %v4123 = vsel %vm733, %v4090, 0
      %v4126 = vsel %vm733, %v4091, 0
      %v4129 = vsel %vm733, %v4092, 0
      %v4132 = vsel %vm733, %v4093, 0
      %v4135 = vsel %vm733, %v4094, 0
      %v4138 = vsel %vm733, %v4095, 0
      %v4141 = vsel %vm733, %v4096, 0
      %v4144 = vsel %vm733, %v4097, 0
      %v4147 = vsel %vm782, %v4049, 0
      %4149 = vmatprep.subr.bf16.mxu0 0
      %4150 = vmatpush1.bf16.msra.mxu0 0
      %4151 = vmatprep.subr.bf16.mxu0 0
      %4152 = vmatpush1.bf16.msra.mxu0 0
      %4153 = vmatprep.subr.bf16.mxu0 0
      %4154 = vmatpush1.bf16.msra.mxu0 0
      %4155 = vmatprep.subr.bf16.mxu0 0
      %4156 = vmatpush1.bf16.msra.mxu0 0
      %4157 = vmatprep.subr.bf16.mxu0 0
      %4158 = vmatpush1.bf16.msra.mxu0 0
      %4159 = vmatprep.subr.bf16.mxu0 0
      %4160 = vmatpush1.bf16.msra.mxu0 0
      %4161 = vmatprep.subr.bf16.mxu0 0
      %4162 = vmatpush1.bf16.msra.mxu0 0
      %4163 = vmatprep.subr.bf16.mxu0 0
      %4164 = vmatpush1.bf16.msra.mxu0 %v4147
      %4165 = vmatprep.subr.bf16.mxu0 0
      %4166 = vmatpush2.bf16.msra.mxu0 0
      %4167 = vmatprep.subr.bf16.mxu0 0
      %4168 = vmatpush2.bf16.msra.mxu0 0
      %4169 = vmatprep.subr.bf16.mxu0 0
      %4170 = vmatpush2.bf16.msra.mxu0 0
      %4171 = vmatprep.subr.bf16.mxu0 0
      %4172 = vmatpush2.bf16.msra.mxu0 0
      %4173 = vmatprep.subr.bf16.mxu0 0
      %4174 = vmatpush2.bf16.msra.mxu0 0
      %4175 = vmatprep.subr.bf16.mxu0 0
      %4176 = vmatpush2.bf16.msra.mxu0 0
      %4177 = vmatprep.subr.bf16.mxu0 0
      %4178 = vmatpush2.bf16.msra.mxu0 0
      %4179 = vmatprep.subr.bf16.mxu0 0
      %4180 = vmatpush2.bf16.msra.mxu0 0
      %4181 = vmatprep.mubr.bf16.mxu0 0
      %4182 = vmatmul.mubr.bf16.gmra.mxu0 %v4099
      %v4183 = vpop.f32.mrf.mxu0
      %v4184 = vadd.f32 0.0, %v4183
      %v4185 = vpop.f32.mrf.mxu0
      %v4186 = vpop.f32.mrf.mxu0
      %v4187 = vadd.f32 0.0, %v4186
      %v4188 = vpop.f32.mrf.mxu0
      %4189 = vmatprep.mubr.bf16.mxu0 0
      %4190 = vmatmul.mubr.bf16.gmra.mxu0 %v4102
      %v4191 = vpop.f32.mrf.mxu0
      %v4192 = vadd.f32 0.0, %v4191
      %v4193 = vpop.f32.mrf.mxu0
      %v4194 = vpop.f32.mrf.mxu0
      %v4195 = vadd.f32 0.0, %v4194
      %v4196 = vpop.f32.mrf.mxu0
      %4197 = vmatprep.mubr.bf16.mxu0 0
      %4198 = vmatmul.mubr.bf16.gmra.mxu0 %v4105
      %v4199 = vpop.f32.mrf.mxu0
      %v4200 = vadd.f32 0.0, %v4199
      %v4201 = vpop.f32.mrf.mxu0
      %v4202 = vpop.f32.mrf.mxu0
      %v4203 = vadd.f32 0.0, %v4202
      %v4204 = vpop.f32.mrf.mxu0
      %4205 = vmatprep.mubr.bf16.mxu0 0
      %4206 = vmatmul.mubr.bf16.gmra.mxu0 %v4108
      %v4207 = vpop.f32.mrf.mxu0
      %v4208 = vadd.f32 0.0, %v4207
      %v4209 = vpop.f32.mrf.mxu0
      %v4210 = vpop.f32.mrf.mxu0
      %v4211 = vadd.f32 0.0, %v4210
      %v4212 = vpop.f32.mrf.mxu0
      %4213 = vmatprep.mubr.bf16.mxu0 0
      %4214 = vmatmul.mubr.bf16.gmra.mxu0 %v4111
      %v4215 = vpop.f32.mrf.mxu0
      %v4216 = vadd.f32 0.0, %v4215
      %v4217 = vpop.f32.mrf.mxu0
      %v4218 = vpop.f32.mrf.mxu0
      %v4219 = vadd.f32 0.0, %v4218
      %v4220 = vpop.f32.mrf.mxu0
      %4221 = vmatprep.mubr.bf16.mxu0 0
      %4222 = vmatmul.mubr.bf16.gmra.mxu0 %v4114
      %v4223 = vpop.f32.mrf.mxu0
      %v4224 = vadd.f32 0.0, %v4223
      %v4225 = vpop.f32.mrf.mxu0
      %v4226 = vpop.f32.mrf.mxu0
      %v4227 = vadd.f32 0.0, %v4226
      %v4228 = vpop.f32.mrf.mxu0
      %4229 = vmatprep.mubr.bf16.mxu0 0
      %4230 = vmatmul.mubr.bf16.gmra.mxu0 %v4117
      %v4231 = vpop.f32.mrf.mxu0
      %v4232 = vadd.f32 0.0, %v4231
      %v4233 = vpop.f32.mrf.mxu0
      %v4234 = vpop.f32.mrf.mxu0
      %v4235 = vadd.f32 0.0, %v4234
      %v4236 = vpop.f32.mrf.mxu0
      %4237 = vmatprep.mubr.bf16.mxu0 0
      %4238 = vmatmul.mubr.bf16.gmra.mxu0 %v4120
      %v4239 = vpop.f32.mrf.mxu0
      %v4240 = vadd.f32 0.0, %v4239
      %v4241 = vpop.f32.mrf.mxu0
      %v4242 = vpop.f32.mrf.mxu0
      %v4243 = vadd.f32 0.0, %v4242
      %v4244 = vpop.f32.mrf.mxu0
      %4245 = vmatprep.mubr.bf16.mxu0 0
      %4246 = vmatmul.mubr.bf16.gmra.mxu0 %v4123
      %v4247 = vpop.f32.mrf.mxu0
      %v4248 = vadd.f32 0.0, %v4247
      %v4249 = vpop.f32.mrf.mxu0
      %v4250 = vpop.f32.mrf.mxu0
      %v4251 = vadd.f32 0.0, %v4250
      %v4252 = vpop.f32.mrf.mxu0
      %4253 = vmatprep.mubr.bf16.mxu0 0
      %4254 = vmatmul.mubr.bf16.gmra.mxu0 %v4126
      %v4255 = vpop.f32.mrf.mxu0
      %v4256 = vadd.f32 0.0, %v4255
      %v4257 = vpop.f32.mrf.mxu0
      %v4258 = vpop.f32.mrf.mxu0
      %v4259 = vadd.f32 0.0, %v4258
      %v4260 = vpop.f32.mrf.mxu0
      %4261 = vmatprep.mubr.bf16.mxu0 0
      %4262 = vmatmul.mubr.bf16.gmra.mxu0 %v4129
      %v4263 = vpop.f32.mrf.mxu0
      %v4264 = vadd.f32 0.0, %v4263
      %v4265 = vpop.f32.mrf.mxu0
      %v4266 = vpop.f32.mrf.mxu0
      %v4267 = vadd.f32 0.0, %v4266
      %v4268 = vpop.f32.mrf.mxu0
      %4269 = vmatprep.mubr.bf16.mxu0 0
      %4270 = vmatmul.mubr.bf16.gmra.mxu0 %v4132
      %v4271 = vpop.f32.mrf.mxu0
      %v4272 = vadd.f32 0.0, %v4271
      %v4273 = vpop.f32.mrf.mxu0
      %v4274 = vpop.f32.mrf.mxu0
      %v4275 = vadd.f32 0.0, %v4274
      %v4276 = vpop.f32.mrf.mxu0
      %4277 = vmatprep.mubr.bf16.mxu0 0
      %4278 = vmatmul.mubr.bf16.gmra.mxu0 %v4135
      %v4279 = vpop.f32.mrf.mxu0
      %v4280 = vadd.f32 0.0, %v4279
      %v4281 = vpop.f32.mrf.mxu0
      %v4282 = vpop.f32.mrf.mxu0
      %v4283 = vadd.f32 0.0, %v4282
      %v4284 = vpop.f32.mrf.mxu0
      %4285 = vmatprep.mubr.bf16.mxu0 0
      %4286 = vmatmul.mubr.bf16.gmra.mxu0 %v4138
      %v4287 = vpop.f32.mrf.mxu0
      %v4288 = vadd.f32 0.0, %v4287
      %v4289 = vpop.f32.mrf.mxu0
      %v4290 = vpop.f32.mrf.mxu0
      %v4291 = vadd.f32 0.0, %v4290
      %v4292 = vpop.f32.mrf.mxu0
      %4293 = vmatprep.mubr.bf16.mxu0 0
      %4294 = vmatmul.mubr.bf16.gmra.mxu0 %v4141
      %v4295 = vpop.f32.mrf.mxu0
      %v4296 = vadd.f32 0.0, %v4295
      %v4297 = vpop.f32.mrf.mxu0
      %v4298 = vpop.f32.mrf.mxu0
      %v4299 = vadd.f32 0.0, %v4298
      %v4300 = vpop.f32.mrf.mxu0
      %4301 = vmatprep.mubr.bf16.mxu0 0
      %4302 = vmatmul.mubr.bf16.gmra.mxu0 %v4144
      %v4303 = vpop.f32.mrf.mxu0
      %v4304 = vadd.f32 0.0, %v4303
      %v4305 = vpop.f32.mrf.mxu0
      %v4306 = vpop.f32.mrf.mxu0
      %v4307 = vadd.f32 0.0, %v4306
      %v4308 = vpop.f32.mrf.mxu0
      %4309 = vdwg.mxu0
      %v4310 = vadd.f32 %v3584, %v4184
      %v4311 = vadd.f32 %v3585, %v4187
      %v4312 = vadd.f32 %v3586, %v4192
      %v4313 = vadd.f32 %v3587, %v4195
      %v4314 = vadd.f32 %v3588, %v4200
      %v4315 = vadd.f32 %v3589, %v4203
      %v4316 = vadd.f32 %v3590, %v4208
      %v4317 = vadd.f32 %v3591, %v4211
      %v4318 = vadd.f32 %v3592, %v4216
      %v4319 = vadd.f32 %v3593, %v4219
      %v4320 = vadd.f32 %v3594, %v4224
      %v4321 = vadd.f32 %v3595, %v4227
      %v4322 = vadd.f32 %v3596, %v4232
      %v4323 = vadd.f32 %v3597, %v4235
      %v4324 = vadd.f32 %v3598, %v4240
      %v4325 = vadd.f32 %v3599, %v4243
      %v4326 = vadd.f32 %v3600, %v4248
      %v4327 = vadd.f32 %v3601, %v4251
      %v4328 = vadd.f32 %v3602, %v4256
      %v4329 = vadd.f32 %v3603, %v4259
      %v4330 = vadd.f32 %v3604, %v4264
      %v4331 = vadd.f32 %v3605, %v4267
      %v4332 = vadd.f32 %v3606, %v4272
      %v4333 = vadd.f32 %v3607, %v4275
      %v4334 = vadd.f32 %v3608, %v4280
      %v4335 = vadd.f32 %v3609, %v4283
      %v4336 = vadd.f32 %v3610, %v4288
      %v4337 = vadd.f32 %v3611, %v4291
      %v4338 = vadd.f32 %v3612, %v4296
      %v4339 = vadd.f32 %v3613, %v4299
      %v4340 = vadd.f32 %v3614, %v4304
      %v4341 = vadd.f32 %v3615, %v4307
      %v4342 = vld [vmem:[%s3257] sm:$0xe]
      %v4343 = vld [vmem:[%s3257 + $0xc] sm:$0xe]
      %v4344 = vld [vmem:[%s3257 + $0x18] sm:$0xe]
      %v4345 = vld [vmem:[%s3257 + $0x24] sm:$0xe]
      %v4346 = vld [vmem:[%s3257 + $0x30] sm:$0xe]
      %v4347 = vld [vmem:[%s3257 + $0x3c] sm:$0xe]
      %v4348 = vld [vmem:[%s3257 + $0x48] sm:$0xe]
      %v4349 = vld [vmem:[%s3257 + $0x54] sm:$0xe]
      %v4350 = vld [vmem:[%s3257 + $0x60] sm:$0xe]
      %v4351 = vld [vmem:[%s3257 + $0x6c] sm:$0xe]
      %v4352 = vld [vmem:[%s3257 + $0x78] sm:$0xe]
      %v4353 = vld [vmem:[%s3257 + $0x84] sm:$0xe]
      %v4354 = vld [vmem:[%s3257 + $0x90] sm:$0xe]
      %v4355 = vld [vmem:[%s3257 + $0x9c] sm:$0xe]
      %v4356 = vld [vmem:[%s3257 + $0xa8] sm:$0xe]
      %v4357 = vld [vmem:[%s3257 + $0xb4] sm:$0xe]
      %v4406 = vrot.slane %v4342, 5
      %v4407 = vrot.slane %v4406, 4
      %v4408 = vrot.slane %v3617, 5
      %v4409 = vsel %vm1289, %v4407, %v4408
      %v4410 = vrot.slane %v4408, 4
      %v4411 = vrot.slane %v3618, 5
      %v4412 = vsel %vm1289, %v4410, %v4411
      %v4413 = vrot.slane %v4343, 5
      %v4414 = vrot.slane %v4413, 4
      %v4415 = vrot.slane %v3620, 5
      %v4416 = vsel %vm1289, %v4414, %v4415
      %v4417 = vrot.slane %v4415, 4
      %v4418 = vrot.slane %v3621, 5
      %v4419 = vsel %vm1289, %v4417, %v4418
      %v4420 = vrot.slane %v4344, 5
      %v4421 = vrot.slane %v4420, 4
      %v4422 = vrot.slane %v3623, 5
      %v4423 = vsel %vm1289, %v4421, %v4422
      %v4424 = vrot.slane %v4422, 4
      %v4425 = vrot.slane %v3624, 5
      %v4426 = vsel %vm1289, %v4424, %v4425
      %v4427 = vrot.slane %v4345, 5
      %v4428 = vrot.slane %v4427, 4
      %v4429 = vrot.slane %v3626, 5
      %v4430 = vsel %vm1289, %v4428, %v4429
      %v4431 = vrot.slane %v4429, 4
      %v4432 = vrot.slane %v3627, 5
      %v4433 = vsel %vm1289, %v4431, %v4432
      %v4434 = vrot.slane %v4346, 5
      %v4435 = vrot.slane %v4434, 4
      %v4436 = vrot.slane %v3629, 5
      %v4437 = vsel %vm1289, %v4435, %v4436
      %v4438 = vrot.slane %v4436, 4
      %v4439 = vrot.slane %v3630, 5
      %v4440 = vsel %vm1289, %v4438, %v4439
      %v4441 = vrot.slane %v4347, 5
      %v4442 = vrot.slane %v4441, 4
      %v4443 = vrot.slane %v3632, 5
      %v4444 = vsel %vm1289, %v4442, %v4443
      %v4445 = vrot.slane %v4443, 4
      %v4446 = vrot.slane %v3633, 5
      %v4447 = vsel %vm1289, %v4445, %v4446
      %v4448 = vrot.slane %v4348, 5
      %v4449 = vrot.slane %v4448, 4
      %v4450 = vrot.slane %v3635, 5
      %v4451 = vsel %vm1289, %v4449, %v4450
      %v4452 = vrot.slane %v4450, 4
      %v4453 = vrot.slane %v3636, 5
      %v4454 = vsel %vm1289, %v4452, %v4453
      %v4455 = vrot.slane %v4349, 5
      %v4456 = vrot.slane %v4455, 4
      %v4457 = vrot.slane %v3638, 5
      %v4458 = vsel %vm1289, %v4456, %v4457
      %v4459 = vrot.slane %v4457, 4
      %v4460 = vrot.slane %v3639, 5
      %v4461 = vsel %vm1289, %v4459, %v4460
      %v4462 = vrot.slane %v4350, 5
      %v4463 = vrot.slane %v4462, 4
      %v4464 = vrot.slane %v3641, 5
      %v4465 = vsel %vm1289, %v4463, %v4464
      %v4466 = vrot.slane %v4464, 4
      %v4467 = vrot.slane %v3642, 5
      %v4468 = vsel %vm1289, %v4466, %v4467
      %v4469 = vrot.slane %v4351, 5
      %v4470 = vrot.slane %v4469, 4
      %v4471 = vrot.slane %v3644, 5
      %v4472 = vsel %vm1289, %v4470, %v4471
      %v4473 = vrot.slane %v4471, 4
      %v4474 = vrot.slane %v3645, 5
      %v4475 = vsel %vm1289, %v4473, %v4474
      %v4476 = vrot.slane %v4352, 5
      %v4477 = vrot.slane %v4476, 4
      %v4478 = vrot.slane %v3647, 5
      %v4479 = vsel %vm1289, %v4477, %v4478
      %v4480 = vrot.slane %v4478, 4
      %v4481 = vrot.slane %v3648, 5
      %v4482 = vsel %vm1289, %v4480, %v4481
      %v4483 = vrot.slane %v4353, 5
      %v4484 = vrot.slane %v4483, 4
      %v4485 = vrot.slane %v3650, 5
      %v4486 = vsel %vm1289, %v4484, %v4485
      %v4487 = vrot.slane %v4485, 4
      %v4488 = vrot.slane %v3651, 5
      %v4489 = vsel %vm1289, %v4487, %v4488
      %v4490 = vrot.slane %v4354, 5
      %v4491 = vrot.slane %v4490, 4
      %v4492 = vrot.slane %v3653, 5
      %v4493 = vsel %vm1289, %v4491, %v4492
      %v4494 = vrot.slane %v4492, 4
      %v4495 = vrot.slane %v3654, 5
      %v4496 = vsel %vm1289, %v4494, %v4495
      %v4497 = vrot.slane %v4355, 5
      %v4498 = vrot.slane %v4497, 4
      %v4499 = vrot.slane %v3656, 5
      %v4500 = vsel %vm1289, %v4498, %v4499
      %v4501 = vrot.slane %v4499, 4
      %v4502 = vrot.slane %v3657, 5
      %v4503 = vsel %vm1289, %v4501, %v4502
      %v4504 = vrot.slane %v4356, 5
      %v4505 = vrot.slane %v4504, 4
      %v4506 = vrot.slane %v3659, 5
      %v4507 = vsel %vm1289, %v4505, %v4506
      %v4508 = vrot.slane %v4506, 4
      %v4509 = vrot.slane %v3660, 5
      %v4510 = vsel %vm1289, %v4508, %v4509
      %v4511 = vrot.slane %v4357, 5
      %v4512 = vrot.slane %v4511, 4
      %v4513 = vrot.slane %v3662, 5
      %v4514 = vsel %vm1289, %v4512, %v4513
      %v4515 = vrot.slane %v4513, 4
      %v4516 = vrot.slane %v3663, 5
      %v4517 = vsel %vm1289, %v4515, %v4516
      %s4518 = scalar_lea.vmem %s224, 16
      %v4519 = vld [vmem:[%s4518] sm:$0x3]
      %v4520 = vunpack.c.l.b16 %v4409
      %v4521 = vunpack.c.l.b16 %v4412
      %v4522 = vunpack.c.l.b16 %v4416
      %v4523 = vunpack.c.l.b16 %v4419
      %v4524 = vunpack.c.l.b16 %v4423
      %v4525 = vunpack.c.l.b16 %v4426
      %v4526 = vunpack.c.l.b16 %v4430
      %v4527 = vunpack.c.l.b16 %v4433
      %v4528 = vunpack.c.l.b16 %v4437
      %v4529 = vunpack.c.l.b16 %v4440
      %v4530 = vunpack.c.l.b16 %v4444
      %v4531 = vunpack.c.l.b16 %v4447
      %v4532 = vunpack.c.l.b16 %v4451
      %v4533 = vunpack.c.l.b16 %v4454
      %v4534 = vunpack.c.l.b16 %v4458
      %v4535 = vunpack.c.l.b16 %v4461
      %v4536 = vunpack.c.l.b16 %v4465
      %v4537 = vunpack.c.l.b16 %v4468
      %v4538 = vunpack.c.l.b16 %v4472
      %v4539 = vunpack.c.l.b16 %v4475
      %v4540 = vunpack.c.l.b16 %v4479
      %v4541 = vunpack.c.l.b16 %v4482
      %v4542 = vunpack.c.l.b16 %v4486
      %v4543 = vunpack.c.l.b16 %v4489
      %v4544 = vunpack.c.l.b16 %v4493
      %v4545 = vunpack.c.l.b16 %v4496
      %v4546 = vunpack.c.l.b16 %v4500
      %v4547 = vunpack.c.l.b16 %v4503
      %v4548 = vunpack.c.l.b16 %v4507
      %v4549 = vunpack.c.l.b16 %v4510
      %v4550 = vunpack.c.l.b16 %v4514
      %v4551 = vunpack.c.l.b16 %v4517
      %v4552 = vpack.c.b16 %v4521, %v4520
      %v4553 = vpack.c.b16 %v4523, %v4522
      %v4554 = vpack.c.b16 %v4525, %v4524
      %v4555 = vpack.c.b16 %v4527, %v4526
      %v4556 = vpack.c.b16 %v4529, %v4528
      %v4557 = vpack.c.b16 %v4531, %v4530
      %v4558 = vpack.c.b16 %v4533, %v4532
      %v4559 = vpack.c.b16 %v4535, %v4534
      %v4560 = vpack.c.b16 %v4537, %v4536
      %v4561 = vpack.c.b16 %v4539, %v4538
      %v4562 = vpack.c.b16 %v4541, %v4540
      %v4563 = vpack.c.b16 %v4543, %v4542
      %v4564 = vpack.c.b16 %v4545, %v4544
      %v4565 = vpack.c.b16 %v4547, %v4546
      %v4566 = vpack.c.b16 %v4549, %v4548
      %v4567 = vpack.c.b16 %v4551, %v4550
      %v4569 = vsel %vm733, %v4552, 0
      %v4572 = vsel %vm733, %v4553, 0
      %v4575 = vsel %vm733, %v4554, 0
      %v4578 = vsel %vm733, %v4555, 0
      %v4581 = vsel %vm733, %v4556, 0
      %v4584 = vsel %vm733, %v4557, 0
      %v4587 = vsel %vm733, %v4558, 0
      %v4590 = vsel %vm733, %v4559, 0
      %v4593 = vsel %vm733, %v4560, 0
      %v4596 = vsel %vm733, %v4561, 0
      %v4599 = vsel %vm733, %v4562, 0
      %v4602 = vsel %vm733, %v4563, 0
      %v4605 = vsel %vm733, %v4564, 0
      %v4608 = vsel %vm733, %v4565, 0
      %v4611 = vsel %vm733, %v4566, 0
      %v4614 = vsel %vm733, %v4567, 0
      %v4617 = vsel %vm782, %v4519, 0
      %4619 = vmatprep.subr.bf16.mxu0 0
      %4620 = vmatpush1.bf16.msra.mxu0 0
      %4621 = vmatprep.subr.bf16.mxu0 0
      %4622 = vmatpush1.bf16.msra.mxu0 0
      %4623 = vmatprep.subr.bf16.mxu0 0
      %4624 = vmatpush1.bf16.msra.mxu0 0
      %4625 = vmatprep.subr.bf16.mxu0 0
      %4626 = vmatpush1.bf16.msra.mxu0 0
      %4627 = vmatprep.subr.bf16.mxu0 0
      %4628 = vmatpush1.bf16.msra.mxu0 0
      %4629 = vmatprep.subr.bf16.mxu0 0
      %4630 = vmatpush1.bf16.msra.mxu0 0
      %4631 = vmatprep.subr.bf16.mxu0 0
      %4632 = vmatpush1.bf16.msra.mxu0 0
      %4633 = vmatprep.subr.bf16.mxu0 0
      %4634 = vmatpush1.bf16.msra.mxu0 %v4617
      %4635 = vmatprep.subr.bf16.mxu0 0
      %4636 = vmatpush2.bf16.msra.mxu0 0
      %4637 = vmatprep.subr.bf16.mxu0 0
      %4638 = vmatpush2.bf16.msra.mxu0 0
      %4639 = vmatprep.subr.bf16.mxu0 0
      %4640 = vmatpush2.bf16.msra.mxu0 0
      %4641 = vmatprep.subr.bf16.mxu0 0
      %4642 = vmatpush2.bf16.msra.mxu0 0
      %4643 = vmatprep.subr.bf16.mxu0 0
      %4644 = vmatpush2.bf16.msra.mxu0 0
      %4645 = vmatprep.subr.bf16.mxu0 0
      %4646 = vmatpush2.bf16.msra.mxu0 0
      %4647 = vmatprep.subr.bf16.mxu0 0
      %4648 = vmatpush2.bf16.msra.mxu0 0
      %4649 = vmatprep.subr.bf16.mxu0 0
      %4650 = vmatpush2.bf16.msra.mxu0 0
      %4651 = vmatprep.mubr.bf16.mxu0 0
      %4652 = vmatmul.mubr.bf16.gmra.mxu0 %v4569
      %v4653 = vpop.f32.mrf.mxu0
      %v4654 = vadd.f32 0.0, %v4653
      %v4655 = vpop.f32.mrf.mxu0
      %v4656 = vpop.f32.mrf.mxu0
      %v4657 = vadd.f32 0.0, %v4656
      %v4658 = vpop.f32.mrf.mxu0
      %4659 = vmatprep.mubr.bf16.mxu0 0
      %4660 = vmatmul.mubr.bf16.gmra.mxu0 %v4572
      %v4661 = vpop.f32.mrf.mxu0
      %v4662 = vadd.f32 0.0, %v4661
      %v4663 = vpop.f32.mrf.mxu0
      %v4664 = vpop.f32.mrf.mxu0
      %v4665 = vadd.f32 0.0, %v4664
      %v4666 = vpop.f32.mrf.mxu0
      %4667 = vmatprep.mubr.bf16.mxu0 0
      %4668 = vmatmul.mubr.bf16.gmra.mxu0 %v4575
      %v4669 = vpop.f32.mrf.mxu0
      %v4670 = vadd.f32 0.0, %v4669
      %v4671 = vpop.f32.mrf.mxu0
      %v4672 = vpop.f32.mrf.mxu0
      %v4673 = vadd.f32 0.0, %v4672
      %v4674 = vpop.f32.mrf.mxu0
      %4675 = vmatprep.mubr.bf16.mxu0 0
      %4676 = vmatmul.mubr.bf16.gmra.mxu0 %v4578
      %v4677 = vpop.f32.mrf.mxu0
      %v4678 = vadd.f32 0.0, %v4677
      %v4679 = vpop.f32.mrf.mxu0
      %v4680 = vpop.f32.mrf.mxu0
      %v4681 = vadd.f32 0.0, %v4680
      %v4682 = vpop.f32.mrf.mxu0
      %4683 = vmatprep.mubr.bf16.mxu0 0
      %4684 = vmatmul.mubr.bf16.gmra.mxu0 %v4581
      %v4685 = vpop.f32.mrf.mxu0
      %v4686 = vadd.f32 0.0, %v4685
      %v4687 = vpop.f32.mrf.mxu0
      %v4688 = vpop.f32.mrf.mxu0
      %v4689 = vadd.f32 0.0, %v4688
      %v4690 = vpop.f32.mrf.mxu0
      %4691 = vmatprep.mubr.bf16.mxu0 0
      %4692 = vmatmul.mubr.bf16.gmra.mxu0 %v4584
      %v4693 = vpop.f32.mrf.mxu0
      %v4694 = vadd.f32 0.0, %v4693
      %v4695 = vpop.f32.mrf.mxu0
      %v4696 = vpop.f32.mrf.mxu0
      %v4697 = vadd.f32 0.0, %v4696
      %v4698 = vpop.f32.mrf.mxu0
      %4699 = vmatprep.mubr.bf16.mxu0 0
      %4700 = vmatmul.mubr.bf16.gmra.mxu0 %v4587
      %v4701 = vpop.f32.mrf.mxu0
      %v4702 = vadd.f32 0.0, %v4701
      %v4703 = vpop.f32.mrf.mxu0
      %v4704 = vpop.f32.mrf.mxu0
      %v4705 = vadd.f32 0.0, %v4704
      %v4706 = vpop.f32.mrf.mxu0
      %4707 = vmatprep.mubr.bf16.mxu0 0
      %4708 = vmatmul.mubr.bf16.gmra.mxu0 %v4590
      %v4709 = vpop.f32.mrf.mxu0
      %v4710 = vadd.f32 0.0, %v4709
      %v4711 = vpop.f32.mrf.mxu0
      %v4712 = vpop.f32.mrf.mxu0
      %v4713 = vadd.f32 0.0, %v4712
      %v4714 = vpop.f32.mrf.mxu0
      %4715 = vmatprep.mubr.bf16.mxu0 0
      %4716 = vmatmul.mubr.bf16.gmra.mxu0 %v4593
      %v4717 = vpop.f32.mrf.mxu0
      %v4718 = vadd.f32 0.0, %v4717
      %v4719 = vpop.f32.mrf.mxu0
      %v4720 = vpop.f32.mrf.mxu0
      %v4721 = vadd.f32 0.0, %v4720
      %v4722 = vpop.f32.mrf.mxu0
      %4723 = vmatprep.mubr.bf16.mxu0 0
      %4724 = vmatmul.mubr.bf16.gmra.mxu0 %v4596
      %v4725 = vpop.f32.mrf.mxu0
      %v4726 = vadd.f32 0.0, %v4725
      %v4727 = vpop.f32.mrf.mxu0
      %v4728 = vpop.f32.mrf.mxu0
      %v4729 = vadd.f32 0.0, %v4728
      %v4730 = vpop.f32.mrf.mxu0
      %4731 = vmatprep.mubr.bf16.mxu0 0
      %4732 = vmatmul.mubr.bf16.gmra.mxu0 %v4599
      %v4733 = vpop.f32.mrf.mxu0
      %v4734 = vadd.f32 0.0, %v4733
      %v4735 = vpop.f32.mrf.mxu0
      %v4736 = vpop.f32.mrf.mxu0
      %v4737 = vadd.f32 0.0, %v4736
      %v4738 = vpop.f32.mrf.mxu0
      %4739 = vmatprep.mubr.bf16.mxu0 0
      %4740 = vmatmul.mubr.bf16.gmra.mxu0 %v4602
      %v4741 = vpop.f32.mrf.mxu0
      %v4742 = vadd.f32 0.0, %v4741
      %v4743 = vpop.f32.mrf.mxu0
      %v4744 = vpop.f32.mrf.mxu0
      %v4745 = vadd.f32 0.0, %v4744
      %v4746 = vpop.f32.mrf.mxu0
      %4747 = vmatprep.mubr.bf16.mxu0 0
      %4748 = vmatmul.mubr.bf16.gmra.mxu0 %v4605
      %v4749 = vpop.f32.mrf.mxu0
      %v4750 = vadd.f32 0.0, %v4749
      %v4751 = vpop.f32.mrf.mxu0
      %v4752 = vpop.f32.mrf.mxu0
      %v4753 = vadd.f32 0.0, %v4752
      %v4754 = vpop.f32.mrf.mxu0
      %4755 = vmatprep.mubr.bf16.mxu0 0
      %4756 = vmatmul.mubr.bf16.gmra.mxu0 %v4608
      %v4757 = vpop.f32.mrf.mxu0
      %v4758 = vadd.f32 0.0, %v4757
      %v4759 = vpop.f32.mrf.mxu0
      %v4760 = vpop.f32.mrf.mxu0
      %v4761 = vadd.f32 0.0, %v4760
      %v4762 = vpop.f32.mrf.mxu0
      %4763 = vmatprep.mubr.bf16.mxu0 0
      %4764 = vmatmul.mubr.bf16.gmra.mxu0 %v4611
      %v4765 = vpop.f32.mrf.mxu0
      %v4766 = vadd.f32 0.0, %v4765
      %v4767 = vpop.f32.mrf.mxu0
      %v4768 = vpop.f32.mrf.mxu0
      %v4769 = vadd.f32 0.0, %v4768
      %v4770 = vpop.f32.mrf.mxu0
      %4771 = vmatprep.mubr.bf16.mxu0 0
      %4772 = vmatmul.mubr.bf16.gmra.mxu0 %v4614
      %v4773 = vpop.f32.mrf.mxu0
      %v4774 = vadd.f32 0.0, %v4773
      %v4775 = vpop.f32.mrf.mxu0
      %v4776 = vpop.f32.mrf.mxu0
      %v4777 = vadd.f32 0.0, %v4776
      %v4778 = vpop.f32.mrf.mxu0
      %4779 = vdwg.mxu0
      %v4780 = vadd.f32 %v4310, %v4654
      %v4781 = vadd.f32 %v4311, %v4657
      %v4782 = vadd.f32 %v4312, %v4662
      %v4783 = vadd.f32 %v4313, %v4665
      %v4784 = vadd.f32 %v4314, %v4670
      %v4785 = vadd.f32 %v4315, %v4673
      %v4786 = vadd.f32 %v4316, %v4678
      %v4787 = vadd.f32 %v4317, %v4681
      %v4788 = vadd.f32 %v4318, %v4686
      %v4789 = vadd.f32 %v4319, %v4689
      %v4790 = vadd.f32 %v4320, %v4694
      %v4791 = vadd.f32 %v4321, %v4697
      %v4792 = vadd.f32 %v4322, %v4702
      %v4793 = vadd.f32 %v4323, %v4705
      %v4794 = vadd.f32 %v4324, %v4710
      %v4795 = vadd.f32 %v4325, %v4713
      %v4796 = vadd.f32 %v4326, %v4718
      %v4797 = vadd.f32 %v4327, %v4721
      %v4798 = vadd.f32 %v4328, %v4726
      %v4799 = vadd.f32 %v4329, %v4729
      %v4800 = vadd.f32 %v4330, %v4734
      %v4801 = vadd.f32 %v4331, %v4737
      %v4802 = vadd.f32 %v4332, %v4742
      %v4803 = vadd.f32 %v4333, %v4745
      %v4804 = vadd.f32 %v4334, %v4750
      %v4805 = vadd.f32 %v4335, %v4753
      %v4806 = vadd.f32 %v4336, %v4758
      %v4807 = vadd.f32 %v4337, %v4761
      %v4808 = vadd.f32 %v4338, %v4766
      %v4809 = vadd.f32 %v4339, %v4769
      %v4810 = vadd.f32 %v4340, %v4774
      %v4811 = vadd.f32 %v4341, %v4777
      %v4812 = vld [vmem:[%s227] sm:$0x1]
      %v4814 = vlaneseq
      %v4815 = vshrl.u32 %v4814, 7
      %v4816 = vsub.s32 0, %v4815
      %v4817 = vrot.slane %v4812, %v4816
      %v4819 = vadd.f32 %v4780, %v4817
      %v4820 = vadd.f32 %v4781, %v4817
      %v4821 = vadd.f32 %v4782, %v4817
      %v4822 = vadd.f32 %v4783, %v4817
      %v4823 = vadd.f32 %v4784, %v4817
      %v4824 = vadd.f32 %v4785, %v4817
      %v4825 = vadd.f32 %v4786, %v4817
      %v4826 = vadd.f32 %v4787, %v4817
      %v4827 = vadd.f32 %v4788, %v4817
      %v4828 = vadd.f32 %v4789, %v4817
      %v4829 = vadd.f32 %v4790, %v4817
      %v4830 = vadd.f32 %v4791, %v4817
      %v4831 = vadd.f32 %v4792, %v4817
      %v4832 = vadd.f32 %v4793, %v4817
      %v4833 = vadd.f32 %v4794, %v4817
      %v4834 = vadd.f32 %v4795, %v4817
      %v4835 = vadd.f32 %v4796, %v4817
      %v4836 = vadd.f32 %v4797, %v4817
      %v4837 = vadd.f32 %v4798, %v4817
      %v4838 = vadd.f32 %v4799, %v4817
      %v4839 = vadd.f32 %v4800, %v4817
      %v4840 = vadd.f32 %v4801, %v4817
      %v4841 = vadd.f32 %v4802, %v4817
      %v4842 = vadd.f32 %v4803, %v4817
      %v4843 = vadd.f32 %v4804, %v4817
      %v4844 = vadd.f32 %v4805, %v4817
      %v4845 = vadd.f32 %v4806, %v4817
      %v4846 = vadd.f32 %v4807, %v4817
      %v4847 = vadd.f32 %v4808, %v4817
      %v4848 = vadd.f32 %v4809, %v4817
      %v4849 = vadd.f32 %v4810, %v4817
      %v4850 = vadd.f32 %v4811, %v4817
      %v4851 = vmax.f32 %v4819, 0.0
      %v4852 = vmax.f32 %v4820, 0.0
      %v4853 = vmax.f32 %v4821, 0.0
      %v4854 = vmax.f32 %v4822, 0.0
      %v4855 = vmax.f32 %v4823, 0.0
      %v4856 = vmax.f32 %v4824, 0.0
      %v4857 = vmax.f32 %v4825, 0.0
      %v4858 = vmax.f32 %v4826, 0.0
      %v4859 = vmax.f32 %v4827, 0.0
      %v4860 = vmax.f32 %v4828, 0.0
      %v4861 = vmax.f32 %v4829, 0.0
      %v4862 = vmax.f32 %v4830, 0.0
      %v4863 = vmax.f32 %v4831, 0.0
      %v4864 = vmax.f32 %v4832, 0.0
      %v4865 = vmax.f32 %v4833, 0.0
      %v4866 = vmax.f32 %v4834, 0.0
      %v4867 = vmax.f32 %v4835, 0.0
      %v4868 = vmax.f32 %v4836, 0.0
      %v4869 = vmax.f32 %v4837, 0.0
      %v4870 = vmax.f32 %v4838, 0.0
      %v4871 = vmax.f32 %v4839, 0.0
      %v4872 = vmax.f32 %v4840, 0.0
      %v4873 = vmax.f32 %v4841, 0.0
      %v4874 = vmax.f32 %v4842, 0.0
      %v4875 = vmax.f32 %v4843, 0.0
      %v4876 = vmax.f32 %v4844, 0.0
      %v4877 = vmax.f32 %v4845, 0.0
      %v4878 = vmax.f32 %v4846, 0.0
      %v4879 = vmax.f32 %v4847, 0.0
      %v4880 = vmax.f32 %v4848, 0.0
      %v4881 = vmax.f32 %v4849, 0.0
      %v4882 = vmax.f32 %v4850, 0.0
      %4883 = vst [vmem:[%s240] sm:$0xff] %v4851
      %4884 = vst [vmem:[%s240 + $0x8] sm:$0xff] %v4852
      %4885 = vst [vmem:[%s240 + $0x10] sm:$0xff] %v4853
      %4886 = vst [vmem:[%s240 + $0x18] sm:$0xff] %v4854
      %4887 = vst [vmem:[%s240 + $0x20] sm:$0xff] %v4855
      %4888 = vst [vmem:[%s240 + $0x28] sm:$0xff] %v4856
      %4889 = vst [vmem:[%s240 + $0x30] sm:$0xff] %v4857
      %4890 = vst [vmem:[%s240 + $0x38] sm:$0xff] %v4858
      %4891 = vst [vmem:[%s240 + $0x40] sm:$0xff] %v4859
      %4892 = vst [vmem:[%s240 + $0x48] sm:$0xff] %v4860
      %4893 = vst [vmem:[%s240 + $0x50] sm:$0xff] %v4861
      %4894 = vst [vmem:[%s240 + $0x58] sm:$0xff] %v4862
      %4895 = vst [vmem:[%s240 + $0x60] sm:$0xff] %v4863
      %4896 = vst [vmem:[%s240 + $0x68] sm:$0xff] %v4864
      %4897 = vst [vmem:[%s240 + $0x70] sm:$0xff] %v4865
      %4898 = vst [vmem:[%s240 + $0x78] sm:$0xff] %v4866
      %4899 = vst [vmem:[%s240 + $0x80] sm:$0xff] %v4867
      %4900 = vst [vmem:[%s240 + $0x88] sm:$0xff] %v4868
      %4901 = vst [vmem:[%s240 + $0x90] sm:$0xff] %v4869
      %4902 = vst [vmem:[%s240 + $0x98] sm:$0xff] %v4870
      %4903 = vst [vmem:[%s240 + $0xa0] sm:$0xff] %v4871
      %4904 = vst [vmem:[%s240 + $0xa8] sm:$0xff] %v4872
      %4905 = vst [vmem:[%s240 + $0xb0] sm:$0xff] %v4873
      %4906 = vst [vmem:[%s240 + $0xb8] sm:$0xff] %v4874
      %4907 = vst [vmem:[%s240 + $0xc0] sm:$0xff] %v4875
      %4908 = vst [vmem:[%s240 + $0xc8] sm:$0xff] %v4876
      %4909 = vst [vmem:[%s240 + $0xd0] sm:$0xff] %v4877
      %4910 = vst [vmem:[%s240 + $0xd8] sm:$0xff] %v4878
      %4911 = vst [vmem:[%s240 + $0xe0] sm:$0xff] %v4879
      %4912 = vst [vmem:[%s240 + $0xe8] sm:$0xff] %v4880
      %4913 = vst [vmem:[%s240 + $0xf0] sm:$0xff] %v4881
      %4914 = vst [vmem:[%s240 + $0xf8] sm:$0xff] %v4882
      %s4915 = smul.u32 16, %s20
      %p4916 = scmp.lt.s32.totalorder %s19, 1
      %s4917 = scalar_select %p4916, %s19, 1
      %p4918 = scmp.lt.s32.totalorder %s4915, 15
      %s4919 = scalar_select %p4918, %s4915, 15
      %p4920 = scmp.lt.s32.totalorder %s21, 0
      %s4921 = scalar_select %p4920, %s21, 0
      %s4922 = smul.addr %s4919, 2
      %s4923 = sadd.s32 %s4921, %s4922
      %s4924 = smul.addr %s4917, 32
      %s4925 = sadd.s32 %s4923, %s4924
      %s4926 = smul.addr %s4925, 8
      %s4927 = scalar_lea.vmem %s3, %s4926
      // Predicated region
      $region33: #{conv_block_forward.1} parent=31 // pred_check
        %p4928 = pneg %p133
      $region34: #{conv_block_forward.1} parent=31 // pred_check_branch
        %4930 = sbr.rel (%p4928) target = $region36
      $region35: #{conv_block_forward.1} parent=31 // pred_region
        %s4931 = smul.u32 16, %s20
      $region36: #{conv_block_forward.1} parent=31 // pred_fallthru
        _
    $region32: #{conv_block_forward.1} parent=5 // pred_fallthru
      _
    %p4932 = scmp.le.s32.totalorder 2, %s9
    // Predicated region
    $region37: #{conv_block_forward.1} parent=5 // pred_check
      %p4933 = pneg %p4932
    $region38: #{conv_block_forward.1} parent=5 // pred_check_branch
      %4935 = sbr.rel (%p4933) target = $region40
    $region39: #{conv_block_forward.1} parent=5 // pred_region
      %s4936 = ssub.s32 %s9, 2
      // Predicated region
      $region41: #{conv_block_forward.1} parent=39 // pred_check
        %p4937 = pneg %p139
      $region42: #{conv_block_forward.1} parent=39 // pred_check_branch
        %4939 = sbr.rel (%p4937) target = $region44
      $region43: #{conv_block_forward.1} parent=39 // pred_region
        %s4940 = smul.u32 16, %s23
        %p4941 = scmp.lt.s32.totalorder %s22, 1
        %s4942 = scalar_select %p4941, %s22, 1
        %p4943 = scmp.lt.s32.totalorder %s4940, 15
        %s4944 = scalar_select %p4943, %s4940, 15
        %p4945 = scmp.lt.s32.totalorder %s24, 0
        %s4946 = scalar_select %p4945, %s24, 0
        %s4947 = smul.addr %s4944, 2
        %s4948 = sadd.s32 %s4946, %s4947
        %s4949 = smul.addr %s4942, 32
        %s4950 = sadd.s32 %s4948, %s4949
        %s4951 = smul.addr %s4950, 8
        %s4952 = scalar_lea.vmem %s3, %s4951
      $region44: #{conv_block_forward.1} parent=39 // pred_fallthru
        _
    $region40: #{conv_block_forward.1} parent=5 // pred_fallthru
      _
  $region6: #{conv_block_forward.1} parent=0 // loop_footer
    %s13 = sadd.s32 1, %s9
  $region7: #{conv_block_forward.1} parent=0 // loop_footer_branch
    %8 = sbr.rel target = $region3
  $region8: #{conv_block_forward.1} parent=0 // loop_exit
    _

</llo_original>
